<compile_context>
chip_gen: v5e
topology: v5e:2x2
jax: 0.10.0
libtpu: 0.0.40
codegen_flags: <defaults>
</compile_context>

<pallas_src>
import functools
import math

import jax
import jax.numpy as jnp
from jax.experimental import pallas as pl
from jax.experimental.pallas import tpu as pltpu

_LN_EPS = 1e-5
_HI = jax.lax.Precision.HIGHEST   # reference (ground truth) only


def _round_up(v, m):
    return ((v + m - 1) // m) * m


@functools.lru_cache(maxsize=None)
def _vmem_budget():
    """Per-generation VMEM budget (bytes): ~75% of physical, capped at 100MiB."""
    try:
        cap = pltpu.get_tpu_info().vmem_capacity_bytes
    except Exception:
        cap = 64 * 1024 * 1024
    return int(min(cap * 3 // 4, 100 * 1024 * 1024))


# ----------------------------------------------------------------------------
# Shared math helpers (used both in-kernel and in the reference)
# ----------------------------------------------------------------------------
def _layer_norm(v, g, b, d_true):
    """LayerNorm over the last dim; ignores zero-padded lanes beyond d_true."""
    dp = v.shape[-1]
    inv_d = 1.0 / d_true
    mu = jnp.sum(v, axis=-1, keepdims=True) * inv_d
    vc = v - mu
    if dp != d_true:
        lane = jax.lax.broadcasted_iota(jnp.int32, (1, dp), 1)
        vc = jnp.where(lane < d_true, vc, 0.0)
    var = jnp.sum(vc * vc, axis=-1, keepdims=True) * inv_d
    return vc * jax.lax.rsqrt(var + _LN_EPS) * g + b


def _gelu_exact(x):
    # Faithful to torch nn.GELU (erf form).
    return 0.5 * x * (1.0 + jax.lax.erf(x * (1.0 / math.sqrt(2.0))))


# ----------------------------------------------------------------------------
# Linear kernel (patch embedding / classifier head), M-tiled with a grid
# ----------------------------------------------------------------------------
def _linear_kernel(x_ref, w_ref, b_ref, o_ref):
    w = w_ref[...].astype(jnp.float32)
    o_ref[...] = (jnp.dot(x_ref[...], w, preferred_element_type=jnp.float32)
                  + b_ref[...]).astype(o_ref.dtype)


def pallas_linear(x, w, b, *, block_m=None):
    m, k = x.shape
    n = w.shape[1]
    if block_m is None:
        block_m = 256 if _vmem_budget() <= 48 * 1024 * 1024 else 512
    if m <= block_m:
        tm, mp = m, m
    else:
        tm = block_m                               # multiple of 8
        mp = _round_up(m, tm)
        if mp != m:
            x = jnp.pad(x, ((0, mp - m), (0, 0)))
    out = pl.pallas_call(
        _linear_kernel,
        out_shape=jax.ShapeDtypeStruct((mp, n), x.dtype),
        grid=(mp // tm,),
        in_specs=[pl.BlockSpec((tm, k), lambda i: (i, 0)),
                  pl.BlockSpec((k, n), lambda i: (0, 0)),   # weight: resident
                  pl.BlockSpec((1, n), lambda i: (0, 0))],
        out_specs=pl.BlockSpec((tm, n), lambda i: (i, 0)),
        compiler_params=pltpu.CompilerParams(
            dimension_semantics=("parallel",),
            vmem_limit_bytes=_vmem_budget()),
    )(x, w, b)
    return out[:m] if mp != m else out


# ----------------------------------------------------------------------------
# Encoder block kernel: one token-tile per grid step
# ----------------------------------------------------------------------------
def _encoder_block_kernel(ts, batch, d_true,
                          x_ref, seg_ref, ln1_g_ref, ln1_b_ref,
                          w_qkv_ref, b_qkv_ref, w_o_ref, b_o_ref,
                          ln2_g_ref, ln2_b_ref,
                          w1_ref, b1_ref, w2_ref, b2_ref,
                          o_ref):
    # x rows are token-major: row (s*B + b) == token s of batch element b.
    x = x_ref[...]                                   # (rows, Dp) f32
    rows, dp = x.shape

    # ---- LN1 + fused QKV projection (1/sqrt(hd) pre-folded into Q cols) ----
    h = _layer_norm(x, ln1_g_ref[...], ln1_b_ref[...], d_true)
    qkv = (jnp.dot(h, w_qkv_ref[...].astype(jnp.float32),
                   preferred_element_type=jnp.float32)
           + b_qkv_ref[...])                         # (rows, 3*Dp)

    # Lane-aligned Q/K/V slices (Dp is a multiple of 128), leading-dim split
    # only (no lane-splitting reshapes, no per-head slices).
    q = qkv[:, :dp].reshape(ts, batch, dp)
    k = qkv[:, dp:2 * dp].reshape(ts, batch, dp)
    v = qkv[:, 2 * dp:].reshape(ts, batch, dp)

    # ---- multi-head attention across the BATCH axis (batch_first=False
    #      semantics), batched over tokens.  The BxB contractions stay on the
    #      VPU (broadcast multiply + sublane reduce); the only MXU op here is
    #      a single block-diagonal segment-sum matmul contracting over Dp,
    #      which produces the per-head scores replicated lane-dense across
    #      each head's lanes (so softmax / weighted-sum stay lane-dense with
    #      no per-head gather/concat).  Assumes small B (the PyTorch batch).
    prod = q[:, :, None, :] * k[:, None, :, :]                # (ts, B, B, Dp)
    sc = jnp.dot(prod.reshape(ts * batch * batch, dp), seg_ref[...],
                 preferred_element_type=jnp.float32)
    sc = sc.reshape(ts, batch, batch, dp)                     # head-score bcast
    mx = jnp.max(sc, axis=2, keepdims=True)
    e = jnp.exp(sc - mx)
    p = e * pl.reciprocal(jnp.sum(e, axis=2, keepdims=True), approx=True)
    ctx = jnp.sum(p * v[:, None, :, :], axis=2)               # (ts, B, Dp)

    attn = (jnp.dot(ctx.reshape(rows, dp), w_o_ref[...].astype(jnp.float32),
                    preferred_element_type=jnp.float32)
            + b_o_ref[...])
    x1 = x + attn                                     # residual 1

    # ---- LN2 + MLP (Linear -> GELU -> Linear) ----
    h2 = _layer_norm(x1, ln2_g_ref[...], ln2_b_ref[...], d_true)
    m1 = _gelu_exact(jnp.dot(h2, w1_ref[...].astype(jnp.float32),
                             preferred_element_type=jnp.float32) + b1_ref[...])
    m2 = (jnp.dot(m1, w2_ref[...].astype(jnp.float32),
                  preferred_element_type=jnp.float32)
          + b2_ref[...])
    o_ref[...] = (x1 + m2).astype(o_ref.dtype)        # residual 2


def pallas_encoder_block(y, lp, seg_mask, *, ts, batch, d_true):
    sb, dp = y.shape                                  # sb = S_pad * B
    rows = ts * batch
    kernel = functools.partial(_encoder_block_kernel, ts, batch, d_true)
    weights = (lp['ln1_g'], lp['ln1_b'], lp['w_qkv'], lp['b_qkv'],
               lp['w_o'], lp['b_o'], lp['ln2_g'], lp['ln2_b'],
               lp['w1'], lp['b1'], lp['w2'], lp['b2'])
    in_specs = ([pl.BlockSpec((rows, dp), lambda i: (i, 0)),
                 pl.BlockSpec(seg_mask.shape, lambda i: (0, 0))] +
                [pl.BlockSpec(w.shape, lambda i: (0, 0)) for w in weights])
    return pl.pallas_call(
        kernel,
        out_shape=jax.ShapeDtypeStruct((sb, dp), y.dtype),
        grid=(sb // rows,),
        in_specs=in_specs,
        out_specs=pl.BlockSpec((rows, dp), lambda i: (i, 0)),
        input_output_aliases={0: 0},                  # update activation in place
        compiler_params=pltpu.CompilerParams(
            dimension_semantics=("parallel",),
            vmem_limit_bytes=_vmem_budget()),
    )(y, seg_mask, *weights)


# ----------------------------------------------------------------------------
# One-time parameter preparation (OUTSIDE jit): scale fold, lane padding, bf16
# ----------------------------------------------------------------------------
def prepare_params(params, *, num_heads):
    d = params['w_in'].shape[1]
    hd = d // num_heads
    dp = _round_up(d, 128)
    hp = _round_up(4 * d, 128)
    nc = params['w_head'].shape[1]
    ncp = _round_up(nc, 128)

    def pad2(a, rows, cols):
        return jnp.pad(a, ((0, rows - a.shape[0]), (0, cols - a.shape[1])))

    def w16(a, rows, cols):
        return pad2(a, rows, cols).astype(jnp.bfloat16)

    seg = jnp.arange(dp, dtype=jnp.int32) // hd       # head id per lane
    prep = {
        'seg_mask': (seg[:, None] == seg[None, :]).astype(jnp.float32),
        'w_in': w16(params['w_in'], params['w_in'].shape[0], dp),
        'b_in': pad2(params['b_in'], 1, dp),
        'pos': jnp.pad(params['pos'], ((0, 0), (0, 0), (0, dp - d))),
        'cls': jnp.pad(params['cls'], ((0, 0), (0, 0), (0, dp - d))),
        'w_head': w16(params['w_head'], dp, ncp),
        'b_head': pad2(params['b_head'], 1, ncp),
        'layers': [],
    }
    scale = 1.0 / math.sqrt(hd)
    for lp in params['layers']:
        wq = lp['w_qkv'][:, :d] * scale
        wk = lp['w_qkv'][:, d:2 * d]
        wv = lp['w_qkv'][:, 2 * d:]
        bq = lp['b_qkv'][:, :d] * scale
        bk = lp['b_qkv'][:, d:2 * d]
        bv = lp['b_qkv'][:, 2 * d:]
        prep['layers'].append({
            'ln1_g': pad2(lp['ln1_g'], 1, dp),
            'ln1_b': pad2(lp['ln1_b'], 1, dp),
            'w_qkv': jnp.concatenate(
                [pad2(wq, dp, dp), pad2(wk, dp, dp), pad2(wv, dp, dp)],
                axis=1).astype(jnp.bfloat16),
            'b_qkv': jnp.concatenate(
                [pad2(bq, 1, dp), pad2(bk, 1, dp), pad2(bv, 1, dp)], axis=1),
            'w_o': w16(lp['w_o'], dp, dp),
            'b_o': pad2(lp['b_o'], 1, dp),
            'ln2_g': pad2(lp['ln2_g'], 1, dp),
            'ln2_b': pad2(lp['ln2_b'], 1, dp),
            'w1': w16(lp['w1'], dp, hp),
            'b1': pad2(lp['b1'], 1, hp),
            'w2': w16(lp['w2'], hp, dp),
            'b2': pad2(lp['b2'], 1, dp),
        })
    return prep


# ----------------------------------------------------------------------------
# Model wrapper (glue in plain JAX, hot paths in Pallas)
# ----------------------------------------------------------------------------
def _choose_token_tile(S, B):
    """Tokens per tile (each token carries B contiguous rows)."""
    target_rows = 256 if _vmem_budget() <= 48 * 1024 * 1024 else 1024
    g = 8 // math.gcd(B, 8)                           # granule: rows % 8 == 0
    ts = max(1, target_rows // max(B, 1))
    # >= 2 grid steps whenever possible so the "parallel" axis can shard
    # across both TensorCores on v7x.
    ts = min(ts, max(g, -(-S // 2)))
    ts = max(g, (ts // g) * g)
    s_pad = -(-S // ts) * ts
    return ts, s_pad


def vit_forward(x, prep, *, d_model, num_classes):
    B, N, C, P, _ = x.shape
    dp = prep['w_in'].shape[1]                        # padded model dim

    # Patch linear projection (Pallas matmul kernel), lane-dense output.
    tok = pallas_linear(x.reshape(B * N, C * P * P),
                        prep['w_in'], prep['b_in'])   # (B*N, Dp)
    tok = tok.reshape(B, N, dp) + prep['pos']
    cls = jnp.broadcast_to(prep['cls'], (B, 1, dp))
    seq = jnp.concatenate([cls, tok], axis=1)         # (B, S, Dp)
    S = N + 1

    # Token-major layout for the encoder: (S, B, Dp) -> (S_pad*B, Dp).
    ts, s_pad = _choose_token_tile(S, B)
    y = jnp.transpose(seq, (1, 0, 2))                 # (S, B, Dp)
    if s_pad != S:
        y = jnp.pad(y, ((0, s_pad - S), (0, 0), (0, 0)))
    y = y.reshape(s_pad * B, dp)

    for lp in prep['layers']:
        y = pallas_encoder_block(y, lp, prep['seg_mask'],
                                 ts=ts, batch=B, d_true=d_model)

    cls_out = y[:B, :]                                # token 0, all batch rows
    logits = pallas_linear(cls_out, prep['w_head'], prep['b_head'])
    return logits[:, :num_classes]


# ----------------------------------------------------------------------------
# Pure-JAX reference (mirrors PyTorch forward semantics; HIGHEST precision)
# ----------------------------------------------------------------------------
def vit_reference(x, params, *, num_heads):
    B, N, C, P, _ = x.shape
    D = params['w_in'].shape[1]
    hd = D // num_heads
    scale = 1.0 / math.sqrt(hd)

    tok = x.reshape(B, N, C * P * P) @ params['w_in'] + params['b_in']
    tok = tok + params['pos']
    y = jnp.concatenate([jnp.broadcast_to(params['cls'], (B, 1, D)), tok], axis=1)

    for lp in params['layers']:
        skip = y
        h = _layer_norm(y, lp['ln1_g'], lp['ln1_b'], D)
        qkv = h @ lp['w_qkv'] + lp['b_qkv']
        q, k, v = qkv[..., :D], qkv[..., D:2 * D], qkv[..., 2 * D:]
        outs = []
        for i in range(num_heads):
            sl = slice(i * hd, (i + 1) * hd)
            qh, kh, vh = q[..., sl] * scale, k[..., sl], v[..., sl]
            sc = jnp.einsum('bsd,csd->sbc', qh, kh, precision=_HI)
            p = jax.nn.softmax(sc, axis=-1)
            outs.append(jnp.einsum('sbc,csd->bsd', p, vh, precision=_HI))
        attn = jnp.concatenate(outs, axis=-1) @ lp['w_o'] + lp['b_o']
        y = skip + attn
        skip = y
        h2 = _layer_norm(y, lp['ln2_g'], lp['ln2_b'], D)
        m = _gelu_exact(h2 @ lp['w1'] + lp['b1'])
        y = skip + (m @ lp['w2'] + lp['b2'])
    return y[:, 0, :] @ params['w_head'] + params['b_head']


# ----------------------------------------------------------------------------
# Deterministic parameter initialization (shapes per the PyTorch __init__)
# ----------------------------------------------------------------------------
def init_vit_params(key, *, in_channels, patch_size, img_size, num_classes,
                    d_model, n_layers):
    n_patches = (img_size // patch_size) ** 2
    patch_dim = in_channels * patch_size * patch_size
    idx = [0]

    def rnd(shape, scale):
        idx[0] += 1
        return (scale * jax.random.normal(jax.random.fold_in(key, idx[0]),
                                          shape)).astype(jnp.float32)

    params = {
        'w_in': rnd((patch_dim, d_model), 0.02),
        'b_in': rnd((1, d_model), 0.02),
        'pos': rnd((1, n_patches, d_model), 1.0),   # torch.randn
        'cls': rnd((1, 1, d_model), 1.0),           # torch.randn
        'w_head': rnd((d_model, num_classes), 0.02),
        'b_head': rnd((1, num_classes), 0.02),
        'layers': [],
    }
    for _ in range(n_layers):
        params['layers'].append({
            'ln1_g': jnp.ones((1, d_model), jnp.float32),
            'ln1_b': jnp.zeros((1, d_model), jnp.float32),
            'w_qkv': rnd((d_model, 3 * d_model), 0.02),
            'b_qkv': rnd((1, 3 * d_model), 0.02),
            'w_o': rnd((d_model, d_model), 0.02),
            'b_o': rnd((1, d_model), 0.02),
            'ln2_g': jnp.ones((1, d_model), jnp.float32),
            'ln2_b': jnp.zeros((1, d_model), jnp.float32),
            'w1': rnd((d_model, 4 * d_model), 0.02),
            'b1': rnd((1, 4 * d_model), 0.02),
            'w2': rnd((4 * d_model, d_model), 0.02),
            'b2': rnd((1, d_model), 0.02),
        })
    return params


# ----------------------------------------------------------------------------
if __name__ == "__main__":
    # Small config: ViT(in_channels=3, patch_size=4, img_size=16,
    #                  num_classes=8, d_model=32, num_heads=4, n_layers=2)
    in_channels, patch_size, img_size = 3, 4, 16
    num_classes, d_model, num_heads, n_layers = 8, 32, 4, 2
    batch = 2
    n_patches = (img_size // patch_size) ** 2

    key = jax.random.PRNGKey(0)
    pkey, xkey = jax.random.split(key)
    params = init_vit_params(pkey, in_channels=in_channels,
                             patch_size=patch_size, img_size=img_size,
                             num_classes=num_classes, d_model=d_model,
                             n_layers=n_layers)

    x = jax.random.normal(
        xkey, (batch, n_patches, in_channels, patch_size, patch_size),
        dtype=jnp.float32)

    prep = prepare_params(params, num_heads=num_heads)   # one-time, outside jit
    fwd = jax.jit(functools.partial(vit_forward, d_model=d_model,
                                    num_classes=num_classes))
    out = jax.block_until_ready(fwd(x, prep))

    ref = jax.block_until_ready(vit_reference(x, params, num_heads=num_heads))
    assert out.shape == (batch, num_classes), out.shape
    # Tolerance accounts for default-precision MXU matmuls + bf16 weight
    # storage in the kernel vs the HIGHEST-precision f32 reference.
    max_err = float(jnp.max(jnp.abs(out - ref)))
    assert jnp.allclose(out, ref, atol=2e-2, rtol=2e-2), (
        f"mismatch: max abs err {max_err}")

    print("KERNEL_OK")
</pallas_src>

<mosaic_0001>
module attributes {stable_mosaic.version = 11 : i64} {
  func.func @_encoder_block_kernel(%arg0: i32, %arg1: memref<16x128xf32, #tpu.memory_space<vmem>>, %arg2: memref<128x128xf32, #tpu.memory_space<vmem>>, %arg3: memref<1x128xf32, #tpu.memory_space<vmem>>, %arg4: memref<1x128xf32, #tpu.memory_space<vmem>>, %arg5: memref<128x384xbf16, #tpu.memory_space<vmem>>, %arg6: memref<1x384xf32, #tpu.memory_space<vmem>>, %arg7: memref<128x128xbf16, #tpu.memory_space<vmem>>, %arg8: memref<1x128xf32, #tpu.memory_space<vmem>>, %arg9: memref<1x128xf32, #tpu.memory_space<vmem>>, %arg10: memref<1x128xf32, #tpu.memory_space<vmem>>, %arg11: memref<128x128xbf16, #tpu.memory_space<vmem>>, %arg12: memref<1x128xf32, #tpu.memory_space<vmem>>, %arg13: memref<128x128xbf16, #tpu.memory_space<vmem>>, %arg14: memref<1x128xf32, #tpu.memory_space<vmem>>, %arg15: memref<16x128xf32, #tpu.memory_space<vmem>>) attributes {dimension_semantics = [#tpu.dimension_semantics<parallel>], iteration_bounds = array<i64: 3>, scalar_prefetch = 0 : i64, scratch_operands = 0 : i64, tpu.core_type = #tpu.core_type<tc>, window_params = [{transform_indices = @transform_0, window_bounds = array<i64: 16, 128>}, {pipeline_mode = #tpu.pipeline_mode<synchronous>, transform_indices = @transform_1, window_bounds = array<i64: 128, 128>}, {pipeline_mode = #tpu.pipeline_mode<synchronous>, transform_indices = @transform_2, window_bounds = array<i64: 1, 128>}, {pipeline_mode = #tpu.pipeline_mode<synchronous>, transform_indices = @transform_3, window_bounds = array<i64: 1, 128>}, {pipeline_mode = #tpu.pipeline_mode<synchronous>, transform_indices = @transform_4, window_bounds = array<i64: 128, 384>}, {pipeline_mode = #tpu.pipeline_mode<synchronous>, transform_indices = @transform_5, window_bounds = array<i64: 1, 384>}, {pipeline_mode = #tpu.pipeline_mode<synchronous>, transform_indices = @transform_6, window_bounds = array<i64: 128, 128>}, {pipeline_mode = #tpu.pipeline_mode<synchronous>, transform_indices = @transform_7, window_bounds = array<i64: 1, 128>}, {pipeline_mode = #tpu.pipeline_mode<synchronous>, transform_indices = @transform_8, window_bounds = array<i64: 1, 128>}, {pipeline_mode = #tpu.pipeline_mode<synchronous>, transform_indices = @transform_9, window_bounds = array<i64: 1, 128>}, {pipeline_mode = #tpu.pipeline_mode<synchronous>, transform_indices = @transform_10, window_bounds = array<i64: 128, 128>}, {pipeline_mode = #tpu.pipeline_mode<synchronous>, transform_indices = @transform_11, window_bounds = array<i64: 1, 128>}, {pipeline_mode = #tpu.pipeline_mode<synchronous>, transform_indices = @transform_12, window_bounds = array<i64: 128, 128>}, {pipeline_mode = #tpu.pipeline_mode<synchronous>, transform_indices = @transform_13, window_bounds = array<i64: 1, 128>}, {transform_indices = @transform_14, window_bounds = array<i64: 16, 128>}]} {
    %c0 = arith.constant 0 : index
    %c0_0 = arith.constant 0 : index
    %0 = vector.load %arg1[%c0, %c0_0] : memref<16x128xf32, #tpu.memory_space<vmem>>, vector<16x128xf32>
    %c0_1 = arith.constant 0 : index
    %c0_2 = arith.constant 0 : index
    %1 = vector.load %arg3[%c0_1, %c0_2] : memref<1x128xf32, #tpu.memory_space<vmem>>, vector<1x128xf32>
    %c0_3 = arith.constant 0 : index
    %c0_4 = arith.constant 0 : index
    %2 = vector.load %arg4[%c0_3, %c0_4] : memref<1x128xf32, #tpu.memory_space<vmem>>, vector<1x128xf32>
    %cst = arith.constant dense<0.000000e+00> : vector<16xf32>
    %3 = vector.multi_reduction <add>, %0, %cst [1] : vector<16x128xf32> to vector<16xf32>
    %4 = vector.shape_cast %3 : vector<16xf32> to vector<16x1xf32>
    %cst_5 = arith.constant 3.125000e-02 : f32
    %5 = vector.broadcast %cst_5 : f32 to vector<16x1xf32>
    %6 = arith.mulf %4, %5 : vector<16x1xf32>
    %7 = vector.broadcast %6 : vector<16x1xf32> to vector<16x128xf32>
    %8 = arith.subf %0, %7 : vector<16x128xf32>
    %9 = tpu.iota {dimensions = array<i32: 1>} : vector<1x128xi32>
    %c32_i32 = arith.constant 32 : i32
    %10 = vector.broadcast %c32_i32 : i32 to vector<1x128xi32>
    %11 = arith.cmpi slt, %9, %10 : vector<1x128xi32>
    %cst_6 = arith.constant 0.000000e+00 : f32
    %12 = vector.shape_cast %11 : vector<1x128xi1> to vector<1x128xi1>
    %13 = vector.broadcast %12 : vector<1x128xi1> to vector<16x128xi1>
    %14 = vector.broadcast %cst_6 : f32 to vector<16x128xf32>
    %15 = arith.select %13, %8, %14 : vector<16x128xi1>, vector<16x128xf32>
    %16 = arith.mulf %15, %15 : vector<16x128xf32>
    %cst_7 = arith.constant dense<0.000000e+00> : vector<16xf32>
    %17 = vector.multi_reduction <add>, %16, %cst_7 [1] : vector<16x128xf32> to vector<16xf32>
    %18 = vector.shape_cast %17 : vector<16xf32> to vector<16x1xf32>
    %cst_8 = arith.constant 3.125000e-02 : f32
    %19 = vector.broadcast %cst_8 : f32 to vector<16x1xf32>
    %20 = arith.mulf %18, %19 : vector<16x1xf32>
    %cst_9 = arith.constant 9.99999974E-6 : f32
    %21 = vector.broadcast %cst_9 : f32 to vector<16x1xf32>
    %22 = arith.addf %20, %21 : vector<16x1xf32>
    %23 = math.rsqrt %22 : vector<16x1xf32>
    %24 = vector.broadcast %23 : vector<16x1xf32> to vector<16x128xf32>
    %25 = arith.mulf %15, %24 : vector<16x128xf32>
    %26 = vector.broadcast %1 : vector<1x128xf32> to vector<16x128xf32>
    %27 = arith.mulf %25, %26 : vector<16x128xf32>
    %28 = vector.broadcast %2 : vector<1x128xf32> to vector<16x128xf32>
    %29 = arith.addf %27, %28 : vector<16x128xf32>
    %c0_10 = arith.constant 0 : index
    %c0_11 = arith.constant 0 : index
    %30 = vector.load %arg5[%c0_10, %c0_11] : memref<128x384xbf16, #tpu.memory_space<vmem>>, vector<128x384xbf16>
    %31 = arith.extf %30 : vector<128x384xbf16> to vector<128x384xf32>
    %cst_12 = arith.constant dense<0.000000e+00> : vector<16x384xf32>
    %32 = tpu.matmul %29, %31, %cst_12 {dimension_numbers = #tpu.dot_dimension_numbers<[1], [0], [0], [1], [0, 0, 1, 1], [], []>} : vector<16x128xf32>, vector<128x384xf32>, vector<16x384xf32> -> vector<16x384xf32>
    %c0_13 = arith.constant 0 : index
    %c0_14 = arith.constant 0 : index
    %33 = vector.load %arg6[%c0_13, %c0_14] : memref<1x384xf32, #tpu.memory_space<vmem>>, vector<1x384xf32>
    %34 = vector.broadcast %33 : vector<1x384xf32> to vector<16x384xf32>
    %35 = arith.addf %32, %34 : vector<16x384xf32>
    %36 = vector.extract_strided_slice %35 {offsets = [0, 0], sizes = [16, 128], strides = [1, 1]} : vector<16x384xf32> to vector<16x128xf32>
    %37 = vector.shape_cast %36 : vector<16x128xf32> to vector<8x2x128xf32>
    %38 = vector.extract_strided_slice %35 {offsets = [0, 128], sizes = [16, 128], strides = [1, 1]} : vector<16x384xf32> to vector<16x128xf32>
    %39 = vector.shape_cast %38 : vector<16x128xf32> to vector<8x2x128xf32>
    %40 = vector.extract_strided_slice %35 {offsets = [0, 256], sizes = [16, 128], strides = [1, 1]} : vector<16x384xf32> to vector<16x128xf32>
    %41 = vector.shape_cast %40 : vector<16x128xf32> to vector<8x2x128xf32>
    %42 = vector.shape_cast %37 : vector<8x2x128xf32> to vector<8x2x1x128xf32>
    %43 = vector.shape_cast %39 : vector<8x2x128xf32> to vector<8x1x2x128xf32>
    %44 = vector.broadcast %42 : vector<8x2x1x128xf32> to vector<8x2x2x128xf32>
    %45 = vector.broadcast %43 : vector<8x1x2x128xf32> to vector<8x2x2x128xf32>
    %46 = arith.mulf %44, %45 : vector<8x2x2x128xf32>
    %47 = vector.shape_cast %46 : vector<8x2x2x128xf32> to vector<32x128xf32>
    %c0_15 = arith.constant 0 : index
    %c0_16 = arith.constant 0 : index
    %48 = vector.load %arg2[%c0_15, %c0_16] : memref<128x128xf32, #tpu.memory_space<vmem>>, vector<128x128xf32>
    %cst_17 = arith.constant dense<0.000000e+00> : vector<32x128xf32>
    %49 = tpu.matmul %47, %48, %cst_17 {dimension_numbers = #tpu.dot_dimension_numbers<[1], [0], [0], [1], [0, 0, 1, 1], [], []>} : vector<32x128xf32>, vector<128x128xf32>, vector<32x128xf32> -> vector<32x128xf32>
    %50 = vector.shape_cast %49 : vector<32x128xf32> to vector<8x2x2x128xf32>
    %cst_18 = arith.constant dense<0xFF800000> : vector<8x2x128xf32>
    %51 = vector.multi_reduction <maximumf>, %50, %cst_18 [2] : vector<8x2x2x128xf32> to vector<8x2x128xf32>
    %52 = vector.shape_cast %51 : vector<8x2x128xf32> to vector<8x2x1x128xf32>
    %53 = vector.broadcast %52 : vector<8x2x1x128xf32> to vector<8x2x2x128xf32>
    %54 = arith.subf %50, %53 : vector<8x2x2x128xf32>
    %55 = math.exp %54 : vector<8x2x2x128xf32>
    %cst_19 = arith.constant dense<0.000000e+00> : vector<8x2x128xf32>
    %56 = vector.multi_reduction <add>, %55, %cst_19 [2] : vector<8x2x2x128xf32> to vector<8x2x128xf32>
    %57 = vector.shape_cast %56 : vector<8x2x128xf32> to vector<8x2x1x128xf32>
    %58 = tpu.reciprocal %57 {approx = true} : vector<8x2x1x128xf32> -> vector<8x2x1x128xf32>
    %59 = vector.broadcast %58 : vector<8x2x1x128xf32> to vector<8x2x2x128xf32>
    %60 = arith.mulf %55, %59 : vector<8x2x2x128xf32>
    %61 = vector.shape_cast %41 : vector<8x2x128xf32> to vector<8x1x2x128xf32>
    %62 = vector.broadcast %61 : vector<8x1x2x128xf32> to vector<8x2x2x128xf32>
    %63 = arith.mulf %60, %62 : vector<8x2x2x128xf32>
    %cst_20 = arith.constant dense<0.000000e+00> : vector<8x2x128xf32>
    %64 = vector.multi_reduction <add>, %63, %cst_20 [2] : vector<8x2x2x128xf32> to vector<8x2x128xf32>
    %65 = vector.shape_cast %64 : vector<8x2x128xf32> to vector<16x128xf32>
    %c0_21 = arith.constant 0 : index
    %c0_22 = arith.constant 0 : index
    %66 = vector.load %arg7[%c0_21, %c0_22] : memref<128x128xbf16, #tpu.memory_space<vmem>>, vector<128x128xbf16>
    %67 = arith.extf %66 : vector<128x128xbf16> to vector<128x128xf32>
    %cst_23 = arith.constant dense<0.000000e+00> : vector<16x128xf32>
    %68 = tpu.matmul %65, %67, %cst_23 {dimension_numbers = #tpu.dot_dimension_numbers<[1], [0], [0], [1], [0, 0, 1, 1], [], []>} : vector<16x128xf32>, vector<128x128xf32>, vector<16x128xf32> -> vector<16x128xf32>
    %c0_24 = arith.constant 0 : index
    %c0_25 = arith.constant 0 : index
    %69 = vector.load %arg8[%c0_24, %c0_25] : memref<1x128xf32, #tpu.memory_space<vmem>>, vector<1x128xf32>
    %70 = vector.broadcast %69 : vector<1x128xf32> to vector<16x128xf32>
    %71 = arith.addf %68, %70 : vector<16x128xf32>
    %72 = arith.addf %0, %71 : vector<16x128xf32>
    %c0_26 = arith.constant 0 : index
    %c0_27 = arith.constant 0 : index
    %73 = vector.load %arg9[%c0_26, %c0_27] : memref<1x128xf32, #tpu.memory_space<vmem>>, vector<1x128xf32>
    %c0_28 = arith.constant 0 : index
    %c0_29 = arith.constant 0 : index
    %74 = vector.load %arg10[%c0_28, %c0_29] : memref<1x128xf32, #tpu.memory_space<vmem>>, vector<1x128xf32>
    %cst_30 = arith.constant dense<0.000000e+00> : vector<16xf32>
    %75 = vector.multi_reduction <add>, %72, %cst_30 [1] : vector<16x128xf32> to vector<16xf32>
    %76 = vector.shape_cast %75 : vector<16xf32> to vector<16x1xf32>
    %cst_31 = arith.constant 3.125000e-02 : f32
    %77 = vector.broadcast %cst_31 : f32 to vector<16x1xf32>
    %78 = arith.mulf %76, %77 : vector<16x1xf32>
    %79 = vector.broadcast %78 : vector<16x1xf32> to vector<16x128xf32>
    %80 = arith.subf %72, %79 : vector<16x128xf32>
    %81 = tpu.iota {dimensions = array<i32: 1>} : vector<1x128xi32>
    %c32_i32_32 = arith.constant 32 : i32
    %82 = vector.broadcast %c32_i32_32 : i32 to vector<1x128xi32>
    %83 = arith.cmpi slt, %81, %82 : vector<1x128xi32>
    %cst_33 = arith.constant 0.000000e+00 : f32
    %84 = vector.shape_cast %83 : vector<1x128xi1> to vector<1x128xi1>
    %85 = vector.broadcast %84 : vector<1x128xi1> to vector<16x128xi1>
    %86 = vector.broadcast %cst_33 : f32 to vector<16x128xf32>
    %87 = arith.select %85, %80, %86 : vector<16x128xi1>, vector<16x128xf32>
    %88 = arith.mulf %87, %87 : vector<16x128xf32>
    %cst_34 = arith.constant dense<0.000000e+00> : vector<16xf32>
    %89 = vector.multi_reduction <add>, %88, %cst_34 [1] : vector<16x128xf32> to vector<16xf32>
    %90 = vector.shape_cast %89 : vector<16xf32> to vector<16x1xf32>
    %cst_35 = arith.constant 3.125000e-02 : f32
    %91 = vector.broadcast %cst_35 : f32 to vector<16x1xf32>
    %92 = arith.mulf %90, %91 : vector<16x1xf32>
    %cst_36 = arith.constant 9.99999974E-6 : f32
    %93 = vector.broadcast %cst_36 : f32 to vector<16x1xf32>
    %94 = arith.addf %92, %93 : vector<16x1xf32>
    %95 = math.rsqrt %94 : vector<16x1xf32>
    %96 = vector.broadcast %95 : vector<16x1xf32> to vector<16x128xf32>
    %97 = arith.mulf %87, %96 : vector<16x128xf32>
    %98 = vector.broadcast %73 : vector<1x128xf32> to vector<16x128xf32>
    %99 = arith.mulf %97, %98 : vector<16x128xf32>
    %100 = vector.broadcast %74 : vector<1x128xf32> to vector<16x128xf32>
    %101 = arith.addf %99, %100 : vector<16x128xf32>
    %c0_37 = arith.constant 0 : index
    %c0_38 = arith.constant 0 : index
    %102 = vector.load %arg11[%c0_37, %c0_38] : memref<128x128xbf16, #tpu.memory_space<vmem>>, vector<128x128xbf16>
    %103 = arith.extf %102 : vector<128x128xbf16> to vector<128x128xf32>
    %cst_39 = arith.constant dense<0.000000e+00> : vector<16x128xf32>
    %104 = tpu.matmul %101, %103, %cst_39 {dimension_numbers = #tpu.dot_dimension_numbers<[1], [0], [0], [1], [0, 0, 1, 1], [], []>} : vector<16x128xf32>, vector<128x128xf32>, vector<16x128xf32> -> vector<16x128xf32>
    %c0_40 = arith.constant 0 : index
    %c0_41 = arith.constant 0 : index
    %105 = vector.load %arg12[%c0_40, %c0_41] : memref<1x128xf32, #tpu.memory_space<vmem>>, vector<1x128xf32>
    %106 = vector.broadcast %105 : vector<1x128xf32> to vector<16x128xf32>
    %107 = arith.addf %104, %106 : vector<16x128xf32>
    %cst_42 = arith.constant 5.000000e-01 : f32
    %108 = vector.broadcast %cst_42 : f32 to vector<16x128xf32>
    %109 = arith.mulf %108, %107 : vector<16x128xf32>
    %cst_43 = arith.constant 0.707106769 : f32
    %110 = vector.broadcast %cst_43 : f32 to vector<16x128xf32>
    %111 = arith.mulf %107, %110 : vector<16x128xf32>
    %112 = math.erf %111 : vector<16x128xf32>
    %cst_44 = arith.constant 1.000000e+00 : f32
    %113 = vector.broadcast %cst_44 : f32 to vector<16x128xf32>
    %114 = arith.addf %113, %112 : vector<16x128xf32>
    %115 = arith.mulf %109, %114 : vector<16x128xf32>
    %c0_45 = arith.constant 0 : index
    %c0_46 = arith.constant 0 : index
    %116 = vector.load %arg13[%c0_45, %c0_46] : memref<128x128xbf16, #tpu.memory_space<vmem>>, vector<128x128xbf16>
    %117 = arith.extf %116 : vector<128x128xbf16> to vector<128x128xf32>
    %cst_47 = arith.constant dense<0.000000e+00> : vector<16x128xf32>
    %118 = tpu.matmul %115, %117, %cst_47 {dimension_numbers = #tpu.dot_dimension_numbers<[1], [0], [0], [1], [0, 0, 1, 1], [], []>} : vector<16x128xf32>, vector<128x128xf32>, vector<16x128xf32> -> vector<16x128xf32>
    %c0_48 = arith.constant 0 : index
    %c0_49 = arith.constant 0 : index
    %119 = vector.load %arg14[%c0_48, %c0_49] : memref<1x128xf32, #tpu.memory_space<vmem>>, vector<1x128xf32>
    %120 = vector.broadcast %119 : vector<1x128xf32> to vector<16x128xf32>
    %121 = arith.addf %118, %120 : vector<16x128xf32>
    %122 = arith.addf %72, %121 : vector<16x128xf32>
    %c0_50 = arith.constant 0 : index
    %c0_51 = arith.constant 0 : index
    %123 = vector.load %arg15[%c0_50, %c0_51] : memref<16x128xf32, #tpu.memory_space<vmem>>, vector<16x128xf32>
    tpu.vector_store %arg15[%c0_50, %c0_51], %122 {strides = array<i32>} : memref<16x128xf32, #tpu.memory_space<vmem>>, vector<16x128xf32>,
    return
  }
  func.func @transform_0(%arg0: i32) -> (i32, i32) {
    %c0_i32 = arith.constant 0 : i32
    %c0_i32_0 = arith.constant 0 : i32
    return %arg0, %c0_i32 : i32, i32
  }
  func.func @transform_1(%arg0: i32) -> (i32, i32) {
    %c0_i32 = arith.constant 0 : i32
    %c0_i32_0 = arith.constant 0 : i32
    %c0_i32_1 = arith.constant 0 : i32
    return %c0_i32, %c0_i32_0 : i32, i32
  }
  func.func @transform_2(%arg0: i32) -> (i32, i32) {
    %c0_i32 = arith.constant 0 : i32
    %c0_i32_0 = arith.constant 0 : i32
    %c0_i32_1 = arith.constant 0 : i32
    return %c0_i32, %c0_i32_0 : i32, i32
  }
  func.func @transform_3(%arg0: i32) -> (i32, i32) {
    %c0_i32 = arith.constant 0 : i32
    %c0_i32_0 = arith.constant 0 : i32
    %c0_i32_1 = arith.constant 0 : i32
    return %c0_i32, %c0_i32_0 : i32, i32
  }
  func.func @transform_4(%arg0: i32) -> (i32, i32) {
    %c0_i32 = arith.constant 0 : i32
    %c0_i32_0 = arith.constant 0 : i32
    %c0_i32_1 = arith.constant 0 : i32
    return %c0_i32, %c0_i32_0 : i32, i32
  }
  func.func @transform_5(%arg0: i32) -> (i32, i32) {
    %c0_i32 = arith.constant 0 : i32
    %c0_i32_0 = arith.constant 0 : i32
    %c0_i32_1 = arith.constant 0 : i32
    return %c0_i32, %c0_i32_0 : i32, i32
  }
  func.func @transform_6(%arg0: i32) -> (i32, i32) {
    %c0_i32 = arith.constant 0 : i32
    %c0_i32_0 = arith.constant 0 : i32
    %c0_i32_1 = arith.constant 0 : i32
    return %c0_i32, %c0_i32_0 : i32, i32
  }
  func.func @transform_7(%arg0: i32) -> (i32, i32) {
    %c0_i32 = arith.constant 0 : i32
    %c0_i32_0 = arith.constant 0 : i32
    %c0_i32_1 = arith.constant 0 : i32
    return %c0_i32, %c0_i32_0 : i32, i32
  }
  func.func @transform_8(%arg0: i32) -> (i32, i32) {
    %c0_i32 = arith.constant 0 : i32
    %c0_i32_0 = arith.constant 0 : i32
    %c0_i32_1 = arith.constant 0 : i32
    return %c0_i32, %c0_i32_0 : i32, i32
  }
  func.func @transform_9(%arg0: i32) -> (i32, i32) {
    %c0_i32 = arith.constant 0 : i32
    %c0_i32_0 = arith.constant 0 : i32
    %c0_i32_1 = arith.constant 0 : i32
    return %c0_i32, %c0_i32_0 : i32, i32
  }
  func.func @transform_10(%arg0: i32) -> (i32, i32) {
    %c0_i32 = arith.constant 0 : i32
    %c0_i32_0 = arith.constant 0 : i32
    %c0_i32_1 = arith.constant 0 : i32
    return %c0_i32, %c0_i32_0 : i32, i32
  }
  func.func @transform_11(%arg0: i32) -> (i32, i32) {
    %c0_i32 = arith.constant 0 : i32
    %c0_i32_0 = arith.constant 0 : i32
    %c0_i32_1 = arith.constant 0 : i32
    return %c0_i32, %c0_i32_0 : i32, i32
  }
  func.func @transform_12(%arg0: i32) -> (i32, i32) {
    %c0_i32 = arith.constant 0 : i32
    %c0_i32_0 = arith.constant 0 : i32
    %c0_i32_1 = arith.constant 0 : i32
    return %c0_i32, %c0_i32_0 : i32, i32
  }
  func.func @transform_13(%arg0: i32) -> (i32, i32) {
    %c0_i32 = arith.constant 0 : i32
    %c0_i32_0 = arith.constant 0 : i32
    %c0_i32_1 = arith.constant 0 : i32
    return %c0_i32, %c0_i32_0 : i32, i32
  }
  func.func @transform_14(%arg0: i32) -> (i32, i32) {
    %c0_i32 = arith.constant 0 : i32
    %c0_i32_0 = arith.constant 0 : i32
    return %arg0, %c0_i32 : i32, i32
  }
}

module attributes {stable_mosaic.version = 11 : i64} {
  func.func @_linear_kernel(%arg0: i32, %arg1: memref<32x48xf32, #tpu.memory_space<vmem>>, %arg2: memref<48x128xbf16, #tpu.memory_space<vmem>>, %arg3: memref<1x128xf32, #tpu.memory_space<vmem>>, %arg4: memref<32x128xf32, #tpu.memory_space<vmem>>) attributes {dimension_semantics = [#tpu.dimension_semantics<parallel>], iteration_bounds = array<i64: 1>, scalar_prefetch = 0 : i64, scratch_operands = 0 : i64, tpu.core_type = #tpu.core_type<tc>, window_params = [{transform_indices = @transform_0, window_bounds = array<i64: 32, 48>}, {pipeline_mode = #tpu.pipeline_mode<synchronous>, transform_indices = @transform_1, window_bounds = array<i64: 48, 128>}, {pipeline_mode = #tpu.pipeline_mode<synchronous>, transform_indices = @transform_2, window_bounds = array<i64: 1, 128>}, {transform_indices = @transform_3, window_bounds = array<i64: 32, 128>}]} {
    %c0 = arith.constant 0 : index
    %c0_0 = arith.constant 0 : index
    %0 = vector.load %arg2[%c0, %c0_0] : memref<48x128xbf16, #tpu.memory_space<vmem>>, vector<48x128xbf16>
    %1 = arith.extf %0 : vector<48x128xbf16> to vector<48x128xf32>
    %c0_1 = arith.constant 0 : index
    %c0_2 = arith.constant 0 : index
    %2 = vector.load %arg1[%c0_1, %c0_2] : memref<32x48xf32, #tpu.memory_space<vmem>>, vector<32x48xf32>
    %cst = arith.constant dense<0.000000e+00> : vector<32x128xf32>
    %3 = tpu.matmul %2, %1, %cst {dimension_numbers = #tpu.dot_dimension_numbers<[1], [0], [0], [1], [0, 0, 1, 1], [], []>} : vector<32x48xf32>, vector<48x128xf32>, vector<32x128xf32> -> vector<32x128xf32>
    %c0_3 = arith.constant 0 : index
    %c0_4 = arith.constant 0 : index
    %4 = vector.load %arg3[%c0_3, %c0_4] : memref<1x128xf32, #tpu.memory_space<vmem>>, vector<1x128xf32>
    %5 = vector.broadcast %4 : vector<1x128xf32> to vector<32x128xf32>
    %6 = arith.addf %3, %5 : vector<32x128xf32>
    %c0_5 = arith.constant 0 : index
    %c0_6 = arith.constant 0 : index
    %7 = vector.load %arg4[%c0_5, %c0_6] : memref<32x128xf32, #tpu.memory_space<vmem>>, vector<32x128xf32>
    tpu.vector_store %arg4[%c0_5, %c0_6], %6 {strides = array<i32>} : memref<32x128xf32, #tpu.memory_space<vmem>>, vector<32x128xf32>,
    return
  }
  func.func @transform_0(%arg0: i32) -> (i32, i32) {
    %c0_i32 = arith.constant 0 : i32
    %c0_i32_0 = arith.constant 0 : i32
    return %arg0, %c0_i32 : i32, i32
  }
  func.func @transform_1(%arg0: i32) -> (i32, i32) {
    %c0_i32 = arith.constant 0 : i32
    %c0_i32_0 = arith.constant 0 : i32
    %c0_i32_1 = arith.constant 0 : i32
    return %c0_i32, %c0_i32_0 : i32, i32
  }
  func.func @transform_2(%arg0: i32) -> (i32, i32) {
    %c0_i32 = arith.constant 0 : i32
    %c0_i32_0 = arith.constant 0 : i32
    %c0_i32_1 = arith.constant 0 : i32
    return %c0_i32, %c0_i32_0 : i32, i32
  }
  func.func @transform_3(%arg0: i32) -> (i32, i32) {
    %c0_i32 = arith.constant 0 : i32
    %c0_i32_0 = arith.constant 0 : i32
    return %arg0, %c0_i32 : i32, i32
  }
}

module attributes {stable_mosaic.version = 11 : i64} {
  func.func @_encoder_block_kernel(%arg0: i32, %arg1: memref<16x128xf32, #tpu.memory_space<vmem>>, %arg2: memref<128x128xf32, #tpu.memory_space<vmem>>, %arg3: memref<1x128xf32, #tpu.memory_space<vmem>>, %arg4: memref<1x128xf32, #tpu.memory_space<vmem>>, %arg5: memref<128x384xbf16, #tpu.memory_space<vmem>>, %arg6: memref<1x384xf32, #tpu.memory_space<vmem>>, %arg7: memref<128x128xbf16, #tpu.memory_space<vmem>>, %arg8: memref<1x128xf32, #tpu.memory_space<vmem>>, %arg9: memref<1x128xf32, #tpu.memory_space<vmem>>, %arg10: memref<1x128xf32, #tpu.memory_space<vmem>>, %arg11: memref<128x128xbf16, #tpu.memory_space<vmem>>, %arg12: memref<1x128xf32, #tpu.memory_space<vmem>>, %arg13: memref<128x128xbf16, #tpu.memory_space<vmem>>, %arg14: memref<1x128xf32, #tpu.memory_space<vmem>>, %arg15: memref<16x128xf32, #tpu.memory_space<vmem>>) attributes {dimension_semantics = [#tpu.dimension_semantics<parallel>], iteration_bounds = array<i64: 3>, scalar_prefetch = 0 : i64, scratch_operands = 0 : i64, tpu.core_type = #tpu.core_type<tc>, window_params = [{transform_indices = @transform_0, window_bounds = array<i64: 16, 128>}, {pipeline_mode = #tpu.pipeline_mode<synchronous>, transform_indices = @transform_1, window_bounds = array<i64: 128, 128>}, {pipeline_mode = #tpu.pipeline_mode<synchronous>, transform_indices = @transform_2, window_bounds = array<i64: 1, 128>}, {pipeline_mode = #tpu.pipeline_mode<synchronous>, transform_indices = @transform_3, window_bounds = array<i64: 1, 128>}, {pipeline_mode = #tpu.pipeline_mode<synchronous>, transform_indices = @transform_4, window_bounds = array<i64: 128, 384>}, {pipeline_mode = #tpu.pipeline_mode<synchronous>, transform_indices = @transform_5, window_bounds = array<i64: 1, 384>}, {pipeline_mode = #tpu.pipeline_mode<synchronous>, transform_indices = @transform_6, window_bounds = array<i64: 128, 128>}, {pipeline_mode = #tpu.pipeline_mode<synchronous>, transform_indices = @transform_7, window_bounds = array<i64: 1, 128>}, {pipeline_mode = #tpu.pipeline_mode<synchronous>, transform_indices = @transform_8, window_bounds = array<i64: 1, 128>}, {pipeline_mode = #tpu.pipeline_mode<synchronous>, transform_indices = @transform_9, window_bounds = array<i64: 1, 128>}, {pipeline_mode = #tpu.pipeline_mode<synchronous>, transform_indices = @transform_10, window_bounds = array<i64: 128, 128>}, {pipeline_mode = #tpu.pipeline_mode<synchronous>, transform_indices = @transform_11, window_bounds = array<i64: 1, 128>}, {pipeline_mode = #tpu.pipeline_mode<synchronous>, transform_indices = @transform_12, window_bounds = array<i64: 128, 128>}, {pipeline_mode = #tpu.pipeline_mode<synchronous>, transform_indices = @transform_13, window_bounds = array<i64: 1, 128>}, {transform_indices = @transform_14, window_bounds = array<i64: 16, 128>}]} {
    %c0 = arith.constant 0 : index
    %c0_0 = arith.constant 0 : index
    %0 = vector.load %arg1[%c0, %c0_0] : memref<16x128xf32, #tpu.memory_space<vmem>>, vector<16x128xf32>
    %c0_1 = arith.constant 0 : index
    %c0_2 = arith.constant 0 : index
    %1 = vector.load %arg3[%c0_1, %c0_2] : memref<1x128xf32, #tpu.memory_space<vmem>>, vector<1x128xf32>
    %c0_3 = arith.constant 0 : index
    %c0_4 = arith.constant 0 : index
    %2 = vector.load %arg4[%c0_3, %c0_4] : memref<1x128xf32, #tpu.memory_space<vmem>>, vector<1x128xf32>
    %cst = arith.constant dense<0.000000e+00> : vector<16xf32>
    %3 = vector.multi_reduction <add>, %0, %cst [1] : vector<16x128xf32> to vector<16xf32>
    %4 = vector.shape_cast %3 : vector<16xf32> to vector<16x1xf32>
    %cst_5 = arith.constant 3.125000e-02 : f32
    %5 = vector.broadcast %cst_5 : f32 to vector<16x1xf32>
    %6 = arith.mulf %4, %5 : vector<16x1xf32>
    %7 = vector.broadcast %6 : vector<16x1xf32> to vector<16x128xf32>
    %8 = arith.subf %0, %7 : vector<16x128xf32>
    %9 = tpu.iota {dimensions = array<i32: 1>} : vector<1x128xi32>
    %c32_i32 = arith.constant 32 : i32
    %10 = vector.broadcast %c32_i32 : i32 to vector<1x128xi32>
    %11 = arith.cmpi slt, %9, %10 : vector<1x128xi32>
    %cst_6 = arith.constant 0.000000e+00 : f32
    %12 = vector.shape_cast %11 : vector<1x128xi1> to vector<1x128xi1>
    %13 = vector.broadcast %12 : vector<1x128xi1> to vector<16x128xi1>
    %14 = vector.broadcast %cst_6 : f32 to vector<16x128xf32>
    %15 = arith.select %13, %8, %14 : vector<16x128xi1>, vector<16x128xf32>
    %16 = arith.mulf %15, %15 : vector<16x128xf32>
    %cst_7 = arith.constant dense<0.000000e+00> : vector<16xf32>
    %17 = vector.multi_reduction <add>, %16, %cst_7 [1] : vector<16x128xf32> to vector<16xf32>
    %18 = vector.shape_cast %17 : vector<16xf32> to vector<16x1xf32>
    %cst_8 = arith.constant 3.125000e-02 : f32
    %19 = vector.broadcast %cst_8 : f32 to vector<16x1xf32>
    %20 = arith.mulf %18, %19 : vector<16x1xf32>
    %cst_9 = arith.constant 9.99999974E-6 : f32
    %21 = vector.broadcast %cst_9 : f32 to vector<16x1xf32>
    %22 = arith.addf %20, %21 : vector<16x1xf32>
    %23 = math.rsqrt %22 : vector<16x1xf32>
    %24 = vector.broadcast %23 : vector<16x1xf32> to vector<16x128xf32>
    %25 = arith.mulf %15, %24 : vector<16x128xf32>
    %26 = vector.broadcast %1 : vector<1x128xf32> to vector<16x128xf32>
    %27 = arith.mulf %25, %26 : vector<16x128xf32>
    %28 = vector.broadcast %2 : vector<1x128xf32> to vector<16x128xf32>
    %29 = arith.addf %27, %28 : vector<16x128xf32>
    %c0_10 = arith.constant 0 : index
    %c0_11 = arith.constant 0 : index
    %30 = vector.load %arg5[%c0_10, %c0_11] : memref<128x384xbf16, #tpu.memory_space<vmem>>, vector<128x384xbf16>
    %31 = arith.extf %30 : vector<128x384xbf16> to vector<128x384xf32>
    %cst_12 = arith.constant dense<0.000000e+00> : vector<16x384xf32>
    %32 = tpu.matmul %29, %31, %cst_12 {dimension_numbers = #tpu.dot_dimension_numbers<[1], [0], [0], [1], [0, 0, 1, 1], [], []>} : vector<16x128xf32>, vector<128x384xf32>, vector<16x384xf32> -> vector<16x384xf32>
    %c0_13 = arith.constant 0 : index
    %c0_14 = arith.constant 0 : index
    %33 = vector.load %arg6[%c0_13, %c0_14] : memref<1x384xf32, #tpu.memory_space<vmem>>, vector<1x384xf32>
    %34 = vector.broadcast %33 : vector<1x384xf32> to vector<16x384xf32>
    %35 = arith.addf %32, %34 : vector<16x384xf32>
    %36 = vector.extract_strided_slice %35 {offsets = [0, 0], sizes = [16, 128], strides = [1, 1]} : vector<16x384xf32> to vector<16x128xf32>
    %37 = vector.shape_cast %36 : vector<16x128xf32> to vector<8x2x128xf32>
    %38 = vector.extract_strided_slice %35 {offsets = [0, 128], sizes = [16, 128], strides = [1, 1]} : vector<16x384xf32> to vector<16x128xf32>
    %39 = vector.shape_cast %38 : vector<16x128xf32> to vector<8x2x128xf32>
    %40 = vector.extract_strided_slice %35 {offsets = [0, 256], sizes = [16, 128], strides = [1, 1]} : vector<16x384xf32> to vector<16x128xf32>
    %41 = vector.shape_cast %40 : vector<16x128xf32> to vector<8x2x128xf32>
    %42 = vector.shape_cast %37 : vector<8x2x128xf32> to vector<8x2x1x128xf32>
    %43 = vector.shape_cast %39 : vector<8x2x128xf32> to vector<8x1x2x128xf32>
    %44 = vector.broadcast %42 : vector<8x2x1x128xf32> to vector<8x2x2x128xf32>
    %45 = vector.broadcast %43 : vector<8x1x2x128xf32> to vector<8x2x2x128xf32>
    %46 = arith.mulf %44, %45 : vector<8x2x2x128xf32>
    %47 = vector.shape_cast %46 : vector<8x2x2x128xf32> to vector<32x128xf32>
    %c0_15 = arith.constant 0 : index
    %c0_16 = arith.constant 0 : index
    %48 = vector.load %arg2[%c0_15, %c0_16] : memref<128x128xf32, #tpu.memory_space<vmem>>, vector<128x128xf32>
    %cst_17 = arith.constant dense<0.000000e+00> : vector<32x128xf32>
    %49 = tpu.matmul %47, %48, %cst_17 {dimension_numbers = #tpu.dot_dimension_numbers<[1], [0], [0], [1], [0, 0, 1, 1], [], []>} : vector<32x128xf32>, vector<128x128xf32>, vector<32x128xf32> -> vector<32x128xf32>
    %50 = vector.shape_cast %49 : vector<32x128xf32> to vector<8x2x2x128xf32>
    %cst_18 = arith.constant dense<0xFF800000> : vector<8x2x128xf32>
    %51 = vector.multi_reduction <maximumf>, %50, %cst_18 [2] : vector<8x2x2x128xf32> to vector<8x2x128xf32>
    %52 = vector.shape_cast %51 : vector<8x2x128xf32> to vector<8x2x1x128xf32>
    %53 = vector.broadcast %52 : vector<8x2x1x128xf32> to vector<8x2x2x128xf32>
    %54 = arith.subf %50, %53 : vector<8x2x2x128xf32>
    %55 = math.exp %54 : vector<8x2x2x128xf32>
    %cst_19 = arith.constant dense<0.000000e+00> : vector<8x2x128xf32>
    %56 = vector.multi_reduction <add>, %55, %cst_19 [2] : vector<8x2x2x128xf32> to vector<8x2x128xf32>
    %57 = vector.shape_cast %56 : vector<8x2x128xf32> to vector<8x2x1x128xf32>
    %58 = tpu.reciprocal %57 {approx = true} : vector<8x2x1x128xf32> -> vector<8x2x1x128xf32>
    %59 = vector.broadcast %58 : vector<8x2x1x128xf32> to vector<8x2x2x128xf32>
    %60 = arith.mulf %55, %59 : vector<8x2x2x128xf32>
    %61 = vector.shape_cast %41 : vector<8x2x128xf32> to vector<8x1x2x128xf32>
    %62 = vector.broadcast %61 : vector<8x1x2x128xf32> to vector<8x2x2x128xf32>
    %63 = arith.mulf %60, %62 : vector<8x2x2x128xf32>
    %cst_20 = arith.constant dense<0.000000e+00> : vector<8x2x128xf32>
    %64 = vector.multi_reduction <add>, %63, %cst_20 [2] : vector<8x2x2x128xf32> to vector<8x2x128xf32>
    %65 = vector.shape_cast %64 : vector<8x2x128xf32> to vector<16x128xf32>
    %c0_21 = arith.constant 0 : index
    %c0_22 = arith.constant 0 : index
    %66 = vector.load %arg7[%c0_21, %c0_22] : memref<128x128xbf16, #tpu.memory_space<vmem>>, vector<128x128xbf16>
    %67 = arith.extf %66 : vector<128x128xbf16> to vector<128x128xf32>
    %cst_23 = arith.constant dense<0.000000e+00> : vector<16x128xf32>
    %68 = tpu.matmul %65, %67, %cst_23 {dimension_numbers = #tpu.dot_dimension_numbers<[1], [0], [0], [1], [0, 0, 1, 1], [], []>} : vector<16x128xf32>, vector<128x128xf32>, vector<16x128xf32> -> vector<16x128xf32>
    %c0_24 = arith.constant 0 : index
    %c0_25 = arith.constant 0 : index
    %69 = vector.load %arg8[%c0_24, %c0_25] : memref<1x128xf32, #tpu.memory_space<vmem>>, vector<1x128xf32>
    %70 = vector.broadcast %69 : vector<1x128xf32> to vector<16x128xf32>
    %71 = arith.addf %68, %70 : vector<16x128xf32>
    %72 = arith.addf %0, %71 : vector<16x128xf32>
    %c0_26 = arith.constant 0 : index
    %c0_27 = arith.constant 0 : index
    %73 = vector.load %arg9[%c0_26, %c0_27] : memref<1x128xf32, #tpu.memory_space<vmem>>, vector<1x128xf32>
    %c0_28 = arith.constant 0 : index
    %c0_29 = arith.constant 0 : index
    %74 = vector.load %arg10[%c0_28, %c0_29] : memref<1x128xf32, #tpu.memory_space<vmem>>, vector<1x128xf32>
    %cst_30 = arith.constant dense<0.000000e+00> : vector<16xf32>
    %75 = vector.multi_reduction <add>, %72, %cst_30 [1] : vector<16x128xf32> to vector<16xf32>
    %76 = vector.shape_cast %75 : vector<16xf32> to vector<16x1xf32>
    %cst_31 = arith.constant 3.125000e-02 : f32
    %77 = vector.broadcast %cst_31 : f32 to vector<16x1xf32>
    %78 = arith.mulf %76, %77 : vector<16x1xf32>
    %79 = vector.broadcast %78 : vector<16x1xf32> to vector<16x128xf32>
    %80 = arith.subf %72, %79 : vector<16x128xf32>
    %81 = tpu.iota {dimensions = array<i32: 1>} : vector<1x128xi32>
    %c32_i32_32 = arith.constant 32 : i32
    %82 = vector.broadcast %c32_i32_32 : i32 to vector<1x128xi32>
    %83 = arith.cmpi slt, %81, %82 : vector<1x128xi32>
    %cst_33 = arith.constant 0.000000e+00 : f32
    %84 = vector.shape_cast %83 : vector<1x128xi1> to vector<1x128xi1>
    %85 = vector.broadcast %84 : vector<1x128xi1> to vector<16x128xi1>
    %86 = vector.broadcast %cst_33 : f32 to vector<16x128xf32>
    %87 = arith.select %85, %80, %86 : vector<16x128xi1>, vector<16x128xf32>
    %88 = arith.mulf %87, %87 : vector<16x128xf32>
    %cst_34 = arith.constant dense<0.000000e+00> : vector<16xf32>
    %89 = vector.multi_reduction <add>, %88, %cst_34 [1] : vector<16x128xf32> to vector<16xf32>
    %90 = vector.shape_cast %89 : vector<16xf32> to vector<16x1xf32>
    %cst_35 = arith.constant 3.125000e-02 : f32
    %91 = vector.broadcast %cst_35 : f32 to vector<16x1xf32>
    %92 = arith.mulf %90, %91 : vector<16x1xf32>
    %cst_36 = arith.constant 9.99999974E-6 : f32
    %93 = vector.broadcast %cst_36 : f32 to vector<16x1xf32>
    %94 = arith.addf %92, %93 : vector<16x1xf32>
    %95 = math.rsqrt %94 : vector<16x1xf32>
    %96 = vector.broadcast %95 : vector<16x1xf32> to vector<16x128xf32>
    %97 = arith.mulf %87, %96 : vector<16x128xf32>
    %98 = vector.broadcast %73 : vector<1x128xf32> to vector<16x128xf32>
    %99 = arith.mulf %97, %98 : vector<16x128xf32>
    %100 = vector.broadcast %74 : vector<1x128xf32> to vector<16x128xf32>
    %101 = arith.addf %99, %100 : vector<16x128xf32>
    %c0_37 = arith.constant 0 : index
    %c0_38 = arith.constant 0 : index
    %102 = vector.load %arg11[%c0_37, %c0_38] : memref<128x128xbf16, #tpu.memory_space<vmem>>, vector<128x128xbf16>
    %103 = arith.extf %102 : vector<128x128xbf16> to vector<128x128xf32>
    %cst_39 = arith.constant dense<0.000000e+00> : vector<16x128xf32>
    %104 = tpu.matmul %101, %103, %cst_39 {dimension_numbers = #tpu.dot_dimension_numbers<[1], [0], [0], [1], [0, 0, 1, 1], [], []>} : vector<16x128xf32>, vector<128x128xf32>, vector<16x128xf32> -> vector<16x128xf32>
    %c0_40 = arith.constant 0 : index
    %c0_41 = arith.constant 0 : index
    %105 = vector.load %arg12[%c0_40, %c0_41] : memref<1x128xf32, #tpu.memory_space<vmem>>, vector<1x128xf32>
    %106 = vector.broadcast %105 : vector<1x128xf32> to vector<16x128xf32>
    %107 = arith.addf %104, %106 : vector<16x128xf32>
    %cst_42 = arith.constant 5.000000e-01 : f32
    %108 = vector.broadcast %cst_42 : f32 to vector<16x128xf32>
    %109 = arith.mulf %108, %107 : vector<16x128xf32>
    %cst_43 = arith.constant 0.707106769 : f32
    %110 = vector.broadcast %cst_43 : f32 to vector<16x128xf32>
    %111 = arith.mulf %107, %110 : vector<16x128xf32>
    %112 = math.erf %111 : vector<16x128xf32>
    %cst_44 = arith.constant 1.000000e+00 : f32
    %113 = vector.broadcast %cst_44 : f32 to vector<16x128xf32>
    %114 = arith.addf %113, %112 : vector<16x128xf32>
    %115 = arith.mulf %109, %114 : vector<16x128xf32>
    %c0_45 = arith.constant 0 : index
    %c0_46 = arith.constant 0 : index
    %116 = vector.load %arg13[%c0_45, %c0_46] : memref<128x128xbf16, #tpu.memory_space<vmem>>, vector<128x128xbf16>
    %117 = arith.extf %116 : vector<128x128xbf16> to vector<128x128xf32>
    %cst_47 = arith.constant dense<0.000000e+00> : vector<16x128xf32>
    %118 = tpu.matmul %115, %117, %cst_47 {dimension_numbers = #tpu.dot_dimension_numbers<[1], [0], [0], [1], [0, 0, 1, 1], [], []>} : vector<16x128xf32>, vector<128x128xf32>, vector<16x128xf32> -> vector<16x128xf32>
    %c0_48 = arith.constant 0 : index
    %c0_49 = arith.constant 0 : index
    %119 = vector.load %arg14[%c0_48, %c0_49] : memref<1x128xf32, #tpu.memory_space<vmem>>, vector<1x128xf32>
    %120 = vector.broadcast %119 : vector<1x128xf32> to vector<16x128xf32>
    %121 = arith.addf %118, %120 : vector<16x128xf32>
    %122 = arith.addf %72, %121 : vector<16x128xf32>
    %c0_50 = arith.constant 0 : index
    %c0_51 = arith.constant 0 : index
    %123 = vector.load %arg15[%c0_50, %c0_51] : memref<16x128xf32, #tpu.memory_space<vmem>>, vector<16x128xf32>
    tpu.vector_store %arg15[%c0_50, %c0_51], %122 {strides = array<i32>} : memref<16x128xf32, #tpu.memory_space<vmem>>, vector<16x128xf32>,
    return
  }
  func.func @transform_0(%arg0: i32) -> (i32, i32) {
    %c0_i32 = arith.constant 0 : i32
    %c0_i32_0 = arith.constant 0 : i32
    return %arg0, %c0_i32 : i32, i32
  }
  func.func @transform_1(%arg0: i32) -> (i32, i32) {
    %c0_i32 = arith.constant 0 : i32
    %c0_i32_0 = arith.constant 0 : i32
    %c0_i32_1 = arith.constant 0 : i32
    return %c0_i32, %c0_i32_0 : i32, i32
  }
  func.func @transform_2(%arg0: i32) -> (i32, i32) {
    %c0_i32 = arith.constant 0 : i32
    %c0_i32_0 = arith.constant 0 : i32
    %c0_i32_1 = arith.constant 0 : i32
    return %c0_i32, %c0_i32_0 : i32, i32
  }
  func.func @transform_3(%arg0: i32) -> (i32, i32) {
    %c0_i32 = arith.constant 0 : i32
    %c0_i32_0 = arith.constant 0 : i32
    %c0_i32_1 = arith.constant 0 : i32
    return %c0_i32, %c0_i32_0 : i32, i32
  }
  func.func @transform_4(%arg0: i32) -> (i32, i32) {
    %c0_i32 = arith.constant 0 : i32
    %c0_i32_0 = arith.constant 0 : i32
    %c0_i32_1 = arith.constant 0 : i32
    return %c0_i32, %c0_i32_0 : i32, i32
  }
  func.func @transform_5(%arg0: i32) -> (i32, i32) {
    %c0_i32 = arith.constant 0 : i32
    %c0_i32_0 = arith.constant 0 : i32
    %c0_i32_1 = arith.constant 0 : i32
    return %c0_i32, %c0_i32_0 : i32, i32
  }
  func.func @transform_6(%arg0: i32) -> (i32, i32) {
    %c0_i32 = arith.constant 0 : i32
    %c0_i32_0 = arith.constant 0 : i32
    %c0_i32_1 = arith.constant 0 : i32
    return %c0_i32, %c0_i32_0 : i32, i32
  }
  func.func @transform_7(%arg0: i32) -> (i32, i32) {
    %c0_i32 = arith.constant 0 : i32
    %c0_i32_0 = arith.constant 0 : i32
    %c0_i32_1 = arith.constant 0 : i32
    return %c0_i32, %c0_i32_0 : i32, i32
  }
  func.func @transform_8(%arg0: i32) -> (i32, i32) {
    %c0_i32 = arith.constant 0 : i32
    %c0_i32_0 = arith.constant 0 : i32
    %c0_i32_1 = arith.constant 0 : i32
    return %c0_i32, %c0_i32_0 : i32, i32
  }
  func.func @transform_9(%arg0: i32) -> (i32, i32) {
    %c0_i32 = arith.constant 0 : i32
    %c0_i32_0 = arith.constant 0 : i32
    %c0_i32_1 = arith.constant 0 : i32
    return %c0_i32, %c0_i32_0 : i32, i32
  }
  func.func @transform_10(%arg0: i32) -> (i32, i32) {
    %c0_i32 = arith.constant 0 : i32
    %c0_i32_0 = arith.constant 0 : i32
    %c0_i32_1 = arith.constant 0 : i32
    return %c0_i32, %c0_i32_0 : i32, i32
  }
  func.func @transform_11(%arg0: i32) -> (i32, i32) {
    %c0_i32 = arith.constant 0 : i32
    %c0_i32_0 = arith.constant 0 : i32
    %c0_i32_1 = arith.constant 0 : i32
    return %c0_i32, %c0_i32_0 : i32, i32
  }
  func.func @transform_12(%arg0: i32) -> (i32, i32) {
    %c0_i32 = arith.constant 0 : i32
    %c0_i32_0 = arith.constant 0 : i32
    %c0_i32_1 = arith.constant 0 : i32
    return %c0_i32, %c0_i32_0 : i32, i32
  }
  func.func @transform_13(%arg0: i32) -> (i32, i32) {
    %c0_i32 = arith.constant 0 : i32
    %c0_i32_0 = arith.constant 0 : i32
    %c0_i32_1 = arith.constant 0 : i32
    return %c0_i32, %c0_i32_0 : i32, i32
  }
  func.func @transform_14(%arg0: i32) -> (i32, i32) {
    %c0_i32 = arith.constant 0 : i32
    %c0_i32_0 = arith.constant 0 : i32
    return %arg0, %c0_i32 : i32, i32
  }
}

module attributes {stable_mosaic.version = 11 : i64} {
  func.func @_linear_kernel(%arg0: i32, %arg1: memref<2x128xf32, #tpu.memory_space<vmem>>, %arg2: memref<128x128xbf16, #tpu.memory_space<vmem>>, %arg3: memref<1x128xf32, #tpu.memory_space<vmem>>, %arg4: memref<2x128xf32, #tpu.memory_space<vmem>>) attributes {dimension_semantics = [#tpu.dimension_semantics<parallel>], iteration_bounds = array<i64: 1>, scalar_prefetch = 0 : i64, scratch_operands = 0 : i64, tpu.core_type = #tpu.core_type<tc>, window_params = [{transform_indices = @transform_0, window_bounds = array<i64: 2, 128>}, {pipeline_mode = #tpu.pipeline_mode<synchronous>, transform_indices = @transform_1, window_bounds = array<i64: 128, 128>}, {pipeline_mode = #tpu.pipeline_mode<synchronous>, transform_indices = @transform_2, window_bounds = array<i64: 1, 128>}, {transform_indices = @transform_3, window_bounds = array<i64: 2, 128>}]} {
    %c0 = arith.constant 0 : index
    %c0_0 = arith.constant 0 : index
    %0 = vector.load %arg2[%c0, %c0_0] : memref<128x128xbf16, #tpu.memory_space<vmem>>, vector<128x128xbf16>
    %1 = arith.extf %0 : vector<128x128xbf16> to vector<128x128xf32>
    %c0_1 = arith.constant 0 : index
    %c0_2 = arith.constant 0 : index
    %2 = vector.load %arg1[%c0_1, %c0_2] : memref<2x128xf32, #tpu.memory_space<vmem>>, vector<2x128xf32>
    %cst = arith.constant dense<0.000000e+00> : vector<2x128xf32>
    %3 = tpu.matmul %2, %1, %cst {dimension_numbers = #tpu.dot_dimension_numbers<[1], [0], [0], [1], [0, 0, 1, 1], [], []>} : vector<2x128xf32>, vector<128x128xf32>, vector<2x128xf32> -> vector<2x128xf32>
    %c0_3 = arith.constant 0 : index
    %c0_4 = arith.constant 0 : index
    %4 = vector.load %arg3[%c0_3, %c0_4] : memref<1x128xf32, #tpu.memory_space<vmem>>, vector<1x128xf32>
    %5 = vector.broadcast %4 : vector<1x128xf32> to vector<2x128xf32>
    %6 = arith.addf %3, %5 : vector<2x128xf32>
    %c0_5 = arith.constant 0 : index
    %c0_6 = arith.constant 0 : index
    %7 = vector.load %arg4[%c0_5, %c0_6] : memref<2x128xf32, #tpu.memory_space<vmem>>, vector<2x128xf32>
    tpu.vector_store %arg4[%c0_5, %c0_6], %6 {strides = array<i32>} : memref<2x128xf32, #tpu.memory_space<vmem>>, vector<2x128xf32>,
    return
  }
  func.func @transform_0(%arg0: i32) -> (i32, i32) {
    %c0_i32 = arith.constant 0 : i32
    %c0_i32_0 = arith.constant 0 : i32
    return %arg0, %c0_i32 : i32, i32
  }
  func.func @transform_1(%arg0: i32) -> (i32, i32) {
    %c0_i32 = arith.constant 0 : i32
    %c0_i32_0 = arith.constant 0 : i32
    %c0_i32_1 = arith.constant 0 : i32
    return %c0_i32, %c0_i32_0 : i32, i32
  }
  func.func @transform_2(%arg0: i32) -> (i32, i32) {
    %c0_i32 = arith.constant 0 : i32
    %c0_i32_0 = arith.constant 0 : i32
    %c0_i32_1 = arith.constant 0 : i32
    return %c0_i32, %c0_i32_0 : i32, i32
  }
  func.func @transform_3(%arg0: i32) -> (i32, i32) {
    %c0_i32 = arith.constant 0 : i32
    %c0_i32_0 = arith.constant 0 : i32
    return %arg0, %c0_i32 : i32, i32
  }
}

</mosaic_0001>

<llo_original>
// kernel: vit_forward.4
$region0: #{vit_forward.4}
  #allocation0 [shape = 'u32[]', space=smem, size = 0x4, offset = 0x4, fixed_abs, tag = 'smem constant byte address 0x4 - core index']
  #allocation1 [shape = 'u32[72,128]{1,0:T(1,128)}', space=vmem, size = 0x9000, scoped, tag = 'internal scratch']
  %s0 = inlined_call_operand.vmem [shape: f32[32,48], index: 0, kind: input, shape index: {}]
  %s1 = inlined_call_operand.vmem [shape: bf16[48,128], index: 1, kind: input, shape index: {}]
  %s2 = inlined_call_operand.vmem [shape: f32[1,128], index: 2, kind: input, shape index: {}]
  %s3 = inlined_call_operand.vmem [shape: f32[32,128], index: 3, kind: output, shape index: {}]
  %s4 = sld [smem:[#allocation0]]
  $region22: #{vit_forward.4} parent=0
    _
  %s6 = ssub.s32 1, %s4
  %s7 = scalar_select 0, %s6, %s4
  // Predicated region
  $region2: #{vit_forward.4} parent=0 // pred_check
    _
  $region3: #{vit_forward.4} parent=0 // pred_check_branch
    %9 = sbr.rel (0) target = $region5
  $region4: #{vit_forward.4} parent=0 // pred_region
    _
  $region5: #{vit_forward.4} parent=0 // pred_fallthru
    _
  // Predicated region
  $region6: #{vit_forward.4} parent=0 // pred_check
    _
  $region7: #{vit_forward.4} parent=0 // pred_check_branch
    %11 = sbr.rel (0) target = $region9
  $region8: #{vit_forward.4} parent=0 // pred_region
    _
  $region9: #{vit_forward.4} parent=0 // pred_fallthru
    _
  // Predicated region
  $region10: #{vit_forward.4} parent=0 // pred_check
    _
  $region11: #{vit_forward.4} parent=0 // pred_check_branch
    %13 = sbr.rel (0) target = $region13
  $region12: #{vit_forward.4} parent=0 // pred_region
    _
  $region13: #{vit_forward.4} parent=0 // pred_fallthru
    _
  %v14 = vld [vmem:[%s1] sm:$0xf]
  %v15 = vld [vmem:[%s1 + $0x4] sm:$0xf]
  %v16 = vld [vmem:[%s1 + $0x8] sm:$0xf]
  %v17 = vld [vmem:[%s1 + $0xc] sm:$0xf]
  %v18 = vld [vmem:[%s1 + $0x10] sm:$0xf]
  %v19 = vld [vmem:[%s1 + $0x14] sm:$0xf]
  %v20 = vunpack.c.l.bf16 %v14
  %v21 = vunpack.c.l.bf16 %v15
  %v22 = vunpack.c.l.bf16 %v16
  %v23 = vunpack.c.l.bf16 %v17
  %v24 = vunpack.c.l.bf16 %v18
  %v25 = vunpack.c.l.bf16 %v19
  %v26 = vld [vmem:[%s0] sm:$0xff]
  %v27 = vld [vmem:[%s0 + $0x8] sm:$0xff]
  %v28 = vld [vmem:[%s0 + $0x10] sm:$0xff]
  %v29 = vld [vmem:[%s0 + $0x18] sm:$0xff]
  %v30 = vld [vmem:[%s2] sm:$0x1]
  %v32 = vperm.slane %v30, 0
  %vm34 = vcmask 392192
  %v36 = vsel %vm34, %v26, 0
  %v39 = vsel %vm34, %v27, 0
  %v42 = vsel %vm34, %v28, 0
  %v45 = vsel %vm34, %v29, 0
  %47 = vmatpush.msra.mxu0 0.0
  %48 = vmatpush.msra.mxu0 0.0
  %49 = vmatpush.msra.mxu0 0.0
  %50 = vmatpush.msra.mxu0 0.0
  %51 = vmatpush.msra.mxu0 0.0
  %52 = vmatpush.msra.mxu0 0.0
  %53 = vmatpush.msra.mxu0 0.0
  %54 = vmatpush.msra.mxu0 0.0
  %55 = vmatpush.msra.mxu0 0.0
  %56 = vmatpush.msra.mxu0 0.0
  %57 = vmatpush.msra.mxu0 %v25
  %58 = vmatpush.msra.mxu0 %v24
  %59 = vmatpush.msra.mxu0 %v23
  %60 = vmatpush.msra.mxu0 %v22
  %61 = vmatpush.msra.mxu0 %v21
  %62 = vmatpush.msra.mxu0 %v20
  %63 = vmatmul.f32.gmra.mxu0 %v36
  %v64 = vpop.f32.mrf.mxu0
  %v65 = vadd.f32 %v32, %v64
  %66 = vmatmul.f32.gmra.mxu0 %v39
  %v67 = vpop.f32.mrf.mxu0
  %v68 = vadd.f32 %v32, %v67
  %69 = vmatmul.f32.gmra.mxu0 %v42
  %v70 = vpop.f32.mrf.mxu0
  %v71 = vadd.f32 %v32, %v70
  %72 = vmatmul.f32.gmra.mxu0 %v45
  %v73 = vpop.f32.mrf.mxu0
  %v74 = vadd.f32 %v32, %v73
  %75 = vdwg.mxu0
  %76 = vst [vmem:[%s3] sm:$0xff] %v65
  %77 = vst [vmem:[%s3 + $0x8] sm:$0xff] %v68
  %78 = vst [vmem:[%s3 + $0x10] sm:$0xff] %v71
  %79 = vst [vmem:[%s3 + $0x18] sm:$0xff] %v74
  // Predicated region
  $region14: #{vit_forward.4} parent=0 // pred_check
    _
  $region15: #{vit_forward.4} parent=0 // pred_check_branch
    %81 = sbr.rel (0) target = $region17
  $region16: #{vit_forward.4} parent=0 // pred_region
    _
  $region17: #{vit_forward.4} parent=0 // pred_fallthru
    _
  // Predicated region
  $region18: #{vit_forward.4} parent=0 // pred_check
    _
  $region19: #{vit_forward.4} parent=0 // pred_check_branch
    %83 = sbr.rel (0) target = $region21
  $region20: #{vit_forward.4} parent=0 // pred_region
    _
  $region21: #{vit_forward.4} parent=0 // pred_fallthru
    _

// kernel: vit_forward.7
$region0: #{vit_forward.7}
  #allocation0 [shape = 'u32[]', space=smem, size = 0x4, offset = 0x4, fixed_abs, tag = 'smem constant byte address 0x4 - core index']
  #allocation1 [shape = 'u32[72,128]{1,0:T(1,128)}', space=vmem, size = 0x9000, scoped, tag = 'internal scratch']
  %s0 = inlined_call_operand.vmem [shape: f32[2,128], index: 0, kind: input, shape index: {}]
  %s1 = inlined_call_operand.hbm [shape: bf16[128,128], index: 1, kind: input, shape index: {}]
  %s2 = inlined_call_operand.vmem [shape: f32[1,128], index: 2, kind: input, shape index: {}]
  %s3 = inlined_call_operand.hbm [shape: f32[2,128], index: 3, kind: output, shape index: {}]
  %s4 = sld [smem:[#allocation0]]
  $region26: #{vit_forward.7} parent=0
    _
  %s6 = ssub.s32 1, %s4
  %s7 = scalar_select 0, %s6, %s4
  $region1: #{vit_forward.7} parent=0
    #allocation2 [shape = 'u8[32768]{0}', space=vmem, size = 0x8000, scoped, tag = 'input window, operand 1, single buffered']
    #allocation3 [shape = 's32[1]{0}', space=sflag, size = 0x4, scoped, tag = 'scoped memory for vit_forward.7']
    #allocation4 [shape = 's32[1]{0}', space=sflag, size = 0x4, scoped, tag = 'scoped memory for vit_forward.7']
    #allocation5 [shape = 'u8[1024]{0}', space=vmem, size = 0x400, scoped, tag = 'output window, operand 0, single buffered']
    %8 = vsyncpa [#allocation3], 0
    %9 = vsyncpa [#allocation4], 0
    // Predicated region
    $region2: #{vit_forward.7} parent=1 // pred_check
      _
    $region3: #{vit_forward.7} parent=1 // pred_check_branch
      %11 = sbr.rel (0) target = $region5
    $region4: #{vit_forward.7} parent=1 // pred_region
      _
    $region5: #{vit_forward.7} parent=1 // pred_fallthru
      _
    // Predicated region
    $region6: #{vit_forward.7} parent=1 // pred_check
      _
    $region7: #{vit_forward.7} parent=1 // pred_check_branch
      %13 = sbr.rel (0) target = $region9
    $region8: #{vit_forward.7} parent=1 // pred_region
      %15 = vsyncadd [#allocation3], 0
      %s16 = sshll.u32 %s1, 4
      %s17 = int_to_ptr.hbm [resolvable:$true] %s16
      %s18 = sshll.u32 [#allocation2], 4
      %s19 = int_to_ptr.vmem [resolvable:$true] %s18
      %24 = dma.hbm_to_vmem [thread:$0]  %s17, 1024, %s19, [#allocation3], 64, 64, 4
    $region9: #{vit_forward.7} parent=1 // pred_fallthru
      _
    // Predicated region
    $region10: #{vit_forward.7} parent=1 // pred_check
      _
    $region11: #{vit_forward.7} parent=1 // pred_check_branch
      %26 = sbr.rel (0) target = $region13
    $region12: #{vit_forward.7} parent=1 // pred_region
      _
    $region13: #{vit_forward.7} parent=1 // pred_fallthru
      _
    // Predicated region
    $region14: #{vit_forward.7} parent=1 // pred_check
      _
    $region15: #{vit_forward.7} parent=1 // pred_check_branch
      %28 = sbr.rel (0) target = $region17
    $region16: #{vit_forward.7} parent=1 // pred_region
      %30 = dma.done [#allocation3], 1024
    $region17: #{vit_forward.7} parent=1 // pred_fallthru
      _
    %v31 = vld [vmem:[#allocation2] sm:$0xf]
    %v32 = vld [vmem:[#allocation2 + $0x4] sm:$0xf]
    %v33 = vld [vmem:[#allocation2 + $0x8] sm:$0xf]
    %v34 = vld [vmem:[#allocation2 + $0xc] sm:$0xf]
    %v35 = vld [vmem:[#allocation2 + $0x10] sm:$0xf]
    %v36 = vld [vmem:[#allocation2 + $0x14] sm:$0xf]
    %v37 = vld [vmem:[#allocation2 + $0x18] sm:$0xf]
    %v38 = vld [vmem:[#allocation2 + $0x1c] sm:$0xf]
    %v39 = vld [vmem:[#allocation2 + $0x20] sm:$0xf]
    %v40 = vld [vmem:[#allocation2 + $0x24] sm:$0xf]
    %v41 = vld [vmem:[#allocation2 + $0x28] sm:$0xf]
    %v42 = vld [vmem:[#allocation2 + $0x2c] sm:$0xf]
    %v43 = vld [vmem:[#allocation2 + $0x30] sm:$0xf]
    %v44 = vld [vmem:[#allocation2 + $0x34] sm:$0xf]
    %v45 = vld [vmem:[#allocation2 + $0x38] sm:$0xf]
    %v46 = vld [vmem:[#allocation2 + $0x3c] sm:$0xf]
    %v47 = vunpack.c.l.bf16 %v31
    %v48 = vunpack.c.l.bf16 %v32
    %v49 = vunpack.c.l.bf16 %v33
    %v50 = vunpack.c.l.bf16 %v34
    %v51 = vunpack.c.l.bf16 %v35
    %v52 = vunpack.c.l.bf16 %v36
    %v53 = vunpack.c.l.bf16 %v37
    %v54 = vunpack.c.l.bf16 %v38
    %v55 = vunpack.c.l.bf16 %v39
    %v56 = vunpack.c.l.bf16 %v40
    %v57 = vunpack.c.l.bf16 %v41
    %v58 = vunpack.c.l.bf16 %v42
    %v59 = vunpack.c.l.bf16 %v43
    %v60 = vunpack.c.l.bf16 %v44
    %v61 = vunpack.c.l.bf16 %v45
    %v62 = vunpack.c.l.bf16 %v46
    %v63 = vld [vmem:[%s0] sm:$0x3]
    %v64 = vld [vmem:[%s2] sm:$0x1]
    %v66 = vperm.slane %v64, 0
    %68 = vmatpush.msra.mxu0 %v62
    %69 = vmatpush.msra.mxu0 %v61
    %70 = vmatpush.msra.mxu0 %v60
    %71 = vmatpush.msra.mxu0 %v59
    %72 = vmatpush.msra.mxu0 %v58
    %73 = vmatpush.msra.mxu0 %v57
    %74 = vmatpush.msra.mxu0 %v56
    %75 = vmatpush.msra.mxu0 %v55
    %76 = vmatpush.msra.mxu0 %v54
    %77 = vmatpush.msra.mxu0 %v53
    %78 = vmatpush.msra.mxu0 %v52
    %79 = vmatpush.msra.mxu0 %v51
    %80 = vmatpush.msra.mxu0 %v50
    %81 = vmatpush.msra.mxu0 %v49
    %82 = vmatpush.msra.mxu0 %v48
    %83 = vmatpush.msra.mxu0 %v47
    %84 = vmatmul.f32.gmra.mxu0 %v63
    %v85 = vpop.f32.mrf.mxu0
    %v86 = vadd.f32 %v66, %v85
    %87 = vdwg.mxu0
    %88 = vst [vmem:[#allocation5] sm:$0x3] %v86
    // Predicated region
    $region18: #{vit_forward.7} parent=1 // pred_check
      _
    $region19: #{vit_forward.7} parent=1 // pred_check_branch
      %90 = sbr.rel (0) target = $region21
    $region20: #{vit_forward.7} parent=1 // pred_region
      %92 = vsyncadd [#allocation4], 0
      %s94 = sshll.u32 [#allocation5], 4
      %s95 = int_to_ptr.vmem [resolvable:$true] %s94
      %s96 = sshll.u32 %s3, 4
      %s97 = int_to_ptr.hbm [resolvable:$true] %s96
      %99 = dma.vmem_to_hbm [thread:$0]  %s95, 32, %s97, [#allocation4]
    $region21: #{vit_forward.7} parent=1 // pred_fallthru
      _
    // Predicated region
    $region22: #{vit_forward.7} parent=1 // pred_check
      _
    $region23: #{vit_forward.7} parent=1 // pred_check_branch
      %101 = sbr.rel (0) target = $region25
    $region24: #{vit_forward.7} parent=1 // pred_region
      %103 = dma.done [#allocation4], 32
    $region25: #{vit_forward.7} parent=1 // pred_fallthru
      _
    %104 = vsyncpa [#allocation3], 1
    %105 = vsyncpa [#allocation4], 1

// kernel: vit_forward.6
$region0: #{vit_forward.6}
  #allocation0 [shape = 'u32[]', space=smem, size = 0x4, offset = 0x4, fixed_abs, tag = 'smem constant byte address 0x4 - core index']
  #allocation1 [shape = 'u32[72,128]{1,0:T(1,128)}', space=vmem, size = 0x9000, scoped, tag = 'internal scratch']
  %s0 = inlined_call_operand.vmem [shape: f32[48,128], index: 0, kind: input, shape index: {}, may-alias: {0,14}]
  %s1 = inlined_call_operand.vmem [shape: f32[128,128], index: 1, kind: input, shape index: {}]
  %s2 = inlined_call_operand.vmem [shape: f32[1,128], index: 2, kind: input, shape index: {}]
  %s3 = inlined_call_operand.vmem [shape: f32[1,128], index: 3, kind: input, shape index: {}]
  %s4 = inlined_call_operand.vmem [shape: bf16[128,384], index: 4, kind: input, shape index: {}]
  %s5 = inlined_call_operand.vmem [shape: f32[1,384], index: 5, kind: input, shape index: {}]
  %s6 = inlined_call_operand.hbm [shape: bf16[128,128], index: 6, kind: input, shape index: {}]
  %s7 = inlined_call_operand.vmem [shape: f32[1,128], index: 7, kind: input, shape index: {}]
  %s8 = inlined_call_operand.vmem [shape: f32[1,128], index: 8, kind: input, shape index: {}]
  %s9 = inlined_call_operand.vmem [shape: f32[1,128], index: 9, kind: input, shape index: {}]
  %s10 = inlined_call_operand.hbm [shape: bf16[128,128], index: 10, kind: input, shape index: {}]
  %s11 = inlined_call_operand.vmem [shape: f32[1,128], index: 11, kind: input, shape index: {}]
  %s12 = inlined_call_operand.hbm [shape: bf16[128,128], index: 12, kind: input, shape index: {}]
  %s13 = inlined_call_operand.vmem [shape: f32[1,128], index: 13, kind: input, shape index: {}]
  %s14 = inlined_call_operand.vmem [shape: f32[48,128], index: 14, kind: output, shape index: {}, may-alias: {0,14}]
  %s15 = sld [smem:[#allocation0]]
  $region101: #{vit_forward.6} parent=0
    _
  %s17 = ssub.s32 1, %s15
  %s18 = scalar_select 0, %s17, %s15
  $region1: #{vit_forward.6} parent=0
    #allocation2 [shape = 'u8[32768]{0}', space=vmem, size = 0x8000, scoped, tag = 'input window, operand 6, single buffered']
    #allocation3 [shape = 's32[2]{0}', space=sflag, size = 0x8, scoped, tag = 'scoped memory for vit_forward.6']
    #allocation4 [shape = 'u8[32768]{0}', space=vmem, size = 0x8000, scoped, tag = 'input window, operand 10, single buffered']
    #allocation5 [shape = 's32[1]{0}', space=sflag, size = 0x4, scoped, tag = 'scoped memory for vit_forward.6']
    #allocation6 [shape = 'u8[32768]{0}', space=vmem, size = 0x8000, scoped, tag = 'input window, operand 12, single buffered']
    %19 = vsyncpa [#allocation3], 0
    %20 = vsyncpa [#allocation5], 0
    loop: start=0, step=1, limit=5
    $region2: #{vit_forward.6} parent=1 // loop_pre_header
      _
    $region3: #{vit_forward.6} parent=1 // loop_header
      %s22 = sphi 0, %s26
      %p23 = scmp.ge.s32.totalorder %s22, 5
      %s32 = sphi 0, %s34
      %s35 = sphi 0, %s32
      %s36 = sphi 0, %s35
      %s52 = sphi 0, %s36
      %s56 = sphi 0, %s56
      %s58 = sphi 0, %s56
      %s59 = sphi 0, %s58
      %s73 = sphi 0, %s59
      %s77 = sphi 0, %s77
      %s79 = sphi 0, %s77
      %s80 = sphi 0, %s79
      %s94 = sphi 0, %s80
      %s98 = sphi 0, %s98
      %s100 = sphi 0, %s98
      %s101 = sphi 0, %s100
      %s115 = sphi 0, %s101
      %s119 = sphi 0, %s119
      %s121 = sphi 0, %s119
      %s122 = sphi 0, %s121
      %s136 = sphi 0, %s122
      %s140 = sphi 0, %s140
      %s142 = sphi 0, %s140
      %s143 = sphi 0, %s142
      %s157 = sphi 0, %s143
      %s161 = sphi 0, %s161
      %s163 = sphi 0, %s161
      %s164 = sphi 0, %s163
      %s178 = sphi 0, %s164
      %s182 = sphi 0, %s182
      %s184 = sphi 0, %s182
      %s185 = sphi 0, %s184
      %s199 = sphi 0, %s185
      %s203 = sphi 0, %s203
      %s205 = sphi 0, %s203
      %s206 = sphi 0, %s205
      %s220 = sphi 0, %s206
      %s224 = sphi 0, %s224
      %s226 = sphi 0, %s224
      %s227 = sphi 0, %s226
      %s241 = sphi 0, %s227
      %s245 = sphi 0, %s245
      %s247 = sphi 0, %s245
      %s248 = sphi 0, %s247
      %s262 = sphi 0, %s248
      %s266 = sphi 0, %s266
      %s268 = sphi 0, %s266
      %s269 = sphi 0, %s268
      %s283 = sphi 0, %s269
      %s287 = sphi 0, %s287
      %s289 = sphi 0, %s287
      %s290 = sphi 0, %s289
      %s304 = sphi 0, %s290
      %s308 = sphi 0, %s308
      %s310 = sphi 0, %s308
      %s311 = sphi 0, %s310
      %s325 = sphi 0, %s311
      %s331 = sphi 0, %s333
      %s334 = sphi 0, %s331
      %s335 = sphi 0, %s334
      %s351 = sphi 0, %s335
    $region4: #{vit_forward.6} parent=1 // loop_header_branch
      %25 = sbr.rel (%p23) target = $region8
    $region5: #{vit_forward.6} parent=1 // loop_body
      %s27 = ssub.s32 %s22, 1
      %s28 = ssub.s32 %s22, 2
      %s29 = sadd.s32 %s22, 1
      %s30 = ssub.s32 %s22, %s29
      %p31 = scmp.eq.s32.totalorder %s30, 0
      %s33 = sadd.s32 %s32, 1
      %s34 = scalar_select %p31, %s32, %s33
      %p37 = pneg %p31
      %p38 = scmp.eq.s32.totalorder %s22, 2
      %p39 = por %p37, %p38
      %p40 = scmp.ne.s32.totalorder %s32, %s35
      %p41 = scmp.eq.s32.totalorder %s22, 0
      %p42 = por %p40, %p41
      %p43 = scmp.ne.s32.totalorder %s32, %s35
      %p44 = scmp.eq.s32.totalorder %s27, 2
      %p45 = por %p43, %p44
      %p46 = scmp.ne.s32.totalorder %s35, %s36
      %p47 = scmp.eq.s32.totalorder %s27, 0
      %p48 = por %p46, %p47
      %p49 = scmp.ne.s32.totalorder %s35, %s36
      %p50 = scmp.eq.s32.totalorder %s28, 2
      %p51 = por %p49, %p50
      %p53 = scmp.ne.s32.totalorder %s36, %s52
      %p54 = scmp.eq.s32.totalorder %s28, 0
      %p55 = por %p53, %p54
      %s57 = sadd.s32 %s56, 1
      %p60 = scmp.eq.s32.totalorder %s22, 2
      %p61 = scmp.ne.s32.totalorder %s56, %s58
      %p62 = scmp.eq.s32.totalorder %s22, 0
      %p63 = por %p61, %p62
      %p64 = scmp.ne.s32.totalorder %s56, %s58
      %p65 = scmp.eq.s32.totalorder %s27, 2
      %p66 = por %p64, %p65
      %p67 = scmp.ne.s32.totalorder %s58, %s59
      %p68 = scmp.eq.s32.totalorder %s27, 0
      %p69 = por %p67, %p68
      %p70 = scmp.ne.s32.totalorder %s58, %s59
      %p71 = scmp.eq.s32.totalorder %s28, 2
      %p72 = por %p70, %p71
      %p74 = scmp.ne.s32.totalorder %s59, %s73
      %p75 = scmp.eq.s32.totalorder %s28, 0
      %p76 = por %p74, %p75
      %s78 = sadd.s32 %s77, 1
      %p81 = scmp.eq.s32.totalorder %s22, 2
      %p82 = scmp.ne.s32.totalorder %s77, %s79
      %p83 = scmp.eq.s32.totalorder %s22, 0
      %p84 = por %p82, %p83
      %p85 = scmp.ne.s32.totalorder %s77, %s79
      %p86 = scmp.eq.s32.totalorder %s27, 2
      %p87 = por %p85, %p86
      %p88 = scmp.ne.s32.totalorder %s79, %s80
      %p89 = scmp.eq.s32.totalorder %s27, 0
      %p90 = por %p88, %p89
      %p91 = scmp.ne.s32.totalorder %s79, %s80
      %p92 = scmp.eq.s32.totalorder %s28, 2
      %p93 = por %p91, %p92
      %p95 = scmp.ne.s32.totalorder %s80, %s94
      %p96 = scmp.eq.s32.totalorder %s28, 0
      %p97 = por %p95, %p96
      %s99 = sadd.s32 %s98, 1
      %p102 = scmp.eq.s32.totalorder %s22, 2
      %p103 = scmp.ne.s32.totalorder %s98, %s100
      %p104 = scmp.eq.s32.totalorder %s22, 0
      %p105 = por %p103, %p104
      %p106 = scmp.ne.s32.totalorder %s98, %s100
      %p107 = scmp.eq.s32.totalorder %s27, 2
      %p108 = por %p106, %p107
      %p109 = scmp.ne.s32.totalorder %s100, %s101
      %p110 = scmp.eq.s32.totalorder %s27, 0
      %p111 = por %p109, %p110
      %p112 = scmp.ne.s32.totalorder %s100, %s101
      %p113 = scmp.eq.s32.totalorder %s28, 2
      %p114 = por %p112, %p113
      %p116 = scmp.ne.s32.totalorder %s101, %s115
      %p117 = scmp.eq.s32.totalorder %s28, 0
      %p118 = por %p116, %p117
      %s120 = sadd.s32 %s119, 1
      %p123 = scmp.eq.s32.totalorder %s22, 2
      %p124 = scmp.ne.s32.totalorder %s119, %s121
      %p125 = scmp.eq.s32.totalorder %s22, 0
      %p126 = por %p124, %p125
      %p127 = scmp.ne.s32.totalorder %s119, %s121
      %p128 = scmp.eq.s32.totalorder %s27, 2
      %p129 = por %p127, %p128
      %p130 = scmp.ne.s32.totalorder %s121, %s122
      %p131 = scmp.eq.s32.totalorder %s27, 0
      %p132 = por %p130, %p131
      %p133 = scmp.ne.s32.totalorder %s121, %s122
      %p134 = scmp.eq.s32.totalorder %s28, 2
      %p135 = por %p133, %p134
      %p137 = scmp.ne.s32.totalorder %s122, %s136
      %p138 = scmp.eq.s32.totalorder %s28, 0
      %p139 = por %p137, %p138
      %s141 = sadd.s32 %s140, 1
      %p144 = scmp.eq.s32.totalorder %s22, 2
      %p145 = scmp.ne.s32.totalorder %s140, %s142
      %p146 = scmp.eq.s32.totalorder %s22, 0
      %p147 = por %p145, %p146
      %p148 = scmp.ne.s32.totalorder %s140, %s142
      %p149 = scmp.eq.s32.totalorder %s27, 2
      %p150 = por %p148, %p149
      %p151 = scmp.ne.s32.totalorder %s142, %s143
      %p152 = scmp.eq.s32.totalorder %s27, 0
      %p153 = por %p151, %p152
      %p154 = scmp.ne.s32.totalorder %s142, %s143
      %p155 = scmp.eq.s32.totalorder %s28, 2
      %p156 = por %p154, %p155
      %p158 = scmp.ne.s32.totalorder %s143, %s157
      %p159 = scmp.eq.s32.totalorder %s28, 0
      %p160 = por %p158, %p159
      %s162 = sadd.s32 %s161, 1
      %p165 = scmp.eq.s32.totalorder %s22, 2
      %p166 = scmp.ne.s32.totalorder %s161, %s163
      %p167 = scmp.eq.s32.totalorder %s22, 0
      %p168 = por %p166, %p167
      %p169 = scmp.ne.s32.totalorder %s161, %s163
      %p170 = scmp.eq.s32.totalorder %s27, 2
      %p171 = por %p169, %p170
      %p172 = scmp.ne.s32.totalorder %s163, %s164
      %p173 = scmp.eq.s32.totalorder %s27, 0
      %p174 = por %p172, %p173
      %p175 = scmp.ne.s32.totalorder %s163, %s164
      %p176 = scmp.eq.s32.totalorder %s28, 2
      %p177 = por %p175, %p176
      %p179 = scmp.ne.s32.totalorder %s164, %s178
      %p180 = scmp.eq.s32.totalorder %s28, 0
      %p181 = por %p179, %p180
      %s183 = sadd.s32 %s182, 1
      %p186 = scmp.eq.s32.totalorder %s22, 2
      %p187 = scmp.ne.s32.totalorder %s182, %s184
      %p188 = scmp.eq.s32.totalorder %s22, 0
      %p189 = por %p187, %p188
      %p190 = scmp.ne.s32.totalorder %s182, %s184
      %p191 = scmp.eq.s32.totalorder %s27, 2
      %p192 = por %p190, %p191
      %p193 = scmp.ne.s32.totalorder %s184, %s185
      %p194 = scmp.eq.s32.totalorder %s27, 0
      %p195 = por %p193, %p194
      %p196 = scmp.ne.s32.totalorder %s184, %s185
      %p197 = scmp.eq.s32.totalorder %s28, 2
      %p198 = por %p196, %p197
      %p200 = scmp.ne.s32.totalorder %s185, %s199
      %p201 = scmp.eq.s32.totalorder %s28, 0
      %p202 = por %p200, %p201
      %s204 = sadd.s32 %s203, 1
      %p207 = scmp.eq.s32.totalorder %s22, 2
      %p208 = scmp.ne.s32.totalorder %s203, %s205
      %p209 = scmp.eq.s32.totalorder %s22, 0
      %p210 = por %p208, %p209
      %p211 = scmp.ne.s32.totalorder %s203, %s205
      %p212 = scmp.eq.s32.totalorder %s27, 2
      %p213 = por %p211, %p212
      %p214 = scmp.ne.s32.totalorder %s205, %s206
      %p215 = scmp.eq.s32.totalorder %s27, 0
      %p216 = por %p214, %p215
      %p217 = scmp.ne.s32.totalorder %s205, %s206
      %p218 = scmp.eq.s32.totalorder %s28, 2
      %p219 = por %p217, %p218
      %p221 = scmp.ne.s32.totalorder %s206, %s220
      %p222 = scmp.eq.s32.totalorder %s28, 0
      %p223 = por %p221, %p222
      %s225 = sadd.s32 %s224, 1
      %p228 = scmp.eq.s32.totalorder %s22, 2
      %p229 = scmp.ne.s32.totalorder %s224, %s226
      %p230 = scmp.eq.s32.totalorder %s22, 0
      %p231 = por %p229, %p230
      %p232 = scmp.ne.s32.totalorder %s224, %s226
      %p233 = scmp.eq.s32.totalorder %s27, 2
      %p234 = por %p232, %p233
      %p235 = scmp.ne.s32.totalorder %s226, %s227
      %p236 = scmp.eq.s32.totalorder %s27, 0
      %p237 = por %p235, %p236
      %p238 = scmp.ne.s32.totalorder %s226, %s227
      %p239 = scmp.eq.s32.totalorder %s28, 2
      %p240 = por %p238, %p239
      %p242 = scmp.ne.s32.totalorder %s227, %s241
      %p243 = scmp.eq.s32.totalorder %s28, 0
      %p244 = por %p242, %p243
      %s246 = sadd.s32 %s245, 1
      %p249 = scmp.eq.s32.totalorder %s22, 2
      %p250 = scmp.ne.s32.totalorder %s245, %s247
      %p251 = scmp.eq.s32.totalorder %s22, 0
      %p252 = por %p250, %p251
      %p253 = scmp.ne.s32.totalorder %s245, %s247
      %p254 = scmp.eq.s32.totalorder %s27, 2
      %p255 = por %p253, %p254
      %p256 = scmp.ne.s32.totalorder %s247, %s248
      %p257 = scmp.eq.s32.totalorder %s27, 0
      %p258 = por %p256, %p257
      %p259 = scmp.ne.s32.totalorder %s247, %s248
      %p260 = scmp.eq.s32.totalorder %s28, 2
      %p261 = por %p259, %p260
      %p263 = scmp.ne.s32.totalorder %s248, %s262
      %p264 = scmp.eq.s32.totalorder %s28, 0
      %p265 = por %p263, %p264
      %s267 = sadd.s32 %s266, 1
      %p270 = scmp.eq.s32.totalorder %s22, 2
      %p271 = scmp.ne.s32.totalorder %s266, %s268
      %p272 = scmp.eq.s32.totalorder %s22, 0
      %p273 = por %p271, %p272
      %p274 = scmp.ne.s32.totalorder %s266, %s268
      %p275 = scmp.eq.s32.totalorder %s27, 2
      %p276 = por %p274, %p275
      %p277 = scmp.ne.s32.totalorder %s268, %s269
      %p278 = scmp.eq.s32.totalorder %s27, 0
      %p279 = por %p277, %p278
      %p280 = scmp.ne.s32.totalorder %s268, %s269
      %p281 = scmp.eq.s32.totalorder %s28, 2
      %p282 = por %p280, %p281
      %p284 = scmp.ne.s32.totalorder %s269, %s283
      %p285 = scmp.eq.s32.totalorder %s28, 0
      %p286 = por %p284, %p285
      %s288 = sadd.s32 %s287, 1
      %p291 = scmp.eq.s32.totalorder %s22, 2
      %p292 = scmp.ne.s32.totalorder %s287, %s289
      %p293 = scmp.eq.s32.totalorder %s22, 0
      %p294 = por %p292, %p293
      %p295 = scmp.ne.s32.totalorder %s287, %s289
      %p296 = scmp.eq.s32.totalorder %s27, 2
      %p297 = por %p295, %p296
      %p298 = scmp.ne.s32.totalorder %s289, %s290
      %p299 = scmp.eq.s32.totalorder %s27, 0
      %p300 = por %p298, %p299
      %p301 = scmp.ne.s32.totalorder %s289, %s290
      %p302 = scmp.eq.s32.totalorder %s28, 2
      %p303 = por %p301, %p302
      %p305 = scmp.ne.s32.totalorder %s290, %s304
      %p306 = scmp.eq.s32.totalorder %s28, 0
      %p307 = por %p305, %p306
      %s309 = sadd.s32 %s308, 1
      %p312 = scmp.eq.s32.totalorder %s22, 2
      %p313 = scmp.ne.s32.totalorder %s308, %s310
      %p314 = scmp.eq.s32.totalorder %s22, 0
      %p315 = por %p313, %p314
      %p316 = scmp.ne.s32.totalorder %s308, %s310
      %p317 = scmp.eq.s32.totalorder %s27, 2
      %p318 = por %p316, %p317
      %p319 = scmp.ne.s32.totalorder %s310, %s311
      %p320 = scmp.eq.s32.totalorder %s27, 0
      %p321 = por %p319, %p320
      %p322 = scmp.ne.s32.totalorder %s310, %s311
      %p323 = scmp.eq.s32.totalorder %s28, 2
      %p324 = por %p322, %p323
      %p326 = scmp.ne.s32.totalorder %s311, %s325
      %p327 = scmp.eq.s32.totalorder %s28, 0
      %p328 = por %p326, %p327
      %s329 = ssub.s32 %s22, %s29
      %p330 = scmp.eq.s32.totalorder %s329, 0
      %s332 = sadd.s32 %s331, 1
      %s333 = scalar_select %p330, %s331, %s332
      %p336 = pneg %p330
      %p337 = scmp.eq.s32.totalorder %s22, 2
      %p338 = por %p336, %p337
      %p339 = scmp.ne.s32.totalorder %s331, %s334
      %p340 = scmp.eq.s32.totalorder %s22, 0
      %p341 = por %p339, %p340
      %p342 = scmp.ne.s32.totalorder %s331, %s334
      %p343 = scmp.eq.s32.totalorder %s27, 2
      %p344 = por %p342, %p343
      %p345 = scmp.ne.s32.totalorder %s334, %s335
      %p346 = scmp.eq.s32.totalorder %s27, 0
      %p347 = por %p345, %p346
      %p348 = scmp.ne.s32.totalorder %s334, %s335
      %p349 = scmp.eq.s32.totalorder %s28, 2
      %p350 = por %p348, %p349
      %p352 = scmp.ne.s32.totalorder %s335, %s351
      %p353 = scmp.eq.s32.totalorder %s28, 0
      %p354 = por %p352, %p353
      %p355 = scmp.le.s32.totalorder 1, %s22
      %p356 = scmp.lt.s32.totalorder %s22, 4
      %p357 = pnand %p355, %p356
      %p358 = pneg %p357
      // Predicated region
      $region9: #{vit_forward.6} parent=5 // pred_check
        _
      $region10: #{vit_forward.6} parent=5 // pred_check_branch
        %360 = sbr.rel (%p357) target = $region12
      $region11: #{vit_forward.6} parent=5 // pred_region
        %s361 = ssub.s32 %s22, 1
        // Predicated region
        $region13: #{vit_forward.6} parent=11 // pred_check
          %p362 = pneg %p69
        $region14: #{vit_forward.6} parent=11 // pred_check_branch
          %364 = sbr.rel (%p362) target = $region16
        $region15: #{vit_forward.6} parent=11 // pred_region
          _
        $region16: #{vit_forward.6} parent=11 // pred_fallthru
          _
        // Predicated region
        $region17: #{vit_forward.6} parent=11 // pred_check
          %p365 = pneg %p90
        $region18: #{vit_forward.6} parent=11 // pred_check_branch
          %367 = sbr.rel (%p365) target = $region20
        $region19: #{vit_forward.6} parent=11 // pred_region
          _
        $region20: #{vit_forward.6} parent=11 // pred_fallthru
          _
        // Predicated region
        $region21: #{vit_forward.6} parent=11 // pred_check
          %p368 = pneg %p111
        $region22: #{vit_forward.6} parent=11 // pred_check_branch
          %370 = sbr.rel (%p368) target = $region24
        $region23: #{vit_forward.6} parent=11 // pred_region
          _
        $region24: #{vit_forward.6} parent=11 // pred_fallthru
          _
        // Predicated region
        $region25: #{vit_forward.6} parent=11 // pred_check
          %p371 = pneg %p132
        $region26: #{vit_forward.6} parent=11 // pred_check_branch
          %373 = sbr.rel (%p371) target = $region28
        $region27: #{vit_forward.6} parent=11 // pred_region
          _
        $region28: #{vit_forward.6} parent=11 // pred_fallthru
          _
        // Predicated region
        $region29: #{vit_forward.6} parent=11 // pred_check
          %p374 = pneg %p153
        $region30: #{vit_forward.6} parent=11 // pred_check_branch
          %376 = sbr.rel (%p374) target = $region32
        $region31: #{vit_forward.6} parent=11 // pred_region
          _
        $region32: #{vit_forward.6} parent=11 // pred_fallthru
          _
        // Predicated region
        $region33: #{vit_forward.6} parent=11 // pred_check
          %p377 = pneg %p174
        $region34: #{vit_forward.6} parent=11 // pred_check_branch
          %379 = sbr.rel (%p377) target = $region36
        $region35: #{vit_forward.6} parent=11 // pred_region
          %381 = vsyncadd [#allocation3], 0
          %s382 = sshll.u32 %s6, 4
          %s383 = int_to_ptr.hbm [resolvable:$true] %s382
          %s384 = sshll.u32 [#allocation2], 4
          %s385 = int_to_ptr.vmem [resolvable:$true] %s384
          %390 = dma.hbm_to_vmem [thread:$0]  %s383, 1024, %s385, [#allocation3], 64, 64, 4
        $region36: #{vit_forward.6} parent=11 // pred_fallthru
          _
        // Predicated region
        $region37: #{vit_forward.6} parent=11 // pred_check
          %p391 = pneg %p195
        $region38: #{vit_forward.6} parent=11 // pred_check_branch
          %393 = sbr.rel (%p391) target = $region40
        $region39: #{vit_forward.6} parent=11 // pred_region
          _
        $region40: #{vit_forward.6} parent=11 // pred_fallthru
          _
        // Predicated region
        $region41: #{vit_forward.6} parent=11 // pred_check
          %p394 = pneg %p216
        $region42: #{vit_forward.6} parent=11 // pred_check_branch
          %396 = sbr.rel (%p394) target = $region44
        $region43: #{vit_forward.6} parent=11 // pred_region
          _
        $region44: #{vit_forward.6} parent=11 // pred_fallthru
          _
        // Predicated region
        $region45: #{vit_forward.6} parent=11 // pred_check
          %p397 = pneg %p237
        $region46: #{vit_forward.6} parent=11 // pred_check_branch
          %399 = sbr.rel (%p397) target = $region48
        $region47: #{vit_forward.6} parent=11 // pred_region
          _
        $region48: #{vit_forward.6} parent=11 // pred_fallthru
          _
        // Predicated region
        $region49: #{vit_forward.6} parent=11 // pred_check
          %p400 = pneg %p258
        $region50: #{vit_forward.6} parent=11 // pred_check_branch
          %402 = sbr.rel (%p400) target = $region52
        $region51: #{vit_forward.6} parent=11 // pred_region
          %404 = vsyncadd [#allocation5], 0
          %s405 = sshll.u32 %s10, 4
          %s406 = int_to_ptr.hbm [resolvable:$true] %s405
          %s407 = sshll.u32 [#allocation4], 4
          %s408 = int_to_ptr.vmem [resolvable:$true] %s407
          %413 = dma.hbm_to_vmem [thread:$0]  %s406, 1024, %s408, [#allocation5], 64, 64, 4
        $region52: #{vit_forward.6} parent=11 // pred_fallthru
          _
        // Predicated region
        $region53: #{vit_forward.6} parent=11 // pred_check
          %p414 = pneg %p279
        $region54: #{vit_forward.6} parent=11 // pred_check_branch
          %416 = sbr.rel (%p414) target = $region56
        $region55: #{vit_forward.6} parent=11 // pred_region
          _
        $region56: #{vit_forward.6} parent=11 // pred_fallthru
          _
        // Predicated region
        $region57: #{vit_forward.6} parent=11 // pred_check
          %p417 = pneg %p300
        $region58: #{vit_forward.6} parent=11 // pred_check_branch
          %419 = sbr.rel (%p417) target = $region60
        $region59: #{vit_forward.6} parent=11 // pred_region
          %421 = vsyncadd [#allocation5], 0
          %s422 = sshll.u32 %s12, 4
          %s423 = int_to_ptr.hbm [resolvable:$true] %s422
          %s424 = sshll.u32 [#allocation6], 4
          %s425 = int_to_ptr.vmem [resolvable:$true] %s424
          %430 = dma.hbm_to_vmem [thread:$0]  %s423, 1024, %s425, [#allocation5], 64, 64, 4
        $region60: #{vit_forward.6} parent=11 // pred_fallthru
          _
        // Predicated region
        $region61: #{vit_forward.6} parent=11 // pred_check
          %p431 = pneg %p321
        $region62: #{vit_forward.6} parent=11 // pred_check_branch
          %433 = sbr.rel (%p431) target = $region64
        $region63: #{vit_forward.6} parent=11 // pred_region
          _
        $region64: #{vit_forward.6} parent=11 // pred_fallthru
          _
      $region12: #{vit_forward.6} parent=5 // pred_fallthru
        _
      %p434 = scmp.lt.s32.totalorder %s22, 3
      // Predicated region
      $region65: #{vit_forward.6} parent=5 // pred_check
        %p435 = pneg %p434
      $region66: #{vit_forward.6} parent=5 // pred_check_branch
        %437 = sbr.rel (%p435) target = $region68
      $region67: #{vit_forward.6} parent=5 // pred_region
        // Predicated region
        $region69: #{vit_forward.6} parent=67 // pred_check
          %p438 = pneg %p42
        $region70: #{vit_forward.6} parent=67 // pred_check_branch
          %440 = sbr.rel (%p438) target = $region72
        $region71: #{vit_forward.6} parent=67 // pred_region
          %s441 = smul.u32 2, %s22
          %p442 = scmp.lt.s32.totalorder %s441, 5
          %s443 = scalar_select %p442, %s441, 5
          %s444 = smul.addr %s443, 8
          %s445 = scalar_lea.vmem %s0, %s444
          %s446 = smul.u32 2, %s22
        $region72: #{vit_forward.6} parent=67 // pred_fallthru
          _
      $region68: #{vit_forward.6} parent=5 // pred_fallthru
        _
      %p447 = scmp.le.s32.totalorder 1, %s22
      %p448 = scmp.lt.s32.totalorder %s22, 4
      %p449 = pnand %p447, %p448
      %p450 = pneg %p449
      // Predicated region
      $region73: #{vit_forward.6} parent=5 // pred_check
        _
      $region74: #{vit_forward.6} parent=5 // pred_check_branch
        %452 = sbr.rel (%p449) target = $region76
      $region75: #{vit_forward.6} parent=5 // pred_region
        %s453 = ssub.s32 %s22, 1
        // Predicated region
        $region77: #{vit_forward.6} parent=75 // pred_check
          %p454 = pneg %p174
        $region78: #{vit_forward.6} parent=75 // pred_check_branch
          %456 = sbr.rel (%p454) target = $region80
        $region79: #{vit_forward.6} parent=75 // pred_region
          %458 = dma.done [#allocation3], 1024
        $region80: #{vit_forward.6} parent=75 // pred_fallthru
          _
        // Predicated region
        $region81: #{vit_forward.6} parent=75 // pred_check
          %p459 = pneg %p258
        $region82: #{vit_forward.6} parent=75 // pred_check_branch
          %461 = sbr.rel (%p459) target = $region84
        $region83: #{vit_forward.6} parent=75 // pred_region
          %463 = dma.done [#allocation5], 1024
        $region84: #{vit_forward.6} parent=75 // pred_fallthru
          _
        // Predicated region
        $region85: #{vit_forward.6} parent=75 // pred_check
          %p464 = pneg %p300
        $region86: #{vit_forward.6} parent=75 // pred_check_branch
          %466 = sbr.rel (%p464) target = $region88
        $region87: #{vit_forward.6} parent=75 // pred_region
          %468 = dma.done [#allocation5], 1024
        $region88: #{vit_forward.6} parent=75 // pred_fallthru
          _
        %s469 = smul.u32 2, %s27
        %p470 = scmp.lt.s32.totalorder %s469, 5
        %s471 = scalar_select %p470, %s469, 5
        %s472 = smul.addr %s471, 8
        %s473 = scalar_lea.vmem %s0, %s472
        %p474 = pneg %p48
        %p475 = pneg %p45
        %p476 = pneg %p69
        %p477 = pneg %p66
        %p478 = pneg %p90
        %p479 = pneg %p87
        %p480 = pneg %p111
        %p481 = pneg %p108
        %p482 = pneg %p132
        %p483 = pneg %p129
        %p484 = pneg %p153
        %p485 = pneg %p150
        %p486 = pneg %p174
        %p487 = pneg %p171
        %p488 = pneg %p195
        %p489 = pneg %p192
        %p490 = pneg %p216
        %p491 = pneg %p213
        %p492 = pneg %p237
        %p493 = pneg %p234
        %p494 = pneg %p258
        %p495 = pneg %p255
        %p496 = pneg %p279
        %p497 = pneg %p276
        %p498 = pneg %p300
        %p499 = pneg %p297
        %p500 = pneg %p321
        %p501 = pneg %p318
        %p502 = pneg %p347
        %p503 = pneg %p344
        %s504 = smul.u32 2, %s27
        %p505 = scmp.lt.s32.totalorder %s504, 5
        %s506 = scalar_select %p505, %s504, 5
        %s507 = smul.addr %s506, 8
        %s508 = scalar_lea.vmem %s14, %s507
        %s509 = smul.u32 2, %s27
        %p510 = scmp.lt.s32.totalorder %s509, 5
        %s511 = scalar_select %p510, %s509, 5
        %s512 = smul.addr %s511, 8
        %s513 = scalar_lea.vmem %s0, %s512
        %s514 = smul.u32 2, %s27
        %s515 = smul.u32 2, %s27
        %p516 = scmp.lt.s32.totalorder %s515, 5
        %s517 = scalar_select %p516, %s515, 5
        %s518 = smul.addr %s517, 8
        %s519 = scalar_lea.vmem %s14, %s518
        %s520 = smul.u32 2, %s27
        %v521 = vld [vmem:[%s513] sm:$0xff]
        %v522 = vld [vmem:[%s513 + $0x8] sm:$0xff]
        %v523 = vld [vmem:[%s2] sm:$0x1]
        %v524 = vld [vmem:[%s3] sm:$0x1]
        %525 = vadd.xlane.f32.xlu0 %v521
        %v526 = vpop.xlane.xlu0 %525
        %527 = vadd.xlane.f32.xlu0 %v522
        %v528 = vpop.xlane.xlu0 %527
        %v529 = vmul.f32 %v526, 0.03125
        %v530 = vmul.f32 %v528, 0.03125
        %v531 = vsub.f32 %v521, %v529
        %v532 = vsub.f32 %v522, %v530
        %v533 = vlaneseq
        %v534 = vand.u32 %v533, 127
        %vm535 = vcmp.lt.s32.totalorder %v534, 32
        %v536 = vsel %vm535, 1, 0
        %vm537 = vcmp.eq.s32.totalorder %v536, 1
        %v538 = vsel %vm537, %v531, 0.0
        %v539 = vsel %vm537, %v532, 0.0
        %v540 = vmul.f32 %v538, %v538
        %v541 = vmul.f32 %v539, %v539
        %542 = vadd.xlane.f32.xlu0 %v540
        %v543 = vpop.xlane.xlu0 %542
        %544 = vadd.xlane.f32.xlu0 %v541
        %v545 = vpop.xlane.xlu0 %544
        %v546 = vmul.f32 %v543, 0.03125
        %v547 = vmul.f32 %v545, 0.03125
        %v548 = vadd.f32 %v546, 1e-05
        %v549 = vadd.f32 %v547, 1e-05
        %v550 = vrsqrt.pop %v548
        %v551 = vmul.f32 %v550, %v548
        %v552 = vmul.f32 %v551, %v550
        %v553 = vmul.f32 0.5, %v552
        %v554 = vsub.f32 1.5, %v553
        %v555 = vmul.f32 %v550, %v554
        %vm556 = vweird.f32 %v548
        %vm557 = vweird.f32 %v550
        %vm558 = vmor %vm556, %vm557
        %v559 = vsel %vm558, %v550, %v555
        %v560 = vrsqrt.pop %v549
        %v561 = vmul.f32 %v560, %v549
        %v562 = vmul.f32 %v561, %v560
        %v563 = vmul.f32 0.5, %v562
        %v564 = vsub.f32 1.5, %v563
        %v565 = vmul.f32 %v560, %v564
        %vm566 = vweird.f32 %v549
        %vm567 = vweird.f32 %v560
        %vm568 = vmor %vm566, %vm567
        %v569 = vsel %vm568, %v560, %v565
        %v570 = vmul.f32 %v538, %v559
        %v571 = vmul.f32 %v539, %v569
        %v573 = vperm.slane %v523, 0
        %v575 = vmul.f32 %v570, %v573
        %v576 = vmul.f32 %v571, %v573
        %v578 = vperm.slane %v524, 0
        %v580 = vadd.f32 %v575, %v578
        %v581 = vadd.f32 %v576, %v578
        %v582 = vld [vmem:[%s4] sm:$0xff]
        %v583 = vld [vmem:[%s4 + $0x8] sm:$0xf]
        %v584 = vld [vmem:[%s4 + $0xc] sm:$0xff]
        %v585 = vld [vmem:[%s4 + $0x14] sm:$0xf]
        %v586 = vld [vmem:[%s4 + $0x18] sm:$0xff]
        %v587 = vld [vmem:[%s4 + $0x20] sm:$0xf]
        %v588 = vld [vmem:[%s4 + $0x24] sm:$0xff]
        %v589 = vld [vmem:[%s4 + $0x2c] sm:$0xf]
        %v590 = vld [vmem:[%s4 + $0x30] sm:$0xff]
        %v591 = vld [vmem:[%s4 + $0x38] sm:$0xf]
        %v592 = vld [vmem:[%s4 + $0x3c] sm:$0xff]
        %v593 = vld [vmem:[%s4 + $0x44] sm:$0xf]
        %v594 = vld [vmem:[%s4 + $0x48] sm:$0xff]
        %v595 = vld [vmem:[%s4 + $0x50] sm:$0xf]
        %v596 = vld [vmem:[%s4 + $0x54] sm:$0xff]
        %v597 = vld [vmem:[%s4 + $0x5c] sm:$0xf]
        %v598 = vld [vmem:[%s4 + $0x60] sm:$0xff]
        %v599 = vld [vmem:[%s4 + $0x68] sm:$0xf]
        %v600 = vld [vmem:[%s4 + $0x6c] sm:$0xff]
        %v601 = vld [vmem:[%s4 + $0x74] sm:$0xf]
        %v602 = vld [vmem:[%s4 + $0x78] sm:$0xff]
        %v603 = vld [vmem:[%s4 + $0x80] sm:$0xf]
        %v604 = vld [vmem:[%s4 + $0x84] sm:$0xff]
        %v605 = vld [vmem:[%s4 + $0x8c] sm:$0xf]
        %v606 = vld [vmem:[%s4 + $0x90] sm:$0xff]
        %v607 = vld [vmem:[%s4 + $0x98] sm:$0xf]
        %v608 = vld [vmem:[%s4 + $0x9c] sm:$0xff]
        %v609 = vld [vmem:[%s4 + $0xa4] sm:$0xf]
        %v610 = vld [vmem:[%s4 + $0xa8] sm:$0xff]
        %v611 = vld [vmem:[%s4 + $0xb0] sm:$0xf]
        %v612 = vld [vmem:[%s4 + $0xb4] sm:$0xff]
        %v613 = vld [vmem:[%s4 + $0xbc] sm:$0xf]
        %v614 = vunpack.c.l.bf16 %v582
        %v615 = vunpack.c.h.bf16 %v582
        %v616 = vunpack.c.l.bf16 %v583
        %v617 = vunpack.c.l.bf16 %v584
        %v618 = vunpack.c.h.bf16 %v584
        %v619 = vunpack.c.l.bf16 %v585
        %v620 = vunpack.c.l.bf16 %v586
        %v621 = vunpack.c.h.bf16 %v586
        %v622 = vunpack.c.l.bf16 %v587
        %v623 = vunpack.c.l.bf16 %v588
        %v624 = vunpack.c.h.bf16 %v588
        %v625 = vunpack.c.l.bf16 %v589
        %v626 = vunpack.c.l.bf16 %v590
        %v627 = vunpack.c.h.bf16 %v590
        %v628 = vunpack.c.l.bf16 %v591
        %v629 = vunpack.c.l.bf16 %v592
        %v630 = vunpack.c.h.bf16 %v592
        %v631 = vunpack.c.l.bf16 %v593
        %v632 = vunpack.c.l.bf16 %v594
        %v633 = vunpack.c.h.bf16 %v594
        %v634 = vunpack.c.l.bf16 %v595
        %v635 = vunpack.c.l.bf16 %v596
        %v636 = vunpack.c.h.bf16 %v596
        %v637 = vunpack.c.l.bf16 %v597
        %v638 = vunpack.c.l.bf16 %v598
        %v639 = vunpack.c.h.bf16 %v598
        %v640 = vunpack.c.l.bf16 %v599
        %v641 = vunpack.c.l.bf16 %v600
        %v642 = vunpack.c.h.bf16 %v600
        %v643 = vunpack.c.l.bf16 %v601
        %v644 = vunpack.c.l.bf16 %v602
        %v645 = vunpack.c.h.bf16 %v602
        %v646 = vunpack.c.l.bf16 %v603
        %v647 = vunpack.c.l.bf16 %v604
        %v648 = vunpack.c.h.bf16 %v604
        %v649 = vunpack.c.l.bf16 %v605
        %v650 = vunpack.c.l.bf16 %v606
        %v651 = vunpack.c.h.bf16 %v606
        %v652 = vunpack.c.l.bf16 %v607
        %v653 = vunpack.c.l.bf16 %v608
        %v654 = vunpack.c.h.bf16 %v608
        %v655 = vunpack.c.l.bf16 %v609
        %v656 = vunpack.c.l.bf16 %v610
        %v657 = vunpack.c.h.bf16 %v610
        %v658 = vunpack.c.l.bf16 %v611
        %v659 = vunpack.c.l.bf16 %v612
        %v660 = vunpack.c.h.bf16 %v612
        %v661 = vunpack.c.l.bf16 %v613
        %v662 = vld [vmem:[%s5] sm:$0x7]
        %v664 = vperm.slane %v662, 0
        %v665 = vperm.slane %v662, 1
        %v666 = vperm.slane %v662, 2
        %670 = vmatpush.msra.mxu0 %v659
        %671 = vmatpush.msra.mxu0 %v656
        %672 = vmatpush.msra.mxu0 %v653
        %673 = vmatpush.msra.mxu0 %v650
        %674 = vmatpush.msra.mxu0 %v647
        %675 = vmatpush.msra.mxu0 %v644
        %676 = vmatpush.msra.mxu0 %v641
        %677 = vmatpush.msra.mxu0 %v638
        %678 = vmatpush.msra.mxu0 %v635
        %679 = vmatpush.msra.mxu0 %v632
        %680 = vmatpush.msra.mxu0 %v629
        %681 = vmatpush.msra.mxu0 %v626
        %682 = vmatpush.msra.mxu0 %v623
        %683 = vmatpush.msra.mxu0 %v620
        %684 = vmatpush.msra.mxu0 %v617
        %685 = vmatpush.msra.mxu0 %v614
        %686 = vmatmul.f32.gmra.mxu0 %v580
        %v687 = vpop.f32.mrf.mxu0
        %v688 = vadd.f32 %v664, %v687
        %689 = vmatmul.f32.gmra.mxu0 %v581
        %v690 = vpop.f32.mrf.mxu0
        %v691 = vadd.f32 %v664, %v690
        %692 = vdwg.mxu0
        %693 = vmatpush.msra.mxu0 %v660
        %694 = vmatpush.msra.mxu0 %v657
        %695 = vmatpush.msra.mxu0 %v654
        %696 = vmatpush.msra.mxu0 %v651
        %697 = vmatpush.msra.mxu0 %v648
        %698 = vmatpush.msra.mxu0 %v645
        %699 = vmatpush.msra.mxu0 %v642
        %700 = vmatpush.msra.mxu0 %v639
        %701 = vmatpush.msra.mxu0 %v636
        %702 = vmatpush.msra.mxu0 %v633
        %703 = vmatpush.msra.mxu0 %v630
        %704 = vmatpush.msra.mxu0 %v627
        %705 = vmatpush.msra.mxu0 %v624
        %706 = vmatpush.msra.mxu0 %v621
        %707 = vmatpush.msra.mxu0 %v618
        %708 = vmatpush.msra.mxu0 %v615
        %709 = vmatmul.f32.gmra.mxu0 %v580
        %v710 = vpop.f32.mrf.mxu0
        %v711 = vadd.f32 %v665, %v710
        %712 = vmatmul.f32.gmra.mxu0 %v581
        %v713 = vpop.f32.mrf.mxu0
        %v714 = vadd.f32 %v665, %v713
        %715 = vdwg.mxu0
        %716 = vmatpush.msra.mxu0 %v661
        %717 = vmatpush.msra.mxu0 %v658
        %718 = vmatpush.msra.mxu0 %v655
        %719 = vmatpush.msra.mxu0 %v652
        %720 = vmatpush.msra.mxu0 %v649
        %721 = vmatpush.msra.mxu0 %v646
        %722 = vmatpush.msra.mxu0 %v643
        %723 = vmatpush.msra.mxu0 %v640
        %724 = vmatpush.msra.mxu0 %v637
        %725 = vmatpush.msra.mxu0 %v634
        %726 = vmatpush.msra.mxu0 %v631
        %727 = vmatpush.msra.mxu0 %v628
        %728 = vmatpush.msra.mxu0 %v625
        %729 = vmatpush.msra.mxu0 %v622
        %730 = vmatpush.msra.mxu0 %v619
        %731 = vmatpush.msra.mxu0 %v616
        %732 = vmatmul.f32.gmra.mxu0 %v580
        %v733 = vpop.f32.mrf.mxu0
        %v734 = vadd.f32 %v666, %v733
        %735 = vmatmul.f32.gmra.mxu0 %v581
        %v736 = vpop.f32.mrf.mxu0
        %v737 = vadd.f32 %v666, %v736
        %738 = vdwg.mxu0
        %v741 = vrot.slane %v688, 1
        %v742 = vrot.slane %v688, 2
        %v743 = vrot.slane %v688, 3
        %v744 = vrot.slane %v688, 4
        %v745 = vrot.slane %v688, 5
        %v746 = vrot.slane %v688, 6
        %v747 = vrot.slane %v688, 7
        %v748 = vrot.slane %v691, 1
        %v749 = vrot.slane %v691, 2
        %v750 = vrot.slane %v691, 3
        %v751 = vrot.slane %v691, 4
        %v752 = vrot.slane %v691, 5
        %v753 = vrot.slane %v691, 6
        %v754 = vrot.slane %v691, 7
        %v757 = vrot.slane %v711, 2
        %v758 = vrot.slane %v711, 4
        %v759 = vrot.slane %v711, 6
        %v760 = vrot.slane %v714, 2
        %v761 = vrot.slane %v714, 4
        %v762 = vrot.slane %v714, 6
        %v769 = vperm.slane %v688, 0
        %v770 = vperm.slane %v741, 0
        %v771 = vperm.slane %v742, 0
        %v772 = vperm.slane %v743, 0
        %v773 = vperm.slane %v744, 0
        %v774 = vperm.slane %v745, 0
        %v775 = vperm.slane %v746, 0
        %v776 = vperm.slane %v747, 0
        %v777 = vperm.slane %v691, 0
        %v778 = vperm.slane %v748, 0
        %v779 = vperm.slane %v749, 0
        %v780 = vperm.slane %v750, 0
        %v781 = vperm.slane %v751, 0
        %v782 = vperm.slane %v752, 0
        %v783 = vperm.slane %v753, 0
        %v784 = vperm.slane %v754, 0
        %v801 = vmul.f32 %v769, %v711
        %v802 = vmul.f32 %v770, %v711
        %v803 = vmul.f32 %v771, %v757
        %v804 = vmul.f32 %v772, %v757
        %v805 = vmul.f32 %v773, %v758
        %v806 = vmul.f32 %v774, %v758
        %v807 = vmul.f32 %v775, %v759
        %v808 = vmul.f32 %v776, %v759
        %v809 = vmul.f32 %v777, %v714
        %v810 = vmul.f32 %v778, %v714
        %v811 = vmul.f32 %v779, %v760
        %v812 = vmul.f32 %v780, %v760
        %v813 = vmul.f32 %v781, %v761
        %v814 = vmul.f32 %v782, %v761
        %v815 = vmul.f32 %v783, %v762
        %v816 = vmul.f32 %v784, %v762
        %v817 = vld [vmem:[%s1] sm:$0xff]
        %v818 = vld [vmem:[%s1 + $0x8] sm:$0xff]
        %v819 = vld [vmem:[%s1 + $0x10] sm:$0xff]
        %v820 = vld [vmem:[%s1 + $0x18] sm:$0xff]
        %v821 = vld [vmem:[%s1 + $0x20] sm:$0xff]
        %v822 = vld [vmem:[%s1 + $0x28] sm:$0xff]
        %v823 = vld [vmem:[%s1 + $0x30] sm:$0xff]
        %v824 = vld [vmem:[%s1 + $0x38] sm:$0xff]
        %v825 = vld [vmem:[%s1 + $0x40] sm:$0xff]
        %v826 = vld [vmem:[%s1 + $0x48] sm:$0xff]
        %v827 = vld [vmem:[%s1 + $0x50] sm:$0xff]
        %v828 = vld [vmem:[%s1 + $0x58] sm:$0xff]
        %v829 = vld [vmem:[%s1 + $0x60] sm:$0xff]
        %v830 = vld [vmem:[%s1 + $0x68] sm:$0xff]
        %v831 = vld [vmem:[%s1 + $0x70] sm:$0xff]
        %v832 = vld [vmem:[%s1 + $0x78] sm:$0xff]
        %849 = vst [vmem:[#allocation1] ss:$4 sm:$0xff] %v801
        %s850 = scalar_lea.vmem [#allocation1], 1
        %851 = vst [vmem:[%s850] ss:$4 sm:$0xff] %v802
        %s852 = scalar_lea.vmem [#allocation1], 2
        %853 = vst [vmem:[%s852] ss:$4 sm:$0xff] %v803
        %s854 = scalar_lea.vmem [#allocation1], 3
        %855 = vst [vmem:[%s854] ss:$4 sm:$0xff] %v804
        %s856 = scalar_lea.vmem [#allocation1], 32
        %857 = vst [vmem:[%s856] ss:$4 sm:$0xff] %v805
        %s858 = scalar_lea.vmem [#allocation1], 33
        %859 = vst [vmem:[%s858] ss:$4 sm:$0xff] %v806
        %s860 = scalar_lea.vmem [#allocation1], 34
        %861 = vst [vmem:[%s860] ss:$4 sm:$0xff] %v807
        %s862 = scalar_lea.vmem [#allocation1], 35
        %863 = vst [vmem:[%s862] ss:$4 sm:$0xff] %v808
        %v864 = vld.sshfl [vmem:[#allocation1] sm:$0xff pattern:$0x73625140]
        %v865 = vld.sshfl [vmem:[#allocation1 + $0x20] sm:$0xff pattern:$0x73625140]
        %866 = vst [vmem:[#allocation1] ss:$4 sm:$0xff] %v809
        %867 = vst [vmem:[%s850] ss:$4 sm:$0xff] %v810
        %868 = vst [vmem:[%s852] ss:$4 sm:$0xff] %v811
        %869 = vst [vmem:[%s854] ss:$4 sm:$0xff] %v812
        %870 = vst [vmem:[%s856] ss:$4 sm:$0xff] %v813
        %871 = vst [vmem:[%s858] ss:$4 sm:$0xff] %v814
        %872 = vst [vmem:[%s860] ss:$4 sm:$0xff] %v815
        %873 = vst [vmem:[%s862] ss:$4 sm:$0xff] %v816
        %v874 = vld.sshfl [vmem:[#allocation1] sm:$0xff pattern:$0x73625140]
        %v875 = vld.sshfl [vmem:[#allocation1 + $0x20] sm:$0xff pattern:$0x73625140]
        %880 = vmatpush.msra.mxu0 %v832
        %881 = vmatpush.msra.mxu0 %v831
        %882 = vmatpush.msra.mxu0 %v830
        %883 = vmatpush.msra.mxu0 %v829
        %884 = vmatpush.msra.mxu0 %v828
        %885 = vmatpush.msra.mxu0 %v827
        %886 = vmatpush.msra.mxu0 %v826
        %887 = vmatpush.msra.mxu0 %v825
        %888 = vmatpush.msra.mxu0 %v824
        %889 = vmatpush.msra.mxu0 %v823
        %890 = vmatpush.msra.mxu0 %v822
        %891 = vmatpush.msra.mxu0 %v821
        %892 = vmatpush.msra.mxu0 %v820
        %893 = vmatpush.msra.mxu0 %v819
        %894 = vmatpush.msra.mxu0 %v818
        %895 = vmatpush.msra.mxu0 %v817
        %896 = vmatmul.f32.gmra.mxu0 %v864
        %v897 = vpop.f32.mrf.mxu0
        %v898 = vadd.f32 0.0, %v897
        %899 = vmatmul.f32.gmra.mxu0 %v865
        %v900 = vpop.f32.mrf.mxu0
        %v901 = vadd.f32 0.0, %v900
        %902 = vmatmul.f32.gmra.mxu0 %v874
        %v903 = vpop.f32.mrf.mxu0
        %v904 = vadd.f32 0.0, %v903
        %905 = vmatmul.f32.gmra.mxu0 %v875
        %v906 = vpop.f32.mrf.mxu0
        %v907 = vadd.f32 0.0, %v906
        %908 = vdwg.mxu0
        %v913 = vrot.slane %v898, 2
        %v914 = vrot.slane %v898, 4
        %v915 = vrot.slane %v898, 6
        %v916 = vrot.slane %v901, 2
        %v917 = vrot.slane %v901, 4
        %v918 = vrot.slane %v901, 6
        %v919 = vrot.slane %v904, 2
        %v920 = vrot.slane %v904, 4
        %v921 = vrot.slane %v904, 6
        %v922 = vrot.slane %v907, 2
        %v923 = vrot.slane %v907, 4
        %v924 = vrot.slane %v907, 6
        %vm937 = vcmask 1041408
        %v938 = vsel %vm937, %v898, -inf
        %v939 = vrot.slane %v938, 4
        %v940 = vmax.f32 %v938, %v939
        %v941 = vrot.slane %v940, 2
        %v942 = vmax.f32 %v940, %v941
        %v943 = vrot.slane %v942, 1
        %v944 = vmax.f32 %v942, %v943
        %v945 = vsel %vm937, %v913, -inf
        %v946 = vrot.slane %v945, 4
        %v947 = vmax.f32 %v945, %v946
        %v948 = vrot.slane %v947, 2
        %v949 = vmax.f32 %v947, %v948
        %v950 = vrot.slane %v949, 1
        %v951 = vmax.f32 %v949, %v950
        %v952 = vsel %vm937, %v914, -inf
        %v953 = vrot.slane %v952, 4
        %v954 = vmax.f32 %v952, %v953
        %v955 = vrot.slane %v954, 2
        %v956 = vmax.f32 %v954, %v955
        %v957 = vrot.slane %v956, 1
        %v958 = vmax.f32 %v956, %v957
        %v959 = vsel %vm937, %v915, -inf
        %v960 = vrot.slane %v959, 4
        %v961 = vmax.f32 %v959, %v960
        %v962 = vrot.slane %v961, 2
        %v963 = vmax.f32 %v961, %v962
        %v964 = vrot.slane %v963, 1
        %v965 = vmax.f32 %v963, %v964
        %v966 = vsel %vm937, %v901, -inf
        %v967 = vrot.slane %v966, 4
        %v968 = vmax.f32 %v966, %v967
        %v969 = vrot.slane %v968, 2
        %v970 = vmax.f32 %v968, %v969
        %v971 = vrot.slane %v970, 1
        %v972 = vmax.f32 %v970, %v971
        %v973 = vsel %vm937, %v916, -inf
        %v974 = vrot.slane %v973, 4
        %v975 = vmax.f32 %v973, %v974
        %v976 = vrot.slane %v975, 2
        %v977 = vmax.f32 %v975, %v976
        %v978 = vrot.slane %v977, 1
        %v979 = vmax.f32 %v977, %v978
        %v980 = vsel %vm937, %v917, -inf
        %v981 = vrot.slane %v980, 4
        %v982 = vmax.f32 %v980, %v981
        %v983 = vrot.slane %v982, 2
        %v984 = vmax.f32 %v982, %v983
        %v985 = vrot.slane %v984, 1
        %v986 = vmax.f32 %v984, %v985
        %v987 = vsel %vm937, %v918, -inf
        %v988 = vrot.slane %v987, 4
        %v989 = vmax.f32 %v987, %v988
        %v990 = vrot.slane %v989, 2
        %v991 = vmax.f32 %v989, %v990
        %v992 = vrot.slane %v991, 1
        %v993 = vmax.f32 %v991, %v992
        %v994 = vsel %vm937, %v904, -inf
        %v995 = vrot.slane %v994, 4
        %v996 = vmax.f32 %v994, %v995
        %v997 = vrot.slane %v996, 2
        %v998 = vmax.f32 %v996, %v997
        %v999 = vrot.slane %v998, 1
        %v1000 = vmax.f32 %v998, %v999
        %v1001 = vsel %vm937, %v919, -inf
        %v1002 = vrot.slane %v1001, 4
        %v1003 = vmax.f32 %v1001, %v1002
        %v1004 = vrot.slane %v1003, 2
        %v1005 = vmax.f32 %v1003, %v1004
        %v1006 = vrot.slane %v1005, 1
        %v1007 = vmax.f32 %v1005, %v1006
        %v1008 = vsel %vm937, %v920, -inf
        %v1009 = vrot.slane %v1008, 4
        %v1010 = vmax.f32 %v1008, %v1009
        %v1011 = vrot.slane %v1010, 2
        %v1012 = vmax.f32 %v1010, %v1011
        %v1013 = vrot.slane %v1012, 1
        %v1014 = vmax.f32 %v1012, %v1013
        %v1015 = vsel %vm937, %v921, -inf
        %v1016 = vrot.slane %v1015, 4
        %v1017 = vmax.f32 %v1015, %v1016
        %v1018 = vrot.slane %v1017, 2
        %v1019 = vmax.f32 %v1017, %v1018
        %v1020 = vrot.slane %v1019, 1
        %v1021 = vmax.f32 %v1019, %v1020
        %v1022 = vsel %vm937, %v907, -inf
        %v1023 = vrot.slane %v1022, 4
        %v1024 = vmax.f32 %v1022, %v1023
        %v1025 = vrot.slane %v1024, 2
        %v1026 = vmax.f32 %v1024, %v1025
        %v1027 = vrot.slane %v1026, 1
        %v1028 = vmax.f32 %v1026, %v1027
        %v1029 = vsel %vm937, %v922, -inf
        %v1030 = vrot.slane %v1029, 4
        %v1031 = vmax.f32 %v1029, %v1030
        %v1032 = vrot.slane %v1031, 2
        %v1033 = vmax.f32 %v1031, %v1032
        %v1034 = vrot.slane %v1033, 1
        %v1035 = vmax.f32 %v1033, %v1034
        %v1036 = vsel %vm937, %v923, -inf
        %v1037 = vrot.slane %v1036, 4
        %v1038 = vmax.f32 %v1036, %v1037
        %v1039 = vrot.slane %v1038, 2
        %v1040 = vmax.f32 %v1038, %v1039
        %v1041 = vrot.slane %v1040, 1
        %v1042 = vmax.f32 %v1040, %v1041
        %v1043 = vsel %vm937, %v924, -inf
        %v1044 = vrot.slane %v1043, 4
        %v1045 = vmax.f32 %v1043, %v1044
        %v1046 = vrot.slane %v1045, 2
        %v1047 = vmax.f32 %v1045, %v1046
        %v1048 = vrot.slane %v1047, 1
        %v1049 = vmax.f32 %v1047, %v1048
        %v1050 = vsub.f32 %v898, %v944
        %v1051 = vsub.f32 %v913, %v951
        %v1052 = vsub.f32 %v914, %v958
        %v1053 = vsub.f32 %v915, %v965
        %v1054 = vsub.f32 %v901, %v972
        %v1055 = vsub.f32 %v916, %v979
        %v1056 = vsub.f32 %v917, %v986
        %v1057 = vsub.f32 %v918, %v993
        %v1058 = vsub.f32 %v904, %v1000
        %v1059 = vsub.f32 %v919, %v1007
        %v1060 = vsub.f32 %v920, %v1014
        %v1061 = vsub.f32 %v921, %v1021
        %v1062 = vsub.f32 %v907, %v1028
        %v1063 = vsub.f32 %v922, %v1035
        %v1064 = vsub.f32 %v923, %v1042
        %v1065 = vsub.f32 %v924, %v1049
        %v1066 = vmul.f32 %v1050, 1.442695
        %v1067 = vpow.pop %v1066
        %v1068 = vmul.f32 %v1051, 1.442695
        %v1069 = vpow.pop %v1068
        %v1070 = vmul.f32 %v1052, 1.442695
        %v1071 = vpow.pop %v1070
        %v1072 = vmul.f32 %v1053, 1.442695
        %v1073 = vpow.pop %v1072
        %v1074 = vmul.f32 %v1054, 1.442695
        %v1075 = vpow.pop %v1074
        %v1076 = vmul.f32 %v1055, 1.442695
        %v1077 = vpow.pop %v1076
        %v1078 = vmul.f32 %v1056, 1.442695
        %v1079 = vpow.pop %v1078
        %v1080 = vmul.f32 %v1057, 1.442695
        %v1081 = vpow.pop %v1080
        %v1082 = vmul.f32 %v1058, 1.442695
        %v1083 = vpow.pop %v1082
        %v1084 = vmul.f32 %v1059, 1.442695
        %v1085 = vpow.pop %v1084
        %v1086 = vmul.f32 %v1060, 1.442695
        %v1087 = vpow.pop %v1086
        %v1088 = vmul.f32 %v1061, 1.442695
        %v1089 = vpow.pop %v1088
        %v1090 = vmul.f32 %v1062, 1.442695
        %v1091 = vpow.pop %v1090
        %v1092 = vmul.f32 %v1063, 1.442695
        %v1093 = vpow.pop %v1092
        %v1094 = vmul.f32 %v1064, 1.442695
        %v1095 = vpow.pop %v1094
        %v1096 = vmul.f32 %v1065, 1.442695
        %v1097 = vpow.pop %v1096
        %v1098 = vsel %vm937, %v1067, 0.0
        %v1099 = vrot.slane %v1098, 4
        %v1100 = vadd.f32 %v1098, %v1099
        %v1101 = vrot.slane %v1100, 2
        %v1102 = vadd.f32 %v1100, %v1101
        %v1103 = vrot.slane %v1102, 1
        %v1104 = vadd.f32 %v1102, %v1103
        %v1105 = vsel %vm937, %v1069, 0.0
        %v1106 = vrot.slane %v1105, 4
        %v1107 = vadd.f32 %v1105, %v1106
        %v1108 = vrot.slane %v1107, 2
        %v1109 = vadd.f32 %v1107, %v1108
        %v1110 = vrot.slane %v1109, 1
        %v1111 = vadd.f32 %v1109, %v1110
        %v1112 = vsel %vm937, %v1071, 0.0
        %v1113 = vrot.slane %v1112, 4
        %v1114 = vadd.f32 %v1112, %v1113
        %v1115 = vrot.slane %v1114, 2
        %v1116 = vadd.f32 %v1114, %v1115
        %v1117 = vrot.slane %v1116, 1
        %v1118 = vadd.f32 %v1116, %v1117
        %v1119 = vsel %vm937, %v1073, 0.0
        %v1120 = vrot.slane %v1119, 4
        %v1121 = vadd.f32 %v1119, %v1120
        %v1122 = vrot.slane %v1121, 2
        %v1123 = vadd.f32 %v1121, %v1122
        %v1124 = vrot.slane %v1123, 1
        %v1125 = vadd.f32 %v1123, %v1124
        %v1126 = vsel %vm937, %v1075, 0.0
        %v1127 = vrot.slane %v1126, 4
        %v1128 = vadd.f32 %v1126, %v1127
        %v1129 = vrot.slane %v1128, 2
        %v1130 = vadd.f32 %v1128, %v1129
        %v1131 = vrot.slane %v1130, 1
        %v1132 = vadd.f32 %v1130, %v1131
        %v1133 = vsel %vm937, %v1077, 0.0
        %v1134 = vrot.slane %v1133, 4
        %v1135 = vadd.f32 %v1133, %v1134
        %v1136 = vrot.slane %v1135, 2
        %v1137 = vadd.f32 %v1135, %v1136
        %v1138 = vrot.slane %v1137, 1
        %v1139 = vadd.f32 %v1137, %v1138
        %v1140 = vsel %vm937, %v1079, 0.0
        %v1141 = vrot.slane %v1140, 4
        %v1142 = vadd.f32 %v1140, %v1141
        %v1143 = vrot.slane %v1142, 2
        %v1144 = vadd.f32 %v1142, %v1143
        %v1145 = vrot.slane %v1144, 1
        %v1146 = vadd.f32 %v1144, %v1145
        %v1147 = vsel %vm937, %v1081, 0.0
        %v1148 = vrot.slane %v1147, 4
        %v1149 = vadd.f32 %v1147, %v1148
        %v1150 = vrot.slane %v1149, 2
        %v1151 = vadd.f32 %v1149, %v1150
        %v1152 = vrot.slane %v1151, 1
        %v1153 = vadd.f32 %v1151, %v1152
        %v1154 = vsel %vm937, %v1083, 0.0
        %v1155 = vrot.slane %v1154, 4
        %v1156 = vadd.f32 %v1154, %v1155
        %v1157 = vrot.slane %v1156, 2
        %v1158 = vadd.f32 %v1156, %v1157
        %v1159 = vrot.slane %v1158, 1
        %v1160 = vadd.f32 %v1158, %v1159
        %v1161 = vsel %vm937, %v1085, 0.0
        %v1162 = vrot.slane %v1161, 4
        %v1163 = vadd.f32 %v1161, %v1162
        %v1164 = vrot.slane %v1163, 2
        %v1165 = vadd.f32 %v1163, %v1164
        %v1166 = vrot.slane %v1165, 1
        %v1167 = vadd.f32 %v1165, %v1166
        %v1168 = vsel %vm937, %v1087, 0.0
        %v1169 = vrot.slane %v1168, 4
        %v1170 = vadd.f32 %v1168, %v1169
        %v1171 = vrot.slane %v1170, 2
        %v1172 = vadd.f32 %v1170, %v1171
        %v1173 = vrot.slane %v1172, 1
        %v1174 = vadd.f32 %v1172, %v1173
        %v1175 = vsel %vm937, %v1089, 0.0
        %v1176 = vrot.slane %v1175, 4
        %v1177 = vadd.f32 %v1175, %v1176
        %v1178 = vrot.slane %v1177, 2
        %v1179 = vadd.f32 %v1177, %v1178
        %v1180 = vrot.slane %v1179, 1
        %v1181 = vadd.f32 %v1179, %v1180
        %v1182 = vsel %vm937, %v1091, 0.0
        %v1183 = vrot.slane %v1182, 4
        %v1184 = vadd.f32 %v1182, %v1183
        %v1185 = vrot.slane %v1184, 2
        %v1186 = vadd.f32 %v1184, %v1185
        %v1187 = vrot.slane %v1186, 1
        %v1188 = vadd.f32 %v1186, %v1187
        %v1189 = vsel %vm937, %v1093, 0.0
        %v1190 = vrot.slane %v1189, 4
        %v1191 = vadd.f32 %v1189, %v1190
        %v1192 = vrot.slane %v1191, 2
        %v1193 = vadd.f32 %v1191, %v1192
        %v1194 = vrot.slane %v1193, 1
        %v1195 = vadd.f32 %v1193, %v1194
        %v1196 = vsel %vm937, %v1095, 0.0
        %v1197 = vrot.slane %v1196, 4
        %v1198 = vadd.f32 %v1196, %v1197
        %v1199 = vrot.slane %v1198, 2
        %v1200 = vadd.f32 %v1198, %v1199
        %v1201 = vrot.slane %v1200, 1
        %v1202 = vadd.f32 %v1200, %v1201
        %v1203 = vsel %vm937, %v1097, 0.0
        %v1204 = vrot.slane %v1203, 4
        %v1205 = vadd.f32 %v1203, %v1204
        %v1206 = vrot.slane %v1205, 2
        %v1207 = vadd.f32 %v1205, %v1206
        %v1208 = vrot.slane %v1207, 1
        %v1209 = vadd.f32 %v1207, %v1208
        %v1210 = vrcp.pop %v1104
        %v1211 = vrcp.pop %v1111
        %v1212 = vrcp.pop %v1118
        %v1213 = vrcp.pop %v1125
        %v1214 = vrcp.pop %v1132
        %v1215 = vrcp.pop %v1139
        %v1216 = vrcp.pop %v1146
        %v1217 = vrcp.pop %v1153
        %v1218 = vrcp.pop %v1160
        %v1219 = vrcp.pop %v1167
        %v1220 = vrcp.pop %v1174
        %v1221 = vrcp.pop %v1181
        %v1222 = vrcp.pop %v1188
        %v1223 = vrcp.pop %v1195
        %v1224 = vrcp.pop %v1202
        %v1225 = vrcp.pop %v1209
        %v1226 = vmul.f32 %v1067, %v1210
        %v1227 = vmul.f32 %v1069, %v1211
        %v1228 = vmul.f32 %v1071, %v1212
        %v1229 = vmul.f32 %v1073, %v1213
        %v1230 = vmul.f32 %v1075, %v1214
        %v1231 = vmul.f32 %v1077, %v1215
        %v1232 = vmul.f32 %v1079, %v1216
        %v1233 = vmul.f32 %v1081, %v1217
        %v1234 = vmul.f32 %v1083, %v1218
        %v1235 = vmul.f32 %v1085, %v1219
        %v1236 = vmul.f32 %v1087, %v1220
        %v1237 = vmul.f32 %v1089, %v1221
        %v1238 = vmul.f32 %v1091, %v1222
        %v1239 = vmul.f32 %v1093, %v1223
        %v1240 = vmul.f32 %v1095, %v1224
        %v1241 = vmul.f32 %v1097, %v1225
        %v1244 = vrot.slane %v734, 2
        %v1245 = vrot.slane %v734, 4
        %v1246 = vrot.slane %v734, 6
        %v1247 = vrot.slane %v737, 2
        %v1248 = vrot.slane %v737, 4
        %v1249 = vrot.slane %v737, 6
        %v1256 = vmul.f32 %v1226, %v734
        %v1257 = vmul.f32 %v1227, %v734
        %v1258 = vmul.f32 %v1228, %v1244
        %v1259 = vmul.f32 %v1229, %v1244
        %v1260 = vmul.f32 %v1230, %v1245
        %v1261 = vmul.f32 %v1231, %v1245
        %v1262 = vmul.f32 %v1232, %v1246
        %v1263 = vmul.f32 %v1233, %v1246
        %v1264 = vmul.f32 %v1234, %v737
        %v1265 = vmul.f32 %v1235, %v737
        %v1266 = vmul.f32 %v1236, %v1247
        %v1267 = vmul.f32 %v1237, %v1247
        %v1268 = vmul.f32 %v1238, %v1248
        %v1269 = vmul.f32 %v1239, %v1248
        %v1270 = vmul.f32 %v1240, %v1249
        %v1271 = vmul.f32 %v1241, %v1249
        %v1272 = vsel %vm937, %v1256, 0.0
        %v1273 = vrot.slane %v1272, 4
        %v1274 = vadd.f32 %v1272, %v1273
        %v1275 = vrot.slane %v1274, 2
        %v1276 = vadd.f32 %v1274, %v1275
        %v1277 = vrot.slane %v1276, 1
        %v1278 = vadd.f32 %v1276, %v1277
        %v1279 = vsel %vm937, %v1257, 0.0
        %v1280 = vrot.slane %v1279, 4
        %v1281 = vadd.f32 %v1279, %v1280
        %v1282 = vrot.slane %v1281, 2
        %v1283 = vadd.f32 %v1281, %v1282
        %v1284 = vrot.slane %v1283, 1
        %v1285 = vadd.f32 %v1283, %v1284
        %v1286 = vsel %vm937, %v1258, 0.0
        %v1287 = vrot.slane %v1286, 4
        %v1288 = vadd.f32 %v1286, %v1287
        %v1289 = vrot.slane %v1288, 2
        %v1290 = vadd.f32 %v1288, %v1289
        %v1291 = vrot.slane %v1290, 1
        %v1292 = vadd.f32 %v1290, %v1291
        %v1293 = vsel %vm937, %v1259, 0.0
        %v1294 = vrot.slane %v1293, 4
        %v1295 = vadd.f32 %v1293, %v1294
        %v1296 = vrot.slane %v1295, 2
        %v1297 = vadd.f32 %v1295, %v1296
        %v1298 = vrot.slane %v1297, 1
        %v1299 = vadd.f32 %v1297, %v1298
        %v1300 = vsel %vm937, %v1260, 0.0
        %v1301 = vrot.slane %v1300, 4
        %v1302 = vadd.f32 %v1300, %v1301
        %v1303 = vrot.slane %v1302, 2
        %v1304 = vadd.f32 %v1302, %v1303
        %v1305 = vrot.slane %v1304, 1
        %v1306 = vadd.f32 %v1304, %v1305
        %v1307 = vsel %vm937, %v1261, 0.0
        %v1308 = vrot.slane %v1307, 4
        %v1309 = vadd.f32 %v1307, %v1308
        %v1310 = vrot.slane %v1309, 2
        %v1311 = vadd.f32 %v1309, %v1310
        %v1312 = vrot.slane %v1311, 1
        %v1313 = vadd.f32 %v1311, %v1312
        %v1314 = vsel %vm937, %v1262, 0.0
        %v1315 = vrot.slane %v1314, 4
        %v1316 = vadd.f32 %v1314, %v1315
        %v1317 = vrot.slane %v1316, 2
        %v1318 = vadd.f32 %v1316, %v1317
        %v1319 = vrot.slane %v1318, 1
        %v1320 = vadd.f32 %v1318, %v1319
        %v1321 = vsel %vm937, %v1263, 0.0
        %v1322 = vrot.slane %v1321, 4
        %v1323 = vadd.f32 %v1321, %v1322
        %v1324 = vrot.slane %v1323, 2
        %v1325 = vadd.f32 %v1323, %v1324
        %v1326 = vrot.slane %v1325, 1
        %v1327 = vadd.f32 %v1325, %v1326
        %v1328 = vsel %vm937, %v1264, 0.0
        %v1329 = vrot.slane %v1328, 4
        %v1330 = vadd.f32 %v1328, %v1329
        %v1331 = vrot.slane %v1330, 2
        %v1332 = vadd.f32 %v1330, %v1331
        %v1333 = vrot.slane %v1332, 1
        %v1334 = vadd.f32 %v1332, %v1333
        %v1335 = vsel %vm937, %v1265, 0.0
        %v1336 = vrot.slane %v1335, 4
        %v1337 = vadd.f32 %v1335, %v1336
        %v1338 = vrot.slane %v1337, 2
        %v1339 = vadd.f32 %v1337, %v1338
        %v1340 = vrot.slane %v1339, 1
        %v1341 = vadd.f32 %v1339, %v1340
        %v1342 = vsel %vm937, %v1266, 0.0
        %v1343 = vrot.slane %v1342, 4
        %v1344 = vadd.f32 %v1342, %v1343
        %v1345 = vrot.slane %v1344, 2
        %v1346 = vadd.f32 %v1344, %v1345
        %v1347 = vrot.slane %v1346, 1
        %v1348 = vadd.f32 %v1346, %v1347
        %v1349 = vsel %vm937, %v1267, 0.0
        %v1350 = vrot.slane %v1349, 4
        %v1351 = vadd.f32 %v1349, %v1350
        %v1352 = vrot.slane %v1351, 2
        %v1353 = vadd.f32 %v1351, %v1352
        %v1354 = vrot.slane %v1353, 1
        %v1355 = vadd.f32 %v1353, %v1354
        %v1356 = vsel %vm937, %v1268, 0.0
        %v1357 = vrot.slane %v1356, 4
        %v1358 = vadd.f32 %v1356, %v1357
        %v1359 = vrot.slane %v1358, 2
        %v1360 = vadd.f32 %v1358, %v1359
        %v1361 = vrot.slane %v1360, 1
        %v1362 = vadd.f32 %v1360, %v1361
        %v1363 = vsel %vm937, %v1269, 0.0
        %v1364 = vrot.slane %v1363, 4
        %v1365 = vadd.f32 %v1363, %v1364
        %v1366 = vrot.slane %v1365, 2
        %v1367 = vadd.f32 %v1365, %v1366
        %v1368 = vrot.slane %v1367, 1
        %v1369 = vadd.f32 %v1367, %v1368
        %v1370 = vsel %vm937, %v1270, 0.0
        %v1371 = vrot.slane %v1370, 4
        %v1372 = vadd.f32 %v1370, %v1371
        %v1373 = vrot.slane %v1372, 2
        %v1374 = vadd.f32 %v1372, %v1373
        %v1375 = vrot.slane %v1374, 1
        %v1376 = vadd.f32 %v1374, %v1375
        %v1377 = vsel %vm937, %v1271, 0.0
        %v1378 = vrot.slane %v1377, 4
        %v1379 = vadd.f32 %v1377, %v1378
        %v1380 = vrot.slane %v1379, 2
        %v1381 = vadd.f32 %v1379, %v1380
        %v1382 = vrot.slane %v1381, 1
        %v1383 = vadd.f32 %v1381, %v1382
        %v1384 = vld [vmem:[#allocation2] sm:$0xf]
        %v1385 = vld [vmem:[#allocation2 + $0x4] sm:$0xf]
        %v1386 = vld [vmem:[#allocation2 + $0x8] sm:$0xf]
        %v1387 = vld [vmem:[#allocation2 + $0xc] sm:$0xf]
        %v1388 = vld [vmem:[#allocation2 + $0x10] sm:$0xf]
        %v1389 = vld [vmem:[#allocation2 + $0x14] sm:$0xf]
        %v1390 = vld [vmem:[#allocation2 + $0x18] sm:$0xf]
        %v1391 = vld [vmem:[#allocation2 + $0x1c] sm:$0xf]
        %v1392 = vld [vmem:[#allocation2 + $0x20] sm:$0xf]
        %v1393 = vld [vmem:[#allocation2 + $0x24] sm:$0xf]
        %v1394 = vld [vmem:[#allocation2 + $0x28] sm:$0xf]
        %v1395 = vld [vmem:[#allocation2 + $0x2c] sm:$0xf]
        %v1396 = vld [vmem:[#allocation2 + $0x30] sm:$0xf]
        %v1397 = vld [vmem:[#allocation2 + $0x34] sm:$0xf]
        %v1398 = vld [vmem:[#allocation2 + $0x38] sm:$0xf]
        %v1399 = vld [vmem:[#allocation2 + $0x3c] sm:$0xf]
        %v1400 = vunpack.c.l.bf16 %v1384
        %v1401 = vunpack.c.l.bf16 %v1385
        %v1402 = vunpack.c.l.bf16 %v1386
        %v1403 = vunpack.c.l.bf16 %v1387
        %v1404 = vunpack.c.l.bf16 %v1388
        %v1405 = vunpack.c.l.bf16 %v1389
        %v1406 = vunpack.c.l.bf16 %v1390
        %v1407 = vunpack.c.l.bf16 %v1391
        %v1408 = vunpack.c.l.bf16 %v1392
        %v1409 = vunpack.c.l.bf16 %v1393
        %v1410 = vunpack.c.l.bf16 %v1394
        %v1411 = vunpack.c.l.bf16 %v1395
        %v1412 = vunpack.c.l.bf16 %v1396
        %v1413 = vunpack.c.l.bf16 %v1397
        %v1414 = vunpack.c.l.bf16 %v1398
        %v1415 = vunpack.c.l.bf16 %v1399
        %v1416 = vld [vmem:[%s7] sm:$0x1]
        %v1418 = vperm.slane %v1416, 0
        %vm1436 = vcmask 1041409
        %v1437 = vsel %vm1436, %v1285, %v1278
        %vm1438 = vcmask 1042434
        %v1439 = vsel %vm1438, %v1292, %v1437
        %vm1440 = vcmask 1043459
        %v1441 = vsel %vm1440, %v1299, %v1439
        %vm1442 = vcmask 1044484
        %v1443 = vsel %vm1442, %v1306, %v1441
        %vm1444 = vcmask 1045509
        %v1445 = vsel %vm1444, %v1313, %v1443
        %vm1446 = vcmask 1046534
        %v1447 = vsel %vm1446, %v1320, %v1445
        %vm1448 = vcmask 1047559
        %v1449 = vsel %vm1448, %v1327, %v1447
        %v1450 = vsel %vm1436, %v1341, %v1334
        %v1451 = vsel %vm1438, %v1348, %v1450
        %v1452 = vsel %vm1440, %v1355, %v1451
        %v1453 = vsel %vm1442, %v1362, %v1452
        %v1454 = vsel %vm1444, %v1369, %v1453
        %v1455 = vsel %vm1446, %v1376, %v1454
        %v1456 = vsel %vm1448, %v1383, %v1455
        %1459 = vmatpush.msra.mxu0 %v1415
        %1460 = vmatpush.msra.mxu0 %v1414
        %1461 = vmatpush.msra.mxu0 %v1413
        %1462 = vmatpush.msra.mxu0 %v1412
        %1463 = vmatpush.msra.mxu0 %v1411
        %1464 = vmatpush.msra.mxu0 %v1410
        %1465 = vmatpush.msra.mxu0 %v1409
        %1466 = vmatpush.msra.mxu0 %v1408
        %1467 = vmatpush.msra.mxu0 %v1407
        %1468 = vmatpush.msra.mxu0 %v1406
        %1469 = vmatpush.msra.mxu0 %v1405
        %1470 = vmatpush.msra.mxu0 %v1404
        %1471 = vmatpush.msra.mxu0 %v1403
        %1472 = vmatpush.msra.mxu0 %v1402
        %1473 = vmatpush.msra.mxu0 %v1401
        %1474 = vmatpush.msra.mxu0 %v1400
        %1475 = vmatmul.f32.gmra.mxu0 %v1449
        %v1476 = vpop.f32.mrf.mxu0
        %v1477 = vadd.f32 %v1418, %v1476
        %1478 = vmatmul.f32.gmra.mxu0 %v1456
        %v1479 = vpop.f32.mrf.mxu0
        %v1480 = vadd.f32 %v1418, %v1479
        %1481 = vdwg.mxu0
        %v1482 = vadd.f32 %v521, %v1477
        %v1483 = vadd.f32 %v522, %v1480
        %v1484 = vld [vmem:[%s8] sm:$0x1]
        %v1485 = vld [vmem:[%s9] sm:$0x1]
        %1486 = vadd.xlane.f32.xlu0 %v1482
        %v1487 = vpop.xlane.xlu0 %1486
        %1488 = vadd.xlane.f32.xlu0 %v1483
        %v1489 = vpop.xlane.xlu0 %1488
        %v1490 = vmul.f32 %v1487, 0.03125
        %v1491 = vmul.f32 %v1489, 0.03125
        %v1492 = vsub.f32 %v1482, %v1490
        %v1493 = vsub.f32 %v1483, %v1491
        %v1494 = vsel %vm537, %v1492, 0.0
        %v1495 = vsel %vm537, %v1493, 0.0
        %v1496 = vmul.f32 %v1494, %v1494
        %v1497 = vmul.f32 %v1495, %v1495
        %1498 = vadd.xlane.f32.xlu0 %v1496
        %v1499 = vpop.xlane.xlu0 %1498
        %1500 = vadd.xlane.f32.xlu0 %v1497
        %v1501 = vpop.xlane.xlu0 %1500
        %v1502 = vmul.f32 %v1499, 0.03125
        %v1503 = vmul.f32 %v1501, 0.03125
        %v1504 = vadd.f32 %v1502, 1e-05
        %v1505 = vadd.f32 %v1503, 1e-05
        %v1506 = vrsqrt.pop %v1504
        %v1507 = vmul.f32 %v1506, %v1504
        %v1508 = vmul.f32 %v1507, %v1506
        %v1509 = vmul.f32 0.5, %v1508
        %v1510 = vsub.f32 1.5, %v1509
        %v1511 = vmul.f32 %v1506, %v1510
        %vm1512 = vweird.f32 %v1504
        %vm1513 = vweird.f32 %v1506
        %vm1514 = vmor %vm1512, %vm1513
        %v1515 = vsel %vm1514, %v1506, %v1511
        %v1516 = vrsqrt.pop %v1505
        %v1517 = vmul.f32 %v1516, %v1505
        %v1518 = vmul.f32 %v1517, %v1516
        %v1519 = vmul.f32 0.5, %v1518
        %v1520 = vsub.f32 1.5, %v1519
        %v1521 = vmul.f32 %v1516, %v1520
        %vm1522 = vweird.f32 %v1505
        %vm1523 = vweird.f32 %v1516
        %vm1524 = vmor %vm1522, %vm1523
        %v1525 = vsel %vm1524, %v1516, %v1521
        %v1526 = vmul.f32 %v1494, %v1515
        %v1527 = vmul.f32 %v1495, %v1525
        %v1529 = vperm.slane %v1484, 0
        %v1531 = vmul.f32 %v1526, %v1529
        %v1532 = vmul.f32 %v1527, %v1529
        %v1534 = vperm.slane %v1485, 0
        %v1536 = vadd.f32 %v1531, %v1534
        %v1537 = vadd.f32 %v1532, %v1534
        %v1538 = vld [vmem:[#allocation4] sm:$0xf]
        %v1539 = vld [vmem:[#allocation4 + $0x4] sm:$0xf]
        %v1540 = vld [vmem:[#allocation4 + $0x8] sm:$0xf]
        %v1541 = vld [vmem:[#allocation4 + $0xc] sm:$0xf]
        %v1542 = vld [vmem:[#allocation4 + $0x10] sm:$0xf]
        %v1543 = vld [vmem:[#allocation4 + $0x14] sm:$0xf]
        %v1544 = vld [vmem:[#allocation4 + $0x18] sm:$0xf]
        %v1545 = vld [vmem:[#allocation4 + $0x1c] sm:$0xf]
        %v1546 = vld [vmem:[#allocation4 + $0x20] sm:$0xf]
        %v1547 = vld [vmem:[#allocation4 + $0x24] sm:$0xf]
        %v1548 = vld [vmem:[#allocation4 + $0x28] sm:$0xf]
        %v1549 = vld [vmem:[#allocation4 + $0x2c] sm:$0xf]
        %v1550 = vld [vmem:[#allocation4 + $0x30] sm:$0xf]
        %v1551 = vld [vmem:[#allocation4 + $0x34] sm:$0xf]
        %v1552 = vld [vmem:[#allocation4 + $0x38] sm:$0xf]
        %v1553 = vld [vmem:[#allocation4 + $0x3c] sm:$0xf]
        %v1554 = vunpack.c.l.bf16 %v1538
        %v1555 = vunpack.c.l.bf16 %v1539
        %v1556 = vunpack.c.l.bf16 %v1540
        %v1557 = vunpack.c.l.bf16 %v1541
        %v1558 = vunpack.c.l.bf16 %v1542
        %v1559 = vunpack.c.l.bf16 %v1543
        %v1560 = vunpack.c.l.bf16 %v1544
        %v1561 = vunpack.c.l.bf16 %v1545
        %v1562 = vunpack.c.l.bf16 %v1546
        %v1563 = vunpack.c.l.bf16 %v1547
        %v1564 = vunpack.c.l.bf16 %v1548
        %v1565 = vunpack.c.l.bf16 %v1549
        %v1566 = vunpack.c.l.bf16 %v1550
        %v1567 = vunpack.c.l.bf16 %v1551
        %v1568 = vunpack.c.l.bf16 %v1552
        %v1569 = vunpack.c.l.bf16 %v1553
        %v1570 = vld [vmem:[%s11] sm:$0x1]
        %v1572 = vperm.slane %v1570, 0
        %1574 = vmatpush.msra.mxu0 %v1569
        %1575 = vmatpush.msra.mxu0 %v1568
        %1576 = vmatpush.msra.mxu0 %v1567
        %1577 = vmatpush.msra.mxu0 %v1566
        %1578 = vmatpush.msra.mxu0 %v1565
        %1579 = vmatpush.msra.mxu0 %v1564
        %1580 = vmatpush.msra.mxu0 %v1563
        %1581 = vmatpush.msra.mxu0 %v1562
        %1582 = vmatpush.msra.mxu0 %v1561
        %1583 = vmatpush.msra.mxu0 %v1560
        %1584 = vmatpush.msra.mxu0 %v1559
        %1585 = vmatpush.msra.mxu0 %v1558
        %1586 = vmatpush.msra.mxu0 %v1557
        %1587 = vmatpush.msra.mxu0 %v1556
        %1588 = vmatpush.msra.mxu0 %v1555
        %1589 = vmatpush.msra.mxu0 %v1554
        %1590 = vmatmul.f32.gmra.mxu0 %v1536
        %v1591 = vpop.f32.mrf.mxu0
        %v1592 = vadd.f32 %v1572, %v1591
        %1593 = vmatmul.f32.gmra.mxu0 %v1537
        %v1594 = vpop.f32.mrf.mxu0
        %v1595 = vadd.f32 %v1572, %v1594
        %1596 = vdwg.mxu0
        %v1597 = vmul.f32 %v1592, 0.5
        %v1598 = vmul.f32 %v1595, 0.5
        %v1599 = vmul.f32 %v1592, 0.70710677
        %v1600 = vmul.f32 %v1595, 0.70710677
        %v1601 = vmul.f32 %v1599, %v1599
        %v1602 = vmin.f32 16.0, %v1601
        %v1603 = vmul.f32 %v1602, 2.1237322e-06
        %v1604 = vadd.f32 %v1603, 0.00028619796
        %v1605 = vmul.f32 %v1602, %v1604
        %v1606 = vadd.f32 %v1605, 0.0036580483
        %v1607 = vmul.f32 %v1602, %v1606
        %v1608 = vadd.f32 %v1607, 0.05243302
        %v1609 = vmul.f32 %v1602, %v1608
        %v1610 = vadd.f32 %v1609, 0.18741608
        %v1611 = vmul.f32 %v1602, %v1610
        %v1612 = vadd.f32 %v1611, 1.1283791
        %v1613 = vmul.f32 %v1599, %v1612
        %v1614 = vmul.f32 %v1602, 3.8918573e-05
        %v1615 = vadd.f32 %v1614, 0.001143296
        %v1616 = vmul.f32 %v1602, %v1615
        %v1617 = vadd.f32 %v1616, 0.014752088
        %v1618 = vmul.f32 %v1602, %v1617
        %v1619 = vadd.f32 %v1618, 0.112945676
        %v1620 = vmul.f32 %v1602, %v1619
        %v1621 = vadd.f32 %v1620, 0.4994258
        %v1622 = vmul.f32 %v1602, %v1621
        %v1623 = vadd.f32 %v1622, 1.0
        %v1624 = vrcp.pop %v1623
        %v1625 = vmul.f32 %v1623, %v1624
        %v1626 = vsub.f32 1.0, %v1625
        %v1627 = vmul.f32 %v1624, %v1626
        %v1628 = vadd.f32 %v1624, %v1627
        %vm1629 = vweird.f32 %v1623
        %vm1630 = vweird.f32 %v1624
        %vm1631 = vmor %vm1629, %vm1630
        %v1632 = vsel %vm1631, %v1624, %v1628
        %v1633 = vand.u32 2147483647, %v1623
        %vm1634 = vcmp.eq.f32.partialorder %v1633, 8.507059e+37
        %v1635 = vand.u32 %v1623, 2147483648
        %v1636 = vor.u32 1.1754944e-38, %v1635
        %v1637 = vsel %vm1634, %v1636, %v1632
        %v1638 = vmul.f32 %v1613, %v1637
        %v1639 = vmin.f32 %v1638, 1.0
        %v1640 = vmax.f32 %v1639, -1.0
        %v1641 = vmul.f32 %v1600, %v1600
        %v1642 = vmin.f32 16.0, %v1641
        %v1643 = vmul.f32 %v1642, 2.1237322e-06
        %v1644 = vadd.f32 %v1643, 0.00028619796
        %v1645 = vmul.f32 %v1642, %v1644
        %v1646 = vadd.f32 %v1645, 0.0036580483
        %v1647 = vmul.f32 %v1642, %v1646
        %v1648 = vadd.f32 %v1647, 0.05243302
        %v1649 = vmul.f32 %v1642, %v1648
        %v1650 = vadd.f32 %v1649, 0.18741608
        %v1651 = vmul.f32 %v1642, %v1650
        %v1652 = vadd.f32 %v1651, 1.1283791
        %v1653 = vmul.f32 %v1600, %v1652
        %v1654 = vmul.f32 %v1642, 3.8918573e-05
        %v1655 = vadd.f32 %v1654, 0.001143296
        %v1656 = vmul.f32 %v1642, %v1655
        %v1657 = vadd.f32 %v1656, 0.014752088
        %v1658 = vmul.f32 %v1642, %v1657
        %v1659 = vadd.f32 %v1658, 0.112945676
        %v1660 = vmul.f32 %v1642, %v1659
        %v1661 = vadd.f32 %v1660, 0.4994258
        %v1662 = vmul.f32 %v1642, %v1661
        %v1663 = vadd.f32 %v1662, 1.0
        %v1664 = vrcp.pop %v1663
        %v1665 = vmul.f32 %v1663, %v1664
        %v1666 = vsub.f32 1.0, %v1665
        %v1667 = vmul.f32 %v1664, %v1666
        %v1668 = vadd.f32 %v1664, %v1667
        %vm1669 = vweird.f32 %v1663
        %vm1670 = vweird.f32 %v1664
        %vm1671 = vmor %vm1669, %vm1670
        %v1672 = vsel %vm1671, %v1664, %v1668
        %v1673 = vand.u32 2147483647, %v1663
        %vm1674 = vcmp.eq.f32.partialorder %v1673, 8.507059e+37
        %v1675 = vand.u32 %v1663, 2147483648
        %v1676 = vor.u32 1.1754944e-38, %v1675
        %v1677 = vsel %vm1674, %v1676, %v1672
        %v1678 = vmul.f32 %v1653, %v1677
        %v1679 = vmin.f32 %v1678, 1.0
        %v1680 = vmax.f32 %v1679, -1.0
        %v1681 = vadd.f32 %v1640, 1.0
        %v1682 = vadd.f32 %v1680, 1.0
        %v1683 = vmul.f32 %v1597, %v1681
        %v1684 = vmul.f32 %v1598, %v1682
        %v1685 = vld [vmem:[#allocation6] sm:$0xf]
        %v1686 = vld [vmem:[#allocation6 + $0x4] sm:$0xf]
        %v1687 = vld [vmem:[#allocation6 + $0x8] sm:$0xf]
        %v1688 = vld [vmem:[#allocation6 + $0xc] sm:$0xf]
        %v1689 = vld [vmem:[#allocation6 + $0x10] sm:$0xf]
        %v1690 = vld [vmem:[#allocation6 + $0x14] sm:$0xf]
        %v1691 = vld [vmem:[#allocation6 + $0x18] sm:$0xf]
        %v1692 = vld [vmem:[#allocation6 + $0x1c] sm:$0xf]
        %v1693 = vld [vmem:[#allocation6 + $0x20] sm:$0xf]
        %v1694 = vld [vmem:[#allocation6 + $0x24] sm:$0xf]
        %v1695 = vld [vmem:[#allocation6 + $0x28] sm:$0xf]
        %v1696 = vld [vmem:[#allocation6 + $0x2c] sm:$0xf]
        %v1697 = vld [vmem:[#allocation6 + $0x30] sm:$0xf]
        %v1698 = vld [vmem:[#allocation6 + $0x34] sm:$0xf]
        %v1699 = vld [vmem:[#allocation6 + $0x38] sm:$0xf]
        %v1700 = vld [vmem:[#allocation6 + $0x3c] sm:$0xf]
        %v1701 = vunpack.c.l.bf16 %v1685
        %v1702 = vunpack.c.l.bf16 %v1686
        %v1703 = vunpack.c.l.bf16 %v1687
        %v1704 = vunpack.c.l.bf16 %v1688
        %v1705 = vunpack.c.l.bf16 %v1689
        %v1706 = vunpack.c.l.bf16 %v1690
        %v1707 = vunpack.c.l.bf16 %v1691
        %v1708 = vunpack.c.l.bf16 %v1692
        %v1709 = vunpack.c.l.bf16 %v1693
        %v1710 = vunpack.c.l.bf16 %v1694
        %v1711 = vunpack.c.l.bf16 %v1695
        %v1712 = vunpack.c.l.bf16 %v1696
        %v1713 = vunpack.c.l.bf16 %v1697
        %v1714 = vunpack.c.l.bf16 %v1698
        %v1715 = vunpack.c.l.bf16 %v1699
        %v1716 = vunpack.c.l.bf16 %v1700
        %v1717 = vld [vmem:[%s13] sm:$0x1]
        %v1719 = vperm.slane %v1717, 0
        %1721 = vmatpush.msra.mxu0 %v1716
        %1722 = vmatpush.msra.mxu0 %v1715
        %1723 = vmatpush.msra.mxu0 %v1714
        %1724 = vmatpush.msra.mxu0 %v1713
        %1725 = vmatpush.msra.mxu0 %v1712
        %1726 = vmatpush.msra.mxu0 %v1711
        %1727 = vmatpush.msra.mxu0 %v1710
        %1728 = vmatpush.msra.mxu0 %v1709
        %1729 = vmatpush.msra.mxu0 %v1708
        %1730 = vmatpush.msra.mxu0 %v1707
        %1731 = vmatpush.msra.mxu0 %v1706
        %1732 = vmatpush.msra.mxu0 %v1705
        %1733 = vmatpush.msra.mxu0 %v1704
        %1734 = vmatpush.msra.mxu0 %v1703
        %1735 = vmatpush.msra.mxu0 %v1702
        %1736 = vmatpush.msra.mxu0 %v1701
        %1737 = vmatmul.f32.gmra.mxu0 %v1683
        %v1738 = vpop.f32.mrf.mxu0
        %v1739 = vadd.f32 %v1719, %v1738
        %1740 = vmatmul.f32.gmra.mxu0 %v1684
        %v1741 = vpop.f32.mrf.mxu0
        %v1742 = vadd.f32 %v1719, %v1741
        %1743 = vdwg.mxu0
        %v1744 = vadd.f32 %v1482, %v1739
        %v1745 = vadd.f32 %v1483, %v1742
        %1746 = vst [vmem:[%s519] sm:$0xff] %v1744
        %1747 = vst [vmem:[%s519 + $0x8] sm:$0xff] %v1745
        %s1748 = smul.u32 2, %s27
        %p1749 = scmp.lt.s32.totalorder %s1748, 5
        %s1750 = scalar_select %p1749, %s1748, 5
        %s1751 = smul.addr %s1750, 8
        %s1752 = scalar_lea.vmem %s14, %s1751
        // Predicated region
        $region89: #{vit_forward.6} parent=75 // pred_check
          %p1753 = pneg %p344
        $region90: #{vit_forward.6} parent=75 // pred_check_branch
          %1755 = sbr.rel (%p1753) target = $region92
        $region91: #{vit_forward.6} parent=75 // pred_region
          %s1756 = smul.u32 2, %s27
        $region92: #{vit_forward.6} parent=75 // pred_fallthru
          _
      $region76: #{vit_forward.6} parent=5 // pred_fallthru
        _
      %p1757 = scmp.le.s32.totalorder 2, %s22
      // Predicated region
      $region93: #{vit_forward.6} parent=5 // pred_check
        %p1758 = pneg %p1757
      $region94: #{vit_forward.6} parent=5 // pred_check_branch
        %1760 = sbr.rel (%p1758) target = $region96
      $region95: #{vit_forward.6} parent=5 // pred_region
        %s1761 = ssub.s32 %s22, 2
        // Predicated region
        $region97: #{vit_forward.6} parent=95 // pred_check
          %p1762 = pneg %p350
        $region98: #{vit_forward.6} parent=95 // pred_check_branch
          %1764 = sbr.rel (%p1762) target = $region100
        $region99: #{vit_forward.6} parent=95 // pred_region
          %s1765 = smul.u32 2, %s28
          %p1766 = scmp.lt.s32.totalorder %s1765, 5
          %s1767 = scalar_select %p1766, %s1765, 5
          %s1768 = smul.addr %s1767, 8
          %s1769 = scalar_lea.vmem %s14, %s1768
        $region100: #{vit_forward.6} parent=95 // pred_fallthru
          _
      $region96: #{vit_forward.6} parent=5 // pred_fallthru
        _
    $region6: #{vit_forward.6} parent=1 // loop_footer
      %s26 = sadd.s32 1, %s22
    $region7: #{vit_forward.6} parent=1 // loop_footer_branch
      %21 = sbr.rel target = $region3
    $region8: #{vit_forward.6} parent=1 // loop_exit
      _
    %1770 = vsyncpa [#allocation3], 1
    %s1771 = scalar_lea.sflag [#allocation3], 1
    %1772 = vsyncpa %s1771, 1
    %1773 = vsyncpa [#allocation5], 1

// kernel: vit_forward.5
$region0: #{vit_forward.5}
  #allocation0 [shape = 'u32[]', space=smem, size = 0x4, offset = 0x4, fixed_abs, tag = 'smem constant byte address 0x4 - core index']
  #allocation1 [shape = 'u32[72,128]{1,0:T(1,128)}', space=vmem, size = 0x9000, scoped, tag = 'internal scratch']
  %s0 = inlined_call_operand.vmem [shape: f32[48,128], index: 0, kind: input, shape index: {}, may-alias: {0,14}]
  %s1 = inlined_call_operand.vmem [shape: f32[128,128], index: 1, kind: input, shape index: {}]
  %s2 = inlined_call_operand.vmem [shape: f32[1,128], index: 2, kind: input, shape index: {}]
  %s3 = inlined_call_operand.vmem [shape: f32[1,128], index: 3, kind: input, shape index: {}]
  %s4 = inlined_call_operand.vmem [shape: bf16[128,384], index: 4, kind: input, shape index: {}]
  %s5 = inlined_call_operand.vmem [shape: f32[1,384], index: 5, kind: input, shape index: {}]
  %s6 = inlined_call_operand.vmem [shape: bf16[128,128], index: 6, kind: input, shape index: {}]
  %s7 = inlined_call_operand.vmem [shape: f32[1,128], index: 7, kind: input, shape index: {}]
  %s8 = inlined_call_operand.vmem [shape: f32[1,128], index: 8, kind: input, shape index: {}]
  %s9 = inlined_call_operand.vmem [shape: f32[1,128], index: 9, kind: input, shape index: {}]
  %s10 = inlined_call_operand.hbm [shape: bf16[128,128], index: 10, kind: input, shape index: {}]
  %s11 = inlined_call_operand.vmem [shape: f32[1,128], index: 11, kind: input, shape index: {}]
  %s12 = inlined_call_operand.hbm [shape: bf16[128,128], index: 12, kind: input, shape index: {}]
  %s13 = inlined_call_operand.vmem [shape: f32[1,128], index: 13, kind: input, shape index: {}]
  %s14 = inlined_call_operand.vmem [shape: f32[48,128], index: 14, kind: output, shape index: {}, may-alias: {0,14}]
  %s15 = sld [smem:[#allocation0]]
  $region97: #{vit_forward.5} parent=0
    _
  %s17 = ssub.s32 1, %s15
  %s18 = scalar_select 0, %s17, %s15
  $region1: #{vit_forward.5} parent=0
    #allocation2 [shape = 'u8[32768]{0}', space=vmem, size = 0x8000, scoped, tag = 'input window, operand 10, single buffered']
    #allocation3 [shape = 's32[2]{0}', space=sflag, size = 0x8, scoped, tag = 'scoped memory for vit_forward.5']
    #allocation4 [shape = 'u8[32768]{0}', space=vmem, size = 0x8000, scoped, tag = 'input window, operand 12, single buffered']
    #allocation5 [shape = 's32[1]{0}', space=sflag, size = 0x4, scoped, tag = 'scoped memory for vit_forward.5']
    %19 = vsyncpa [#allocation3], 0
    %20 = vsyncpa [#allocation5], 0
    loop: start=0, step=1, limit=5
    $region2: #{vit_forward.5} parent=1 // loop_pre_header
      _
    $region3: #{vit_forward.5} parent=1 // loop_header
      %s22 = sphi 0, %s26
      %p23 = scmp.ge.s32.totalorder %s22, 5
      %s32 = sphi 0, %s34
      %s35 = sphi 0, %s32
      %s36 = sphi 0, %s35
      %s52 = sphi 0, %s36
      %s56 = sphi 0, %s56
      %s58 = sphi 0, %s56
      %s59 = sphi 0, %s58
      %s73 = sphi 0, %s59
      %s77 = sphi 0, %s77
      %s79 = sphi 0, %s77
      %s80 = sphi 0, %s79
      %s94 = sphi 0, %s80
      %s98 = sphi 0, %s98
      %s100 = sphi 0, %s98
      %s101 = sphi 0, %s100
      %s115 = sphi 0, %s101
      %s119 = sphi 0, %s119
      %s121 = sphi 0, %s119
      %s122 = sphi 0, %s121
      %s136 = sphi 0, %s122
      %s140 = sphi 0, %s140
      %s142 = sphi 0, %s140
      %s143 = sphi 0, %s142
      %s157 = sphi 0, %s143
      %s161 = sphi 0, %s161
      %s163 = sphi 0, %s161
      %s164 = sphi 0, %s163
      %s178 = sphi 0, %s164
      %s182 = sphi 0, %s182
      %s184 = sphi 0, %s182
      %s185 = sphi 0, %s184
      %s199 = sphi 0, %s185
      %s203 = sphi 0, %s203
      %s205 = sphi 0, %s203
      %s206 = sphi 0, %s205
      %s220 = sphi 0, %s206
      %s224 = sphi 0, %s224
      %s226 = sphi 0, %s224
      %s227 = sphi 0, %s226
      %s241 = sphi 0, %s227
      %s245 = sphi 0, %s245
      %s247 = sphi 0, %s245
      %s248 = sphi 0, %s247
      %s262 = sphi 0, %s248
      %s266 = sphi 0, %s266
      %s268 = sphi 0, %s266
      %s269 = sphi 0, %s268
      %s283 = sphi 0, %s269
      %s287 = sphi 0, %s287
      %s289 = sphi 0, %s287
      %s290 = sphi 0, %s289
      %s304 = sphi 0, %s290
      %s308 = sphi 0, %s308
      %s310 = sphi 0, %s308
      %s311 = sphi 0, %s310
      %s325 = sphi 0, %s311
      %s331 = sphi 0, %s333
      %s334 = sphi 0, %s331
      %s335 = sphi 0, %s334
      %s351 = sphi 0, %s335
    $region4: #{vit_forward.5} parent=1 // loop_header_branch
      %25 = sbr.rel (%p23) target = $region8
    $region5: #{vit_forward.5} parent=1 // loop_body
      %s27 = ssub.s32 %s22, 1
      %s28 = ssub.s32 %s22, 2
      %s29 = sadd.s32 %s22, 1
      %s30 = ssub.s32 %s22, %s29
      %p31 = scmp.eq.s32.totalorder %s30, 0
      %s33 = sadd.s32 %s32, 1
      %s34 = scalar_select %p31, %s32, %s33
      %p37 = pneg %p31
      %p38 = scmp.eq.s32.totalorder %s22, 2
      %p39 = por %p37, %p38
      %p40 = scmp.ne.s32.totalorder %s32, %s35
      %p41 = scmp.eq.s32.totalorder %s22, 0
      %p42 = por %p40, %p41
      %p43 = scmp.ne.s32.totalorder %s32, %s35
      %p44 = scmp.eq.s32.totalorder %s27, 2
      %p45 = por %p43, %p44
      %p46 = scmp.ne.s32.totalorder %s35, %s36
      %p47 = scmp.eq.s32.totalorder %s27, 0
      %p48 = por %p46, %p47
      %p49 = scmp.ne.s32.totalorder %s35, %s36
      %p50 = scmp.eq.s32.totalorder %s28, 2
      %p51 = por %p49, %p50
      %p53 = scmp.ne.s32.totalorder %s36, %s52
      %p54 = scmp.eq.s32.totalorder %s28, 0
      %p55 = por %p53, %p54
      %s57 = sadd.s32 %s56, 1
      %p60 = scmp.eq.s32.totalorder %s22, 2
      %p61 = scmp.ne.s32.totalorder %s56, %s58
      %p62 = scmp.eq.s32.totalorder %s22, 0
      %p63 = por %p61, %p62
      %p64 = scmp.ne.s32.totalorder %s56, %s58
      %p65 = scmp.eq.s32.totalorder %s27, 2
      %p66 = por %p64, %p65
      %p67 = scmp.ne.s32.totalorder %s58, %s59
      %p68 = scmp.eq.s32.totalorder %s27, 0
      %p69 = por %p67, %p68
      %p70 = scmp.ne.s32.totalorder %s58, %s59
      %p71 = scmp.eq.s32.totalorder %s28, 2
      %p72 = por %p70, %p71
      %p74 = scmp.ne.s32.totalorder %s59, %s73
      %p75 = scmp.eq.s32.totalorder %s28, 0
      %p76 = por %p74, %p75
      %s78 = sadd.s32 %s77, 1
      %p81 = scmp.eq.s32.totalorder %s22, 2
      %p82 = scmp.ne.s32.totalorder %s77, %s79
      %p83 = scmp.eq.s32.totalorder %s22, 0
      %p84 = por %p82, %p83
      %p85 = scmp.ne.s32.totalorder %s77, %s79
      %p86 = scmp.eq.s32.totalorder %s27, 2
      %p87 = por %p85, %p86
      %p88 = scmp.ne.s32.totalorder %s79, %s80
      %p89 = scmp.eq.s32.totalorder %s27, 0
      %p90 = por %p88, %p89
      %p91 = scmp.ne.s32.totalorder %s79, %s80
      %p92 = scmp.eq.s32.totalorder %s28, 2
      %p93 = por %p91, %p92
      %p95 = scmp.ne.s32.totalorder %s80, %s94
      %p96 = scmp.eq.s32.totalorder %s28, 0
      %p97 = por %p95, %p96
      %s99 = sadd.s32 %s98, 1
      %p102 = scmp.eq.s32.totalorder %s22, 2
      %p103 = scmp.ne.s32.totalorder %s98, %s100
      %p104 = scmp.eq.s32.totalorder %s22, 0
      %p105 = por %p103, %p104
      %p106 = scmp.ne.s32.totalorder %s98, %s100
      %p107 = scmp.eq.s32.totalorder %s27, 2
      %p108 = por %p106, %p107
      %p109 = scmp.ne.s32.totalorder %s100, %s101
      %p110 = scmp.eq.s32.totalorder %s27, 0
      %p111 = por %p109, %p110
      %p112 = scmp.ne.s32.totalorder %s100, %s101
      %p113 = scmp.eq.s32.totalorder %s28, 2
      %p114 = por %p112, %p113
      %p116 = scmp.ne.s32.totalorder %s101, %s115
      %p117 = scmp.eq.s32.totalorder %s28, 0
      %p118 = por %p116, %p117
      %s120 = sadd.s32 %s119, 1
      %p123 = scmp.eq.s32.totalorder %s22, 2
      %p124 = scmp.ne.s32.totalorder %s119, %s121
      %p125 = scmp.eq.s32.totalorder %s22, 0
      %p126 = por %p124, %p125
      %p127 = scmp.ne.s32.totalorder %s119, %s121
      %p128 = scmp.eq.s32.totalorder %s27, 2
      %p129 = por %p127, %p128
      %p130 = scmp.ne.s32.totalorder %s121, %s122
      %p131 = scmp.eq.s32.totalorder %s27, 0
      %p132 = por %p130, %p131
      %p133 = scmp.ne.s32.totalorder %s121, %s122
      %p134 = scmp.eq.s32.totalorder %s28, 2
      %p135 = por %p133, %p134
      %p137 = scmp.ne.s32.totalorder %s122, %s136
      %p138 = scmp.eq.s32.totalorder %s28, 0
      %p139 = por %p137, %p138
      %s141 = sadd.s32 %s140, 1
      %p144 = scmp.eq.s32.totalorder %s22, 2
      %p145 = scmp.ne.s32.totalorder %s140, %s142
      %p146 = scmp.eq.s32.totalorder %s22, 0
      %p147 = por %p145, %p146
      %p148 = scmp.ne.s32.totalorder %s140, %s142
      %p149 = scmp.eq.s32.totalorder %s27, 2
      %p150 = por %p148, %p149
      %p151 = scmp.ne.s32.totalorder %s142, %s143
      %p152 = scmp.eq.s32.totalorder %s27, 0
      %p153 = por %p151, %p152
      %p154 = scmp.ne.s32.totalorder %s142, %s143
      %p155 = scmp.eq.s32.totalorder %s28, 2
      %p156 = por %p154, %p155
      %p158 = scmp.ne.s32.totalorder %s143, %s157
      %p159 = scmp.eq.s32.totalorder %s28, 0
      %p160 = por %p158, %p159
      %s162 = sadd.s32 %s161, 1
      %p165 = scmp.eq.s32.totalorder %s22, 2
      %p166 = scmp.ne.s32.totalorder %s161, %s163
      %p167 = scmp.eq.s32.totalorder %s22, 0
      %p168 = por %p166, %p167
      %p169 = scmp.ne.s32.totalorder %s161, %s163
      %p170 = scmp.eq.s32.totalorder %s27, 2
      %p171 = por %p169, %p170
      %p172 = scmp.ne.s32.totalorder %s163, %s164
      %p173 = scmp.eq.s32.totalorder %s27, 0
      %p174 = por %p172, %p173
      %p175 = scmp.ne.s32.totalorder %s163, %s164
      %p176 = scmp.eq.s32.totalorder %s28, 2
      %p177 = por %p175, %p176
      %p179 = scmp.ne.s32.totalorder %s164, %s178
      %p180 = scmp.eq.s32.totalorder %s28, 0
      %p181 = por %p179, %p180
      %s183 = sadd.s32 %s182, 1
      %p186 = scmp.eq.s32.totalorder %s22, 2
      %p187 = scmp.ne.s32.totalorder %s182, %s184
      %p188 = scmp.eq.s32.totalorder %s22, 0
      %p189 = por %p187, %p188
      %p190 = scmp.ne.s32.totalorder %s182, %s184
      %p191 = scmp.eq.s32.totalorder %s27, 2
      %p192 = por %p190, %p191
      %p193 = scmp.ne.s32.totalorder %s184, %s185
      %p194 = scmp.eq.s32.totalorder %s27, 0
      %p195 = por %p193, %p194
      %p196 = scmp.ne.s32.totalorder %s184, %s185
      %p197 = scmp.eq.s32.totalorder %s28, 2
      %p198 = por %p196, %p197
      %p200 = scmp.ne.s32.totalorder %s185, %s199
      %p201 = scmp.eq.s32.totalorder %s28, 0
      %p202 = por %p200, %p201
      %s204 = sadd.s32 %s203, 1
      %p207 = scmp.eq.s32.totalorder %s22, 2
      %p208 = scmp.ne.s32.totalorder %s203, %s205
      %p209 = scmp.eq.s32.totalorder %s22, 0
      %p210 = por %p208, %p209
      %p211 = scmp.ne.s32.totalorder %s203, %s205
      %p212 = scmp.eq.s32.totalorder %s27, 2
      %p213 = por %p211, %p212
      %p214 = scmp.ne.s32.totalorder %s205, %s206
      %p215 = scmp.eq.s32.totalorder %s27, 0
      %p216 = por %p214, %p215
      %p217 = scmp.ne.s32.totalorder %s205, %s206
      %p218 = scmp.eq.s32.totalorder %s28, 2
      %p219 = por %p217, %p218
      %p221 = scmp.ne.s32.totalorder %s206, %s220
      %p222 = scmp.eq.s32.totalorder %s28, 0
      %p223 = por %p221, %p222
      %s225 = sadd.s32 %s224, 1
      %p228 = scmp.eq.s32.totalorder %s22, 2
      %p229 = scmp.ne.s32.totalorder %s224, %s226
      %p230 = scmp.eq.s32.totalorder %s22, 0
      %p231 = por %p229, %p230
      %p232 = scmp.ne.s32.totalorder %s224, %s226
      %p233 = scmp.eq.s32.totalorder %s27, 2
      %p234 = por %p232, %p233
      %p235 = scmp.ne.s32.totalorder %s226, %s227
      %p236 = scmp.eq.s32.totalorder %s27, 0
      %p237 = por %p235, %p236
      %p238 = scmp.ne.s32.totalorder %s226, %s227
      %p239 = scmp.eq.s32.totalorder %s28, 2
      %p240 = por %p238, %p239
      %p242 = scmp.ne.s32.totalorder %s227, %s241
      %p243 = scmp.eq.s32.totalorder %s28, 0
      %p244 = por %p242, %p243
      %s246 = sadd.s32 %s245, 1
      %p249 = scmp.eq.s32.totalorder %s22, 2
      %p250 = scmp.ne.s32.totalorder %s245, %s247
      %p251 = scmp.eq.s32.totalorder %s22, 0
      %p252 = por %p250, %p251
      %p253 = scmp.ne.s32.totalorder %s245, %s247
      %p254 = scmp.eq.s32.totalorder %s27, 2
      %p255 = por %p253, %p254
      %p256 = scmp.ne.s32.totalorder %s247, %s248
      %p257 = scmp.eq.s32.totalorder %s27, 0
      %p258 = por %p256, %p257
      %p259 = scmp.ne.s32.totalorder %s247, %s248
      %p260 = scmp.eq.s32.totalorder %s28, 2
      %p261 = por %p259, %p260
      %p263 = scmp.ne.s32.totalorder %s248, %s262
      %p264 = scmp.eq.s32.totalorder %s28, 0
      %p265 = por %p263, %p264
      %s267 = sadd.s32 %s266, 1
      %p270 = scmp.eq.s32.totalorder %s22, 2
      %p271 = scmp.ne.s32.totalorder %s266, %s268
      %p272 = scmp.eq.s32.totalorder %s22, 0
      %p273 = por %p271, %p272
      %p274 = scmp.ne.s32.totalorder %s266, %s268
      %p275 = scmp.eq.s32.totalorder %s27, 2
      %p276 = por %p274, %p275
      %p277 = scmp.ne.s32.totalorder %s268, %s269
      %p278 = scmp.eq.s32.totalorder %s27, 0
      %p279 = por %p277, %p278
      %p280 = scmp.ne.s32.totalorder %s268, %s269
      %p281 = scmp.eq.s32.totalorder %s28, 2
      %p282 = por %p280, %p281
      %p284 = scmp.ne.s32.totalorder %s269, %s283
      %p285 = scmp.eq.s32.totalorder %s28, 0
      %p286 = por %p284, %p285
      %s288 = sadd.s32 %s287, 1
      %p291 = scmp.eq.s32.totalorder %s22, 2
      %p292 = scmp.ne.s32.totalorder %s287, %s289
      %p293 = scmp.eq.s32.totalorder %s22, 0
      %p294 = por %p292, %p293
      %p295 = scmp.ne.s32.totalorder %s287, %s289
      %p296 = scmp.eq.s32.totalorder %s27, 2
      %p297 = por %p295, %p296
      %p298 = scmp.ne.s32.totalorder %s289, %s290
      %p299 = scmp.eq.s32.totalorder %s27, 0
      %p300 = por %p298, %p299
      %p301 = scmp.ne.s32.totalorder %s289, %s290
      %p302 = scmp.eq.s32.totalorder %s28, 2
      %p303 = por %p301, %p302
      %p305 = scmp.ne.s32.totalorder %s290, %s304
      %p306 = scmp.eq.s32.totalorder %s28, 0
      %p307 = por %p305, %p306
      %s309 = sadd.s32 %s308, 1
      %p312 = scmp.eq.s32.totalorder %s22, 2
      %p313 = scmp.ne.s32.totalorder %s308, %s310
      %p314 = scmp.eq.s32.totalorder %s22, 0
      %p315 = por %p313, %p314
      %p316 = scmp.ne.s32.totalorder %s308, %s310
      %p317 = scmp.eq.s32.totalorder %s27, 2
      %p318 = por %p316, %p317
      %p319 = scmp.ne.s32.totalorder %s310, %s311
      %p320 = scmp.eq.s32.totalorder %s27, 0
      %p321 = por %p319, %p320
      %p322 = scmp.ne.s32.totalorder %s310, %s311
      %p323 = scmp.eq.s32.totalorder %s28, 2
      %p324 = por %p322, %p323
      %p326 = scmp.ne.s32.totalorder %s311, %s325
      %p327 = scmp.eq.s32.totalorder %s28, 0
      %p328 = por %p326, %p327
      %s329 = ssub.s32 %s22, %s29
      %p330 = scmp.eq.s32.totalorder %s329, 0
      %s332 = sadd.s32 %s331, 1
      %s333 = scalar_select %p330, %s331, %s332
      %p336 = pneg %p330
      %p337 = scmp.eq.s32.totalorder %s22, 2
      %p338 = por %p336, %p337
      %p339 = scmp.ne.s32.totalorder %s331, %s334
      %p340 = scmp.eq.s32.totalorder %s22, 0
      %p341 = por %p339, %p340
      %p342 = scmp.ne.s32.totalorder %s331, %s334
      %p343 = scmp.eq.s32.totalorder %s27, 2
      %p344 = por %p342, %p343
      %p345 = scmp.ne.s32.totalorder %s334, %s335
      %p346 = scmp.eq.s32.totalorder %s27, 0
      %p347 = por %p345, %p346
      %p348 = scmp.ne.s32.totalorder %s334, %s335
      %p349 = scmp.eq.s32.totalorder %s28, 2
      %p350 = por %p348, %p349
      %p352 = scmp.ne.s32.totalorder %s335, %s351
      %p353 = scmp.eq.s32.totalorder %s28, 0
      %p354 = por %p352, %p353
      %p355 = scmp.le.s32.totalorder 1, %s22
      %p356 = scmp.lt.s32.totalorder %s22, 4
      %p357 = pnand %p355, %p356
      %p358 = pneg %p357
      // Predicated region
      $region9: #{vit_forward.5} parent=5 // pred_check
        _
      $region10: #{vit_forward.5} parent=5 // pred_check_branch
        %360 = sbr.rel (%p357) target = $region12
      $region11: #{vit_forward.5} parent=5 // pred_region
        %s361 = ssub.s32 %s22, 1
        // Predicated region
        $region13: #{vit_forward.5} parent=11 // pred_check
          %p362 = pneg %p69
        $region14: #{vit_forward.5} parent=11 // pred_check_branch
          %364 = sbr.rel (%p362) target = $region16
        $region15: #{vit_forward.5} parent=11 // pred_region
          _
        $region16: #{vit_forward.5} parent=11 // pred_fallthru
          _
        // Predicated region
        $region17: #{vit_forward.5} parent=11 // pred_check
          %p365 = pneg %p90
        $region18: #{vit_forward.5} parent=11 // pred_check_branch
          %367 = sbr.rel (%p365) target = $region20
        $region19: #{vit_forward.5} parent=11 // pred_region
          _
        $region20: #{vit_forward.5} parent=11 // pred_fallthru
          _
        // Predicated region
        $region21: #{vit_forward.5} parent=11 // pred_check
          %p368 = pneg %p111
        $region22: #{vit_forward.5} parent=11 // pred_check_branch
          %370 = sbr.rel (%p368) target = $region24
        $region23: #{vit_forward.5} parent=11 // pred_region
          _
        $region24: #{vit_forward.5} parent=11 // pred_fallthru
          _
        // Predicated region
        $region25: #{vit_forward.5} parent=11 // pred_check
          %p371 = pneg %p132
        $region26: #{vit_forward.5} parent=11 // pred_check_branch
          %373 = sbr.rel (%p371) target = $region28
        $region27: #{vit_forward.5} parent=11 // pred_region
          _
        $region28: #{vit_forward.5} parent=11 // pred_fallthru
          _
        // Predicated region
        $region29: #{vit_forward.5} parent=11 // pred_check
          %p374 = pneg %p153
        $region30: #{vit_forward.5} parent=11 // pred_check_branch
          %376 = sbr.rel (%p374) target = $region32
        $region31: #{vit_forward.5} parent=11 // pred_region
          _
        $region32: #{vit_forward.5} parent=11 // pred_fallthru
          _
        // Predicated region
        $region33: #{vit_forward.5} parent=11 // pred_check
          %p377 = pneg %p174
        $region34: #{vit_forward.5} parent=11 // pred_check_branch
          %379 = sbr.rel (%p377) target = $region36
        $region35: #{vit_forward.5} parent=11 // pred_region
          _
        $region36: #{vit_forward.5} parent=11 // pred_fallthru
          _
        // Predicated region
        $region37: #{vit_forward.5} parent=11 // pred_check
          %p380 = pneg %p195
        $region38: #{vit_forward.5} parent=11 // pred_check_branch
          %382 = sbr.rel (%p380) target = $region40
        $region39: #{vit_forward.5} parent=11 // pred_region
          _
        $region40: #{vit_forward.5} parent=11 // pred_fallthru
          _
        // Predicated region
        $region41: #{vit_forward.5} parent=11 // pred_check
          %p383 = pneg %p216
        $region42: #{vit_forward.5} parent=11 // pred_check_branch
          %385 = sbr.rel (%p383) target = $region44
        $region43: #{vit_forward.5} parent=11 // pred_region
          _
        $region44: #{vit_forward.5} parent=11 // pred_fallthru
          _
        // Predicated region
        $region45: #{vit_forward.5} parent=11 // pred_check
          %p386 = pneg %p237
        $region46: #{vit_forward.5} parent=11 // pred_check_branch
          %388 = sbr.rel (%p386) target = $region48
        $region47: #{vit_forward.5} parent=11 // pred_region
          _
        $region48: #{vit_forward.5} parent=11 // pred_fallthru
          _
        // Predicated region
        $region49: #{vit_forward.5} parent=11 // pred_check
          %p389 = pneg %p258
        $region50: #{vit_forward.5} parent=11 // pred_check_branch
          %391 = sbr.rel (%p389) target = $region52
        $region51: #{vit_forward.5} parent=11 // pred_region
          %393 = vsyncadd [#allocation3], 0
          %s394 = sshll.u32 %s10, 4
          %s395 = int_to_ptr.hbm [resolvable:$true] %s394
          %s396 = sshll.u32 [#allocation2], 4
          %s397 = int_to_ptr.vmem [resolvable:$true] %s396
          %402 = dma.hbm_to_vmem [thread:$0]  %s395, 1024, %s397, [#allocation3], 64, 64, 4
        $region52: #{vit_forward.5} parent=11 // pred_fallthru
          _
        // Predicated region
        $region53: #{vit_forward.5} parent=11 // pred_check
          %p403 = pneg %p279
        $region54: #{vit_forward.5} parent=11 // pred_check_branch
          %405 = sbr.rel (%p403) target = $region56
        $region55: #{vit_forward.5} parent=11 // pred_region
          _
        $region56: #{vit_forward.5} parent=11 // pred_fallthru
          _
        // Predicated region
        $region57: #{vit_forward.5} parent=11 // pred_check
          %p406 = pneg %p300
        $region58: #{vit_forward.5} parent=11 // pred_check_branch
          %408 = sbr.rel (%p406) target = $region60
        $region59: #{vit_forward.5} parent=11 // pred_region
          %410 = vsyncadd [#allocation5], 0
          %s411 = sshll.u32 %s12, 4
          %s412 = int_to_ptr.hbm [resolvable:$true] %s411
          %s413 = sshll.u32 [#allocation4], 4
          %s414 = int_to_ptr.vmem [resolvable:$true] %s413
          %419 = dma.hbm_to_vmem [thread:$0]  %s412, 1024, %s414, [#allocation5], 64, 64, 4
        $region60: #{vit_forward.5} parent=11 // pred_fallthru
          _
        // Predicated region
        $region61: #{vit_forward.5} parent=11 // pred_check
          %p420 = pneg %p321
        $region62: #{vit_forward.5} parent=11 // pred_check_branch
          %422 = sbr.rel (%p420) target = $region64
        $region63: #{vit_forward.5} parent=11 // pred_region
          _
        $region64: #{vit_forward.5} parent=11 // pred_fallthru
          _
      $region12: #{vit_forward.5} parent=5 // pred_fallthru
        _
      %p423 = scmp.lt.s32.totalorder %s22, 3
      // Predicated region
      $region65: #{vit_forward.5} parent=5 // pred_check
        %p424 = pneg %p423
      $region66: #{vit_forward.5} parent=5 // pred_check_branch
        %426 = sbr.rel (%p424) target = $region68
      $region67: #{vit_forward.5} parent=5 // pred_region
        // Predicated region
        $region69: #{vit_forward.5} parent=67 // pred_check
          %p427 = pneg %p42
        $region70: #{vit_forward.5} parent=67 // pred_check_branch
          %429 = sbr.rel (%p427) target = $region72
        $region71: #{vit_forward.5} parent=67 // pred_region
          %s430 = smul.u32 2, %s22
          %p431 = scmp.lt.s32.totalorder %s430, 5
          %s432 = scalar_select %p431, %s430, 5
          %s433 = smul.addr %s432, 8
          %s434 = scalar_lea.vmem %s0, %s433
          %s435 = smul.u32 2, %s22
        $region72: #{vit_forward.5} parent=67 // pred_fallthru
          _
      $region68: #{vit_forward.5} parent=5 // pred_fallthru
        _
      %p436 = scmp.le.s32.totalorder 1, %s22
      %p437 = scmp.lt.s32.totalorder %s22, 4
      %p438 = pnand %p436, %p437
      %p439 = pneg %p438
      // Predicated region
      $region73: #{vit_forward.5} parent=5 // pred_check
        _
      $region74: #{vit_forward.5} parent=5 // pred_check_branch
        %441 = sbr.rel (%p438) target = $region76
      $region75: #{vit_forward.5} parent=5 // pred_region
        %s442 = ssub.s32 %s22, 1
        // Predicated region
        $region77: #{vit_forward.5} parent=75 // pred_check
          %p443 = pneg %p258
        $region78: #{vit_forward.5} parent=75 // pred_check_branch
          %445 = sbr.rel (%p443) target = $region80
        $region79: #{vit_forward.5} parent=75 // pred_region
          %447 = dma.done [#allocation3], 1024
        $region80: #{vit_forward.5} parent=75 // pred_fallthru
          _
        // Predicated region
        $region81: #{vit_forward.5} parent=75 // pred_check
          %p448 = pneg %p300
        $region82: #{vit_forward.5} parent=75 // pred_check_branch
          %450 = sbr.rel (%p448) target = $region84
        $region83: #{vit_forward.5} parent=75 // pred_region
          %452 = dma.done [#allocation5], 1024
        $region84: #{vit_forward.5} parent=75 // pred_fallthru
          _
        %s453 = smul.u32 2, %s27
        %p454 = scmp.lt.s32.totalorder %s453, 5
        %s455 = scalar_select %p454, %s453, 5
        %s456 = smul.addr %s455, 8
        %s457 = scalar_lea.vmem %s0, %s456
        %p458 = pneg %p48
        %p459 = pneg %p45
        %p460 = pneg %p69
        %p461 = pneg %p66
        %p462 = pneg %p90
        %p463 = pneg %p87
        %p464 = pneg %p111
        %p465 = pneg %p108
        %p466 = pneg %p132
        %p467 = pneg %p129
        %p468 = pneg %p153
        %p469 = pneg %p150
        %p470 = pneg %p174
        %p471 = pneg %p171
        %p472 = pneg %p195
        %p473 = pneg %p192
        %p474 = pneg %p216
        %p475 = pneg %p213
        %p476 = pneg %p237
        %p477 = pneg %p234
        %p478 = pneg %p258
        %p479 = pneg %p255
        %p480 = pneg %p279
        %p481 = pneg %p276
        %p482 = pneg %p300
        %p483 = pneg %p297
        %p484 = pneg %p321
        %p485 = pneg %p318
        %p486 = pneg %p347
        %p487 = pneg %p344
        %s488 = smul.u32 2, %s27
        %p489 = scmp.lt.s32.totalorder %s488, 5
        %s490 = scalar_select %p489, %s488, 5
        %s491 = smul.addr %s490, 8
        %s492 = scalar_lea.vmem %s14, %s491
        %s493 = smul.u32 2, %s27
        %p494 = scmp.lt.s32.totalorder %s493, 5
        %s495 = scalar_select %p494, %s493, 5
        %s496 = smul.addr %s495, 8
        %s497 = scalar_lea.vmem %s0, %s496
        %s498 = smul.u32 2, %s27
        %s499 = smul.u32 2, %s27
        %p500 = scmp.lt.s32.totalorder %s499, 5
        %s501 = scalar_select %p500, %s499, 5
        %s502 = smul.addr %s501, 8
        %s503 = scalar_lea.vmem %s14, %s502
        %s504 = smul.u32 2, %s27
        %v505 = vld [vmem:[%s497] sm:$0xff]
        %v506 = vld [vmem:[%s497 + $0x8] sm:$0xff]
        %v507 = vld [vmem:[%s2] sm:$0x1]
        %v508 = vld [vmem:[%s3] sm:$0x1]
        %509 = vadd.xlane.f32.xlu0 %v505
        %v510 = vpop.xlane.xlu0 %509
        %511 = vadd.xlane.f32.xlu0 %v506
        %v512 = vpop.xlane.xlu0 %511
        %v513 = vmul.f32 %v510, 0.03125
        %v514 = vmul.f32 %v512, 0.03125
        %v515 = vsub.f32 %v505, %v513
        %v516 = vsub.f32 %v506, %v514
        %v517 = vlaneseq
        %v518 = vand.u32 %v517, 127
        %vm519 = vcmp.lt.s32.totalorder %v518, 32
        %v520 = vsel %vm519, 1, 0
        %vm521 = vcmp.eq.s32.totalorder %v520, 1
        %v522 = vsel %vm521, %v515, 0.0
        %v523 = vsel %vm521, %v516, 0.0
        %v524 = vmul.f32 %v522, %v522
        %v525 = vmul.f32 %v523, %v523
        %526 = vadd.xlane.f32.xlu0 %v524
        %v527 = vpop.xlane.xlu0 %526
        %528 = vadd.xlane.f32.xlu0 %v525
        %v529 = vpop.xlane.xlu0 %528
        %v530 = vmul.f32 %v527, 0.03125
        %v531 = vmul.f32 %v529, 0.03125
        %v532 = vadd.f32 %v530, 1e-05
        %v533 = vadd.f32 %v531, 1e-05
        %v534 = vrsqrt.pop %v532
        %v535 = vmul.f32 %v534, %v532
        %v536 = vmul.f32 %v535, %v534
        %v537 = vmul.f32 0.5, %v536
        %v538 = vsub.f32 1.5, %v537
        %v539 = vmul.f32 %v534, %v538
        %vm540 = vweird.f32 %v532
        %vm541 = vweird.f32 %v534
        %vm542 = vmor %vm540, %vm541
        %v543 = vsel %vm542, %v534, %v539
        %v544 = vrsqrt.pop %v533
        %v545 = vmul.f32 %v544, %v533
        %v546 = vmul.f32 %v545, %v544
        %v547 = vmul.f32 0.5, %v546
        %v548 = vsub.f32 1.5, %v547
        %v549 = vmul.f32 %v544, %v548
        %vm550 = vweird.f32 %v533
        %vm551 = vweird.f32 %v544
        %vm552 = vmor %vm550, %vm551
        %v553 = vsel %vm552, %v544, %v549
        %v554 = vmul.f32 %v522, %v543
        %v555 = vmul.f32 %v523, %v553
        %v557 = vperm.slane %v507, 0
        %v559 = vmul.f32 %v554, %v557
        %v560 = vmul.f32 %v555, %v557
        %v562 = vperm.slane %v508, 0
        %v564 = vadd.f32 %v559, %v562
        %v565 = vadd.f32 %v560, %v562
        %v566 = vld [vmem:[%s4] sm:$0xff]
        %v567 = vld [vmem:[%s4 + $0x8] sm:$0xf]
        %v568 = vld [vmem:[%s4 + $0xc] sm:$0xff]
        %v569 = vld [vmem:[%s4 + $0x14] sm:$0xf]
        %v570 = vld [vmem:[%s4 + $0x18] sm:$0xff]
        %v571 = vld [vmem:[%s4 + $0x20] sm:$0xf]
        %v572 = vld [vmem:[%s4 + $0x24] sm:$0xff]
        %v573 = vld [vmem:[%s4 + $0x2c] sm:$0xf]
        %v574 = vld [vmem:[%s4 + $0x30] sm:$0xff]
        %v575 = vld [vmem:[%s4 + $0x38] sm:$0xf]
        %v576 = vld [vmem:[%s4 + $0x3c] sm:$0xff]
        %v577 = vld [vmem:[%s4 + $0x44] sm:$0xf]
        %v578 = vld [vmem:[%s4 + $0x48] sm:$0xff]
        %v579 = vld [vmem:[%s4 + $0x50] sm:$0xf]
        %v580 = vld [vmem:[%s4 + $0x54] sm:$0xff]
        %v581 = vld [vmem:[%s4 + $0x5c] sm:$0xf]
        %v582 = vld [vmem:[%s4 + $0x60] sm:$0xff]
        %v583 = vld [vmem:[%s4 + $0x68] sm:$0xf]
        %v584 = vld [vmem:[%s4 + $0x6c] sm:$0xff]
        %v585 = vld [vmem:[%s4 + $0x74] sm:$0xf]
        %v586 = vld [vmem:[%s4 + $0x78] sm:$0xff]
        %v587 = vld [vmem:[%s4 + $0x80] sm:$0xf]
        %v588 = vld [vmem:[%s4 + $0x84] sm:$0xff]
        %v589 = vld [vmem:[%s4 + $0x8c] sm:$0xf]
        %v590 = vld [vmem:[%s4 + $0x90] sm:$0xff]
        %v591 = vld [vmem:[%s4 + $0x98] sm:$0xf]
        %v592 = vld [vmem:[%s4 + $0x9c] sm:$0xff]
        %v593 = vld [vmem:[%s4 + $0xa4] sm:$0xf]
        %v594 = vld [vmem:[%s4 + $0xa8] sm:$0xff]
        %v595 = vld [vmem:[%s4 + $0xb0] sm:$0xf]
        %v596 = vld [vmem:[%s4 + $0xb4] sm:$0xff]
        %v597 = vld [vmem:[%s4 + $0xbc] sm:$0xf]
        %v598 = vunpack.c.l.bf16 %v566
        %v599 = vunpack.c.h.bf16 %v566
        %v600 = vunpack.c.l.bf16 %v567
        %v601 = vunpack.c.l.bf16 %v568
        %v602 = vunpack.c.h.bf16 %v568
        %v603 = vunpack.c.l.bf16 %v569
        %v604 = vunpack.c.l.bf16 %v570
        %v605 = vunpack.c.h.bf16 %v570
        %v606 = vunpack.c.l.bf16 %v571
        %v607 = vunpack.c.l.bf16 %v572
        %v608 = vunpack.c.h.bf16 %v572
        %v609 = vunpack.c.l.bf16 %v573
        %v610 = vunpack.c.l.bf16 %v574
        %v611 = vunpack.c.h.bf16 %v574
        %v612 = vunpack.c.l.bf16 %v575
        %v613 = vunpack.c.l.bf16 %v576
        %v614 = vunpack.c.h.bf16 %v576
        %v615 = vunpack.c.l.bf16 %v577
        %v616 = vunpack.c.l.bf16 %v578
        %v617 = vunpack.c.h.bf16 %v578
        %v618 = vunpack.c.l.bf16 %v579
        %v619 = vunpack.c.l.bf16 %v580
        %v620 = vunpack.c.h.bf16 %v580
        %v621 = vunpack.c.l.bf16 %v581
        %v622 = vunpack.c.l.bf16 %v582
        %v623 = vunpack.c.h.bf16 %v582
        %v624 = vunpack.c.l.bf16 %v583
        %v625 = vunpack.c.l.bf16 %v584
        %v626 = vunpack.c.h.bf16 %v584
        %v627 = vunpack.c.l.bf16 %v585
        %v628 = vunpack.c.l.bf16 %v586
        %v629 = vunpack.c.h.bf16 %v586
        %v630 = vunpack.c.l.bf16 %v587
        %v631 = vunpack.c.l.bf16 %v588
        %v632 = vunpack.c.h.bf16 %v588
        %v633 = vunpack.c.l.bf16 %v589
        %v634 = vunpack.c.l.bf16 %v590
        %v635 = vunpack.c.h.bf16 %v590
        %v636 = vunpack.c.l.bf16 %v591
        %v637 = vunpack.c.l.bf16 %v592
        %v638 = vunpack.c.h.bf16 %v592
        %v639 = vunpack.c.l.bf16 %v593
        %v640 = vunpack.c.l.bf16 %v594
        %v641 = vunpack.c.h.bf16 %v594
        %v642 = vunpack.c.l.bf16 %v595
        %v643 = vunpack.c.l.bf16 %v596
        %v644 = vunpack.c.h.bf16 %v596
        %v645 = vunpack.c.l.bf16 %v597
        %v646 = vld [vmem:[%s5] sm:$0x7]
        %v648 = vperm.slane %v646, 0
        %v649 = vperm.slane %v646, 1
        %v650 = vperm.slane %v646, 2
        %654 = vmatpush.msra.mxu0 %v643
        %655 = vmatpush.msra.mxu0 %v640
        %656 = vmatpush.msra.mxu0 %v637
        %657 = vmatpush.msra.mxu0 %v634
        %658 = vmatpush.msra.mxu0 %v631
        %659 = vmatpush.msra.mxu0 %v628
        %660 = vmatpush.msra.mxu0 %v625
        %661 = vmatpush.msra.mxu0 %v622
        %662 = vmatpush.msra.mxu0 %v619
        %663 = vmatpush.msra.mxu0 %v616
        %664 = vmatpush.msra.mxu0 %v613
        %665 = vmatpush.msra.mxu0 %v610
        %666 = vmatpush.msra.mxu0 %v607
        %667 = vmatpush.msra.mxu0 %v604
        %668 = vmatpush.msra.mxu0 %v601
        %669 = vmatpush.msra.mxu0 %v598
        %670 = vmatmul.f32.gmra.mxu0 %v564
        %v671 = vpop.f32.mrf.mxu0
        %v672 = vadd.f32 %v648, %v671
        %673 = vmatmul.f32.gmra.mxu0 %v565
        %v674 = vpop.f32.mrf.mxu0
        %v675 = vadd.f32 %v648, %v674
        %676 = vdwg.mxu0
        %677 = vmatpush.msra.mxu0 %v644
        %678 = vmatpush.msra.mxu0 %v641
        %679 = vmatpush.msra.mxu0 %v638
        %680 = vmatpush.msra.mxu0 %v635
        %681 = vmatpush.msra.mxu0 %v632
        %682 = vmatpush.msra.mxu0 %v629
        %683 = vmatpush.msra.mxu0 %v626
        %684 = vmatpush.msra.mxu0 %v623
        %685 = vmatpush.msra.mxu0 %v620
        %686 = vmatpush.msra.mxu0 %v617
        %687 = vmatpush.msra.mxu0 %v614
        %688 = vmatpush.msra.mxu0 %v611
        %689 = vmatpush.msra.mxu0 %v608
        %690 = vmatpush.msra.mxu0 %v605
        %691 = vmatpush.msra.mxu0 %v602
        %692 = vmatpush.msra.mxu0 %v599
        %693 = vmatmul.f32.gmra.mxu0 %v564
        %v694 = vpop.f32.mrf.mxu0
        %v695 = vadd.f32 %v649, %v694
        %696 = vmatmul.f32.gmra.mxu0 %v565
        %v697 = vpop.f32.mrf.mxu0
        %v698 = vadd.f32 %v649, %v697
        %699 = vdwg.mxu0
        %700 = vmatpush.msra.mxu0 %v645
        %701 = vmatpush.msra.mxu0 %v642
        %702 = vmatpush.msra.mxu0 %v639
        %703 = vmatpush.msra.mxu0 %v636
        %704 = vmatpush.msra.mxu0 %v633
        %705 = vmatpush.msra.mxu0 %v630
        %706 = vmatpush.msra.mxu0 %v627
        %707 = vmatpush.msra.mxu0 %v624
        %708 = vmatpush.msra.mxu0 %v621
        %709 = vmatpush.msra.mxu0 %v618
        %710 = vmatpush.msra.mxu0 %v615
        %711 = vmatpush.msra.mxu0 %v612
        %712 = vmatpush.msra.mxu0 %v609
        %713 = vmatpush.msra.mxu0 %v606
        %714 = vmatpush.msra.mxu0 %v603
        %715 = vmatpush.msra.mxu0 %v600
        %716 = vmatmul.f32.gmra.mxu0 %v564
        %v717 = vpop.f32.mrf.mxu0
        %v718 = vadd.f32 %v650, %v717
        %719 = vmatmul.f32.gmra.mxu0 %v565
        %v720 = vpop.f32.mrf.mxu0
        %v721 = vadd.f32 %v650, %v720
        %722 = vdwg.mxu0
        %v725 = vrot.slane %v672, 1
        %v726 = vrot.slane %v672, 2
        %v727 = vrot.slane %v672, 3
        %v728 = vrot.slane %v672, 4
        %v729 = vrot.slane %v672, 5
        %v730 = vrot.slane %v672, 6
        %v731 = vrot.slane %v672, 7
        %v732 = vrot.slane %v675, 1
        %v733 = vrot.slane %v675, 2
        %v734 = vrot.slane %v675, 3
        %v735 = vrot.slane %v675, 4
        %v736 = vrot.slane %v675, 5
        %v737 = vrot.slane %v675, 6
        %v738 = vrot.slane %v675, 7
        %v741 = vrot.slane %v695, 2
        %v742 = vrot.slane %v695, 4
        %v743 = vrot.slane %v695, 6
        %v744 = vrot.slane %v698, 2
        %v745 = vrot.slane %v698, 4
        %v746 = vrot.slane %v698, 6
        %v753 = vperm.slane %v672, 0
        %v754 = vperm.slane %v725, 0
        %v755 = vperm.slane %v726, 0
        %v756 = vperm.slane %v727, 0
        %v757 = vperm.slane %v728, 0
        %v758 = vperm.slane %v729, 0
        %v759 = vperm.slane %v730, 0
        %v760 = vperm.slane %v731, 0
        %v761 = vperm.slane %v675, 0
        %v762 = vperm.slane %v732, 0
        %v763 = vperm.slane %v733, 0
        %v764 = vperm.slane %v734, 0
        %v765 = vperm.slane %v735, 0
        %v766 = vperm.slane %v736, 0
        %v767 = vperm.slane %v737, 0
        %v768 = vperm.slane %v738, 0
        %v785 = vmul.f32 %v753, %v695
        %v786 = vmul.f32 %v754, %v695
        %v787 = vmul.f32 %v755, %v741
        %v788 = vmul.f32 %v756, %v741
        %v789 = vmul.f32 %v757, %v742
        %v790 = vmul.f32 %v758, %v742
        %v791 = vmul.f32 %v759, %v743
        %v792 = vmul.f32 %v760, %v743
        %v793 = vmul.f32 %v761, %v698
        %v794 = vmul.f32 %v762, %v698
        %v795 = vmul.f32 %v763, %v744
        %v796 = vmul.f32 %v764, %v744
        %v797 = vmul.f32 %v765, %v745
        %v798 = vmul.f32 %v766, %v745
        %v799 = vmul.f32 %v767, %v746
        %v800 = vmul.f32 %v768, %v746
        %v801 = vld [vmem:[%s1] sm:$0xff]
        %v802 = vld [vmem:[%s1 + $0x8] sm:$0xff]
        %v803 = vld [vmem:[%s1 + $0x10] sm:$0xff]
        %v804 = vld [vmem:[%s1 + $0x18] sm:$0xff]
        %v805 = vld [vmem:[%s1 + $0x20] sm:$0xff]
        %v806 = vld [vmem:[%s1 + $0x28] sm:$0xff]
        %v807 = vld [vmem:[%s1 + $0x30] sm:$0xff]
        %v808 = vld [vmem:[%s1 + $0x38] sm:$0xff]
        %v809 = vld [vmem:[%s1 + $0x40] sm:$0xff]
        %v810 = vld [vmem:[%s1 + $0x48] sm:$0xff]
        %v811 = vld [vmem:[%s1 + $0x50] sm:$0xff]
        %v812 = vld [vmem:[%s1 + $0x58] sm:$0xff]
        %v813 = vld [vmem:[%s1 + $0x60] sm:$0xff]
        %v814 = vld [vmem:[%s1 + $0x68] sm:$0xff]
        %v815 = vld [vmem:[%s1 + $0x70] sm:$0xff]
        %v816 = vld [vmem:[%s1 + $0x78] sm:$0xff]
        %833 = vst [vmem:[#allocation1] ss:$4 sm:$0xff] %v785
        %s834 = scalar_lea.vmem [#allocation1], 1
        %835 = vst [vmem:[%s834] ss:$4 sm:$0xff] %v786
        %s836 = scalar_lea.vmem [#allocation1], 2
        %837 = vst [vmem:[%s836] ss:$4 sm:$0xff] %v787
        %s838 = scalar_lea.vmem [#allocation1], 3
        %839 = vst [vmem:[%s838] ss:$4 sm:$0xff] %v788
        %s840 = scalar_lea.vmem [#allocation1], 32
        %841 = vst [vmem:[%s840] ss:$4 sm:$0xff] %v789
        %s842 = scalar_lea.vmem [#allocation1], 33
        %843 = vst [vmem:[%s842] ss:$4 sm:$0xff] %v790
        %s844 = scalar_lea.vmem [#allocation1], 34
        %845 = vst [vmem:[%s844] ss:$4 sm:$0xff] %v791
        %s846 = scalar_lea.vmem [#allocation1], 35
        %847 = vst [vmem:[%s846] ss:$4 sm:$0xff] %v792
        %v848 = vld.sshfl [vmem:[#allocation1] sm:$0xff pattern:$0x73625140]
        %v849 = vld.sshfl [vmem:[#allocation1 + $0x20] sm:$0xff pattern:$0x73625140]
        %850 = vst [vmem:[#allocation1] ss:$4 sm:$0xff] %v793
        %851 = vst [vmem:[%s834] ss:$4 sm:$0xff] %v794
        %852 = vst [vmem:[%s836] ss:$4 sm:$0xff] %v795
        %853 = vst [vmem:[%s838] ss:$4 sm:$0xff] %v796
        %854 = vst [vmem:[%s840] ss:$4 sm:$0xff] %v797
        %855 = vst [vmem:[%s842] ss:$4 sm:$0xff] %v798
        %856 = vst [vmem:[%s844] ss:$4 sm:$0xff] %v799
        %857 = vst [vmem:[%s846] ss:$4 sm:$0xff] %v800
        %v858 = vld.sshfl [vmem:[#allocation1] sm:$0xff pattern:$0x73625140]
        %v859 = vld.sshfl [vmem:[#allocation1 + $0x20] sm:$0xff pattern:$0x73625140]
        %864 = vmatpush.msra.mxu0 %v816
        %865 = vmatpush.msra.mxu0 %v815
        %866 = vmatpush.msra.mxu0 %v814
        %867 = vmatpush.msra.mxu0 %v813
        %868 = vmatpush.msra.mxu0 %v812
        %869 = vmatpush.msra.mxu0 %v811
        %870 = vmatpush.msra.mxu0 %v810
        %871 = vmatpush.msra.mxu0 %v809
        %872 = vmatpush.msra.mxu0 %v808
        %873 = vmatpush.msra.mxu0 %v807
        %874 = vmatpush.msra.mxu0 %v806
        %875 = vmatpush.msra.mxu0 %v805
        %876 = vmatpush.msra.mxu0 %v804
        %877 = vmatpush.msra.mxu0 %v803
        %878 = vmatpush.msra.mxu0 %v802
        %879 = vmatpush.msra.mxu0 %v801
        %880 = vmatmul.f32.gmra.mxu0 %v848
        %v881 = vpop.f32.mrf.mxu0
        %v882 = vadd.f32 0.0, %v881
        %883 = vmatmul.f32.gmra.mxu0 %v849
        %v884 = vpop.f32.mrf.mxu0
        %v885 = vadd.f32 0.0, %v884
        %886 = vmatmul.f32.gmra.mxu0 %v858
        %v887 = vpop.f32.mrf.mxu0
        %v888 = vadd.f32 0.0, %v887
        %889 = vmatmul.f32.gmra.mxu0 %v859
        %v890 = vpop.f32.mrf.mxu0
        %v891 = vadd.f32 0.0, %v890
        %892 = vdwg.mxu0
        %v897 = vrot.slane %v882, 2
        %v898 = vrot.slane %v882, 4
        %v899 = vrot.slane %v882, 6
        %v900 = vrot.slane %v885, 2
        %v901 = vrot.slane %v885, 4
        %v902 = vrot.slane %v885, 6
        %v903 = vrot.slane %v888, 2
        %v904 = vrot.slane %v888, 4
        %v905 = vrot.slane %v888, 6
        %v906 = vrot.slane %v891, 2
        %v907 = vrot.slane %v891, 4
        %v908 = vrot.slane %v891, 6
        %vm921 = vcmask 1041408
        %v922 = vsel %vm921, %v882, -inf
        %v923 = vrot.slane %v922, 4
        %v924 = vmax.f32 %v922, %v923
        %v925 = vrot.slane %v924, 2
        %v926 = vmax.f32 %v924, %v925
        %v927 = vrot.slane %v926, 1
        %v928 = vmax.f32 %v926, %v927
        %v929 = vsel %vm921, %v897, -inf
        %v930 = vrot.slane %v929, 4
        %v931 = vmax.f32 %v929, %v930
        %v932 = vrot.slane %v931, 2
        %v933 = vmax.f32 %v931, %v932
        %v934 = vrot.slane %v933, 1
        %v935 = vmax.f32 %v933, %v934
        %v936 = vsel %vm921, %v898, -inf
        %v937 = vrot.slane %v936, 4
        %v938 = vmax.f32 %v936, %v937
        %v939 = vrot.slane %v938, 2
        %v940 = vmax.f32 %v938, %v939
        %v941 = vrot.slane %v940, 1
        %v942 = vmax.f32 %v940, %v941
        %v943 = vsel %vm921, %v899, -inf
        %v944 = vrot.slane %v943, 4
        %v945 = vmax.f32 %v943, %v944
        %v946 = vrot.slane %v945, 2
        %v947 = vmax.f32 %v945, %v946
        %v948 = vrot.slane %v947, 1
        %v949 = vmax.f32 %v947, %v948
        %v950 = vsel %vm921, %v885, -inf
        %v951 = vrot.slane %v950, 4
        %v952 = vmax.f32 %v950, %v951
        %v953 = vrot.slane %v952, 2
        %v954 = vmax.f32 %v952, %v953
        %v955 = vrot.slane %v954, 1
        %v956 = vmax.f32 %v954, %v955
        %v957 = vsel %vm921, %v900, -inf
        %v958 = vrot.slane %v957, 4
        %v959 = vmax.f32 %v957, %v958
        %v960 = vrot.slane %v959, 2
        %v961 = vmax.f32 %v959, %v960
        %v962 = vrot.slane %v961, 1
        %v963 = vmax.f32 %v961, %v962
        %v964 = vsel %vm921, %v901, -inf
        %v965 = vrot.slane %v964, 4
        %v966 = vmax.f32 %v964, %v965
        %v967 = vrot.slane %v966, 2
        %v968 = vmax.f32 %v966, %v967
        %v969 = vrot.slane %v968, 1
        %v970 = vmax.f32 %v968, %v969
        %v971 = vsel %vm921, %v902, -inf
        %v972 = vrot.slane %v971, 4
        %v973 = vmax.f32 %v971, %v972
        %v974 = vrot.slane %v973, 2
        %v975 = vmax.f32 %v973, %v974
        %v976 = vrot.slane %v975, 1
        %v977 = vmax.f32 %v975, %v976
        %v978 = vsel %vm921, %v888, -inf
        %v979 = vrot.slane %v978, 4
        %v980 = vmax.f32 %v978, %v979
        %v981 = vrot.slane %v980, 2
        %v982 = vmax.f32 %v980, %v981
        %v983 = vrot.slane %v982, 1
        %v984 = vmax.f32 %v982, %v983
        %v985 = vsel %vm921, %v903, -inf
        %v986 = vrot.slane %v985, 4
        %v987 = vmax.f32 %v985, %v986
        %v988 = vrot.slane %v987, 2
        %v989 = vmax.f32 %v987, %v988
        %v990 = vrot.slane %v989, 1
        %v991 = vmax.f32 %v989, %v990
        %v992 = vsel %vm921, %v904, -inf
        %v993 = vrot.slane %v992, 4
        %v994 = vmax.f32 %v992, %v993
        %v995 = vrot.slane %v994, 2
        %v996 = vmax.f32 %v994, %v995
        %v997 = vrot.slane %v996, 1
        %v998 = vmax.f32 %v996, %v997
        %v999 = vsel %vm921, %v905, -inf
        %v1000 = vrot.slane %v999, 4
        %v1001 = vmax.f32 %v999, %v1000
        %v1002 = vrot.slane %v1001, 2
        %v1003 = vmax.f32 %v1001, %v1002
        %v1004 = vrot.slane %v1003, 1
        %v1005 = vmax.f32 %v1003, %v1004
        %v1006 = vsel %vm921, %v891, -inf
        %v1007 = vrot.slane %v1006, 4
        %v1008 = vmax.f32 %v1006, %v1007
        %v1009 = vrot.slane %v1008, 2
        %v1010 = vmax.f32 %v1008, %v1009
        %v1011 = vrot.slane %v1010, 1
        %v1012 = vmax.f32 %v1010, %v1011
        %v1013 = vsel %vm921, %v906, -inf
        %v1014 = vrot.slane %v1013, 4
        %v1015 = vmax.f32 %v1013, %v1014
        %v1016 = vrot.slane %v1015, 2
        %v1017 = vmax.f32 %v1015, %v1016
        %v1018 = vrot.slane %v1017, 1
        %v1019 = vmax.f32 %v1017, %v1018
        %v1020 = vsel %vm921, %v907, -inf
        %v1021 = vrot.slane %v1020, 4
        %v1022 = vmax.f32 %v1020, %v1021
        %v1023 = vrot.slane %v1022, 2
        %v1024 = vmax.f32 %v1022, %v1023
        %v1025 = vrot.slane %v1024, 1
        %v1026 = vmax.f32 %v1024, %v1025
        %v1027 = vsel %vm921, %v908, -inf
        %v1028 = vrot.slane %v1027, 4
        %v1029 = vmax.f32 %v1027, %v1028
        %v1030 = vrot.slane %v1029, 2
        %v1031 = vmax.f32 %v1029, %v1030
        %v1032 = vrot.slane %v1031, 1
        %v1033 = vmax.f32 %v1031, %v1032
        %v1034 = vsub.f32 %v882, %v928
        %v1035 = vsub.f32 %v897, %v935
        %v1036 = vsub.f32 %v898, %v942
        %v1037 = vsub.f32 %v899, %v949
        %v1038 = vsub.f32 %v885, %v956
        %v1039 = vsub.f32 %v900, %v963
        %v1040 = vsub.f32 %v901, %v970
        %v1041 = vsub.f32 %v902, %v977
        %v1042 = vsub.f32 %v888, %v984
        %v1043 = vsub.f32 %v903, %v991
        %v1044 = vsub.f32 %v904, %v998
        %v1045 = vsub.f32 %v905, %v1005
        %v1046 = vsub.f32 %v891, %v1012
        %v1047 = vsub.f32 %v906, %v1019
        %v1048 = vsub.f32 %v907, %v1026
        %v1049 = vsub.f32 %v908, %v1033
        %v1050 = vmul.f32 %v1034, 1.442695
        %v1051 = vpow.pop %v1050
        %v1052 = vmul.f32 %v1035, 1.442695
        %v1053 = vpow.pop %v1052
        %v1054 = vmul.f32 %v1036, 1.442695
        %v1055 = vpow.pop %v1054
        %v1056 = vmul.f32 %v1037, 1.442695
        %v1057 = vpow.pop %v1056
        %v1058 = vmul.f32 %v1038, 1.442695
        %v1059 = vpow.pop %v1058
        %v1060 = vmul.f32 %v1039, 1.442695
        %v1061 = vpow.pop %v1060
        %v1062 = vmul.f32 %v1040, 1.442695
        %v1063 = vpow.pop %v1062
        %v1064 = vmul.f32 %v1041, 1.442695
        %v1065 = vpow.pop %v1064
        %v1066 = vmul.f32 %v1042, 1.442695
        %v1067 = vpow.pop %v1066
        %v1068 = vmul.f32 %v1043, 1.442695
        %v1069 = vpow.pop %v1068
        %v1070 = vmul.f32 %v1044, 1.442695
        %v1071 = vpow.pop %v1070
        %v1072 = vmul.f32 %v1045, 1.442695
        %v1073 = vpow.pop %v1072
        %v1074 = vmul.f32 %v1046, 1.442695
        %v1075 = vpow.pop %v1074
        %v1076 = vmul.f32 %v1047, 1.442695
        %v1077 = vpow.pop %v1076
        %v1078 = vmul.f32 %v1048, 1.442695
        %v1079 = vpow.pop %v1078
        %v1080 = vmul.f32 %v1049, 1.442695
        %v1081 = vpow.pop %v1080
        %v1082 = vsel %vm921, %v1051, 0.0
        %v1083 = vrot.slane %v1082, 4
        %v1084 = vadd.f32 %v1082, %v1083
        %v1085 = vrot.slane %v1084, 2
        %v1086 = vadd.f32 %v1084, %v1085
        %v1087 = vrot.slane %v1086, 1
        %v1088 = vadd.f32 %v1086, %v1087
        %v1089 = vsel %vm921, %v1053, 0.0
        %v1090 = vrot.slane %v1089, 4
        %v1091 = vadd.f32 %v1089, %v1090
        %v1092 = vrot.slane %v1091, 2
        %v1093 = vadd.f32 %v1091, %v1092
        %v1094 = vrot.slane %v1093, 1
        %v1095 = vadd.f32 %v1093, %v1094
        %v1096 = vsel %vm921, %v1055, 0.0
        %v1097 = vrot.slane %v1096, 4
        %v1098 = vadd.f32 %v1096, %v1097
        %v1099 = vrot.slane %v1098, 2
        %v1100 = vadd.f32 %v1098, %v1099
        %v1101 = vrot.slane %v1100, 1
        %v1102 = vadd.f32 %v1100, %v1101
        %v1103 = vsel %vm921, %v1057, 0.0
        %v1104 = vrot.slane %v1103, 4
        %v1105 = vadd.f32 %v1103, %v1104
        %v1106 = vrot.slane %v1105, 2
        %v1107 = vadd.f32 %v1105, %v1106
        %v1108 = vrot.slane %v1107, 1
        %v1109 = vadd.f32 %v1107, %v1108
        %v1110 = vsel %vm921, %v1059, 0.0
        %v1111 = vrot.slane %v1110, 4
        %v1112 = vadd.f32 %v1110, %v1111
        %v1113 = vrot.slane %v1112, 2
        %v1114 = vadd.f32 %v1112, %v1113
        %v1115 = vrot.slane %v1114, 1
        %v1116 = vadd.f32 %v1114, %v1115
        %v1117 = vsel %vm921, %v1061, 0.0
        %v1118 = vrot.slane %v1117, 4
        %v1119 = vadd.f32 %v1117, %v1118
        %v1120 = vrot.slane %v1119, 2
        %v1121 = vadd.f32 %v1119, %v1120
        %v1122 = vrot.slane %v1121, 1
        %v1123 = vadd.f32 %v1121, %v1122
        %v1124 = vsel %vm921, %v1063, 0.0
        %v1125 = vrot.slane %v1124, 4
        %v1126 = vadd.f32 %v1124, %v1125
        %v1127 = vrot.slane %v1126, 2
        %v1128 = vadd.f32 %v1126, %v1127
        %v1129 = vrot.slane %v1128, 1
        %v1130 = vadd.f32 %v1128, %v1129
        %v1131 = vsel %vm921, %v1065, 0.0
        %v1132 = vrot.slane %v1131, 4
        %v1133 = vadd.f32 %v1131, %v1132
        %v1134 = vrot.slane %v1133, 2
        %v1135 = vadd.f32 %v1133, %v1134
        %v1136 = vrot.slane %v1135, 1
        %v1137 = vadd.f32 %v1135, %v1136
        %v1138 = vsel %vm921, %v1067, 0.0
        %v1139 = vrot.slane %v1138, 4
        %v1140 = vadd.f32 %v1138, %v1139
        %v1141 = vrot.slane %v1140, 2
        %v1142 = vadd.f32 %v1140, %v1141
        %v1143 = vrot.slane %v1142, 1
        %v1144 = vadd.f32 %v1142, %v1143
        %v1145 = vsel %vm921, %v1069, 0.0
        %v1146 = vrot.slane %v1145, 4
        %v1147 = vadd.f32 %v1145, %v1146
        %v1148 = vrot.slane %v1147, 2
        %v1149 = vadd.f32 %v1147, %v1148
        %v1150 = vrot.slane %v1149, 1
        %v1151 = vadd.f32 %v1149, %v1150
        %v1152 = vsel %vm921, %v1071, 0.0
        %v1153 = vrot.slane %v1152, 4
        %v1154 = vadd.f32 %v1152, %v1153
        %v1155 = vrot.slane %v1154, 2
        %v1156 = vadd.f32 %v1154, %v1155
        %v1157 = vrot.slane %v1156, 1
        %v1158 = vadd.f32 %v1156, %v1157
        %v1159 = vsel %vm921, %v1073, 0.0
        %v1160 = vrot.slane %v1159, 4
        %v1161 = vadd.f32 %v1159, %v1160
        %v1162 = vrot.slane %v1161, 2
        %v1163 = vadd.f32 %v1161, %v1162
        %v1164 = vrot.slane %v1163, 1
        %v1165 = vadd.f32 %v1163, %v1164
        %v1166 = vsel %vm921, %v1075, 0.0
        %v1167 = vrot.slane %v1166, 4
        %v1168 = vadd.f32 %v1166, %v1167
        %v1169 = vrot.slane %v1168, 2
        %v1170 = vadd.f32 %v1168, %v1169
        %v1171 = vrot.slane %v1170, 1
        %v1172 = vadd.f32 %v1170, %v1171
        %v1173 = vsel %vm921, %v1077, 0.0
        %v1174 = vrot.slane %v1173, 4
        %v1175 = vadd.f32 %v1173, %v1174
        %v1176 = vrot.slane %v1175, 2
        %v1177 = vadd.f32 %v1175, %v1176
        %v1178 = vrot.slane %v1177, 1
        %v1179 = vadd.f32 %v1177, %v1178
        %v1180 = vsel %vm921, %v1079, 0.0
        %v1181 = vrot.slane %v1180, 4
        %v1182 = vadd.f32 %v1180, %v1181
        %v1183 = vrot.slane %v1182, 2
        %v1184 = vadd.f32 %v1182, %v1183
        %v1185 = vrot.slane %v1184, 1
        %v1186 = vadd.f32 %v1184, %v1185
        %v1187 = vsel %vm921, %v1081, 0.0
        %v1188 = vrot.slane %v1187, 4
        %v1189 = vadd.f32 %v1187, %v1188
        %v1190 = vrot.slane %v1189, 2
        %v1191 = vadd.f32 %v1189, %v1190
        %v1192 = vrot.slane %v1191, 1
        %v1193 = vadd.f32 %v1191, %v1192
        %v1194 = vrcp.pop %v1088
        %v1195 = vrcp.pop %v1095
        %v1196 = vrcp.pop %v1102
        %v1197 = vrcp.pop %v1109
        %v1198 = vrcp.pop %v1116
        %v1199 = vrcp.pop %v1123
        %v1200 = vrcp.pop %v1130
        %v1201 = vrcp.pop %v1137
        %v1202 = vrcp.pop %v1144
        %v1203 = vrcp.pop %v1151
        %v1204 = vrcp.pop %v1158
        %v1205 = vrcp.pop %v1165
        %v1206 = vrcp.pop %v1172
        %v1207 = vrcp.pop %v1179
        %v1208 = vrcp.pop %v1186
        %v1209 = vrcp.pop %v1193
        %v1210 = vmul.f32 %v1051, %v1194
        %v1211 = vmul.f32 %v1053, %v1195
        %v1212 = vmul.f32 %v1055, %v1196
        %v1213 = vmul.f32 %v1057, %v1197
        %v1214 = vmul.f32 %v1059, %v1198
        %v1215 = vmul.f32 %v1061, %v1199
        %v1216 = vmul.f32 %v1063, %v1200
        %v1217 = vmul.f32 %v1065, %v1201
        %v1218 = vmul.f32 %v1067, %v1202
        %v1219 = vmul.f32 %v1069, %v1203
        %v1220 = vmul.f32 %v1071, %v1204
        %v1221 = vmul.f32 %v1073, %v1205
        %v1222 = vmul.f32 %v1075, %v1206
        %v1223 = vmul.f32 %v1077, %v1207
        %v1224 = vmul.f32 %v1079, %v1208
        %v1225 = vmul.f32 %v1081, %v1209
        %v1228 = vrot.slane %v718, 2
        %v1229 = vrot.slane %v718, 4
        %v1230 = vrot.slane %v718, 6
        %v1231 = vrot.slane %v721, 2
        %v1232 = vrot.slane %v721, 4
        %v1233 = vrot.slane %v721, 6
        %v1240 = vmul.f32 %v1210, %v718
        %v1241 = vmul.f32 %v1211, %v718
        %v1242 = vmul.f32 %v1212, %v1228
        %v1243 = vmul.f32 %v1213, %v1228
        %v1244 = vmul.f32 %v1214, %v1229
        %v1245 = vmul.f32 %v1215, %v1229
        %v1246 = vmul.f32 %v1216, %v1230
        %v1247 = vmul.f32 %v1217, %v1230
        %v1248 = vmul.f32 %v1218, %v721
        %v1249 = vmul.f32 %v1219, %v721
        %v1250 = vmul.f32 %v1220, %v1231
        %v1251 = vmul.f32 %v1221, %v1231
        %v1252 = vmul.f32 %v1222, %v1232
        %v1253 = vmul.f32 %v1223, %v1232
        %v1254 = vmul.f32 %v1224, %v1233
        %v1255 = vmul.f32 %v1225, %v1233
        %v1256 = vsel %vm921, %v1240, 0.0
        %v1257 = vrot.slane %v1256, 4
        %v1258 = vadd.f32 %v1256, %v1257
        %v1259 = vrot.slane %v1258, 2
        %v1260 = vadd.f32 %v1258, %v1259
        %v1261 = vrot.slane %v1260, 1
        %v1262 = vadd.f32 %v1260, %v1261
        %v1263 = vsel %vm921, %v1241, 0.0
        %v1264 = vrot.slane %v1263, 4
        %v1265 = vadd.f32 %v1263, %v1264
        %v1266 = vrot.slane %v1265, 2
        %v1267 = vadd.f32 %v1265, %v1266
        %v1268 = vrot.slane %v1267, 1
        %v1269 = vadd.f32 %v1267, %v1268
        %v1270 = vsel %vm921, %v1242, 0.0
        %v1271 = vrot.slane %v1270, 4
        %v1272 = vadd.f32 %v1270, %v1271
        %v1273 = vrot.slane %v1272, 2
        %v1274 = vadd.f32 %v1272, %v1273
        %v1275 = vrot.slane %v1274, 1
        %v1276 = vadd.f32 %v1274, %v1275
        %v1277 = vsel %vm921, %v1243, 0.0
        %v1278 = vrot.slane %v1277, 4
        %v1279 = vadd.f32 %v1277, %v1278
        %v1280 = vrot.slane %v1279, 2
        %v1281 = vadd.f32 %v1279, %v1280
        %v1282 = vrot.slane %v1281, 1
        %v1283 = vadd.f32 %v1281, %v1282
        %v1284 = vsel %vm921, %v1244, 0.0
        %v1285 = vrot.slane %v1284, 4
        %v1286 = vadd.f32 %v1284, %v1285
        %v1287 = vrot.slane %v1286, 2
        %v1288 = vadd.f32 %v1286, %v1287
        %v1289 = vrot.slane %v1288, 1
        %v1290 = vadd.f32 %v1288, %v1289
        %v1291 = vsel %vm921, %v1245, 0.0
        %v1292 = vrot.slane %v1291, 4
        %v1293 = vadd.f32 %v1291, %v1292
        %v1294 = vrot.slane %v1293, 2
        %v1295 = vadd.f32 %v1293, %v1294
        %v1296 = vrot.slane %v1295, 1
        %v1297 = vadd.f32 %v1295, %v1296
        %v1298 = vsel %vm921, %v1246, 0.0
        %v1299 = vrot.slane %v1298, 4
        %v1300 = vadd.f32 %v1298, %v1299
        %v1301 = vrot.slane %v1300, 2
        %v1302 = vadd.f32 %v1300, %v1301
        %v1303 = vrot.slane %v1302, 1
        %v1304 = vadd.f32 %v1302, %v1303
        %v1305 = vsel %vm921, %v1247, 0.0
        %v1306 = vrot.slane %v1305, 4
        %v1307 = vadd.f32 %v1305, %v1306
        %v1308 = vrot.slane %v1307, 2
        %v1309 = vadd.f32 %v1307, %v1308
        %v1310 = vrot.slane %v1309, 1
        %v1311 = vadd.f32 %v1309, %v1310
        %v1312 = vsel %vm921, %v1248, 0.0
        %v1313 = vrot.slane %v1312, 4
        %v1314 = vadd.f32 %v1312, %v1313
        %v1315 = vrot.slane %v1314, 2
        %v1316 = vadd.f32 %v1314, %v1315
        %v1317 = vrot.slane %v1316, 1
        %v1318 = vadd.f32 %v1316, %v1317
        %v1319 = vsel %vm921, %v1249, 0.0
        %v1320 = vrot.slane %v1319, 4
        %v1321 = vadd.f32 %v1319, %v1320
        %v1322 = vrot.slane %v1321, 2
        %v1323 = vadd.f32 %v1321, %v1322
        %v1324 = vrot.slane %v1323, 1
        %v1325 = vadd.f32 %v1323, %v1324
        %v1326 = vsel %vm921, %v1250, 0.0
        %v1327 = vrot.slane %v1326, 4
        %v1328 = vadd.f32 %v1326, %v1327
        %v1329 = vrot.slane %v1328, 2
        %v1330 = vadd.f32 %v1328, %v1329
        %v1331 = vrot.slane %v1330, 1
        %v1332 = vadd.f32 %v1330, %v1331
        %v1333 = vsel %vm921, %v1251, 0.0
        %v1334 = vrot.slane %v1333, 4
        %v1335 = vadd.f32 %v1333, %v1334
        %v1336 = vrot.slane %v1335, 2
        %v1337 = vadd.f32 %v1335, %v1336
        %v1338 = vrot.slane %v1337, 1
        %v1339 = vadd.f32 %v1337, %v1338
        %v1340 = vsel %vm921, %v1252, 0.0
        %v1341 = vrot.slane %v1340, 4
        %v1342 = vadd.f32 %v1340, %v1341
        %v1343 = vrot.slane %v1342, 2
        %v1344 = vadd.f32 %v1342, %v1343
        %v1345 = vrot.slane %v1344, 1
        %v1346 = vadd.f32 %v1344, %v1345
        %v1347 = vsel %vm921, %v1253, 0.0
        %v1348 = vrot.slane %v1347, 4
        %v1349 = vadd.f32 %v1347, %v1348
        %v1350 = vrot.slane %v1349, 2
        %v1351 = vadd.f32 %v1349, %v1350
        %v1352 = vrot.slane %v1351, 1
        %v1353 = vadd.f32 %v1351, %v1352
        %v1354 = vsel %vm921, %v1254, 0.0
        %v1355 = vrot.slane %v1354, 4
        %v1356 = vadd.f32 %v1354, %v1355
        %v1357 = vrot.slane %v1356, 2
        %v1358 = vadd.f32 %v1356, %v1357
        %v1359 = vrot.slane %v1358, 1
        %v1360 = vadd.f32 %v1358, %v1359
        %v1361 = vsel %vm921, %v1255, 0.0
        %v1362 = vrot.slane %v1361, 4
        %v1363 = vadd.f32 %v1361, %v1362
        %v1364 = vrot.slane %v1363, 2
        %v1365 = vadd.f32 %v1363, %v1364
        %v1366 = vrot.slane %v1365, 1
        %v1367 = vadd.f32 %v1365, %v1366
        %v1368 = vld [vmem:[%s6] sm:$0xf]
        %v1369 = vld [vmem:[%s6 + $0x4] sm:$0xf]
        %v1370 = vld [vmem:[%s6 + $0x8] sm:$0xf]
        %v1371 = vld [vmem:[%s6 + $0xc] sm:$0xf]
        %v1372 = vld [vmem:[%s6 + $0x10] sm:$0xf]
        %v1373 = vld [vmem:[%s6 + $0x14] sm:$0xf]
        %v1374 = vld [vmem:[%s6 + $0x18] sm:$0xf]
        %v1375 = vld [vmem:[%s6 + $0x1c] sm:$0xf]
        %v1376 = vld [vmem:[%s6 + $0x20] sm:$0xf]
        %v1377 = vld [vmem:[%s6 + $0x24] sm:$0xf]
        %v1378 = vld [vmem:[%s6 + $0x28] sm:$0xf]
        %v1379 = vld [vmem:[%s6 + $0x2c] sm:$0xf]
        %v1380 = vld [vmem:[%s6 + $0x30] sm:$0xf]
        %v1381 = vld [vmem:[%s6 + $0x34] sm:$0xf]
        %v1382 = vld [vmem:[%s6 + $0x38] sm:$0xf]
        %v1383 = vld [vmem:[%s6 + $0x3c] sm:$0xf]
        %v1384 = vunpack.c.l.bf16 %v1368
        %v1385 = vunpack.c.l.bf16 %v1369
        %v1386 = vunpack.c.l.bf16 %v1370
        %v1387 = vunpack.c.l.bf16 %v1371
        %v1388 = vunpack.c.l.bf16 %v1372
        %v1389 = vunpack.c.l.bf16 %v1373
        %v1390 = vunpack.c.l.bf16 %v1374
        %v1391 = vunpack.c.l.bf16 %v1375
        %v1392 = vunpack.c.l.bf16 %v1376
        %v1393 = vunpack.c.l.bf16 %v1377
        %v1394 = vunpack.c.l.bf16 %v1378
        %v1395 = vunpack.c.l.bf16 %v1379
        %v1396 = vunpack.c.l.bf16 %v1380
        %v1397 = vunpack.c.l.bf16 %v1381
        %v1398 = vunpack.c.l.bf16 %v1382
        %v1399 = vunpack.c.l.bf16 %v1383
        %v1400 = vld [vmem:[%s7] sm:$0x1]
        %v1402 = vperm.slane %v1400, 0
        %vm1420 = vcmask 1041409
        %v1421 = vsel %vm1420, %v1269, %v1262
        %vm1422 = vcmask 1042434
        %v1423 = vsel %vm1422, %v1276, %v1421
        %vm1424 = vcmask 1043459
        %v1425 = vsel %vm1424, %v1283, %v1423
        %vm1426 = vcmask 1044484
        %v1427 = vsel %vm1426, %v1290, %v1425
        %vm1428 = vcmask 1045509
        %v1429 = vsel %vm1428, %v1297, %v1427
        %vm1430 = vcmask 1046534
        %v1431 = vsel %vm1430, %v1304, %v1429
        %vm1432 = vcmask 1047559
        %v1433 = vsel %vm1432, %v1311, %v1431
        %v1434 = vsel %vm1420, %v1325, %v1318
        %v1435 = vsel %vm1422, %v1332, %v1434
        %v1436 = vsel %vm1424, %v1339, %v1435
        %v1437 = vsel %vm1426, %v1346, %v1436
        %v1438 = vsel %vm1428, %v1353, %v1437
        %v1439 = vsel %vm1430, %v1360, %v1438
        %v1440 = vsel %vm1432, %v1367, %v1439
        %1443 = vmatpush.msra.mxu0 %v1399
        %1444 = vmatpush.msra.mxu0 %v1398
        %1445 = vmatpush.msra.mxu0 %v1397
        %1446 = vmatpush.msra.mxu0 %v1396
        %1447 = vmatpush.msra.mxu0 %v1395
        %1448 = vmatpush.msra.mxu0 %v1394
        %1449 = vmatpush.msra.mxu0 %v1393
        %1450 = vmatpush.msra.mxu0 %v1392
        %1451 = vmatpush.msra.mxu0 %v1391
        %1452 = vmatpush.msra.mxu0 %v1390
        %1453 = vmatpush.msra.mxu0 %v1389
        %1454 = vmatpush.msra.mxu0 %v1388
        %1455 = vmatpush.msra.mxu0 %v1387
        %1456 = vmatpush.msra.mxu0 %v1386
        %1457 = vmatpush.msra.mxu0 %v1385
        %1458 = vmatpush.msra.mxu0 %v1384
        %1459 = vmatmul.f32.gmra.mxu0 %v1433
        %v1460 = vpop.f32.mrf.mxu0
        %v1461 = vadd.f32 %v1402, %v1460
        %1462 = vmatmul.f32.gmra.mxu0 %v1440
        %v1463 = vpop.f32.mrf.mxu0
        %v1464 = vadd.f32 %v1402, %v1463
        %1465 = vdwg.mxu0
        %v1466 = vadd.f32 %v505, %v1461
        %v1467 = vadd.f32 %v506, %v1464
        %v1468 = vld [vmem:[%s8] sm:$0x1]
        %v1469 = vld [vmem:[%s9] sm:$0x1]
        %1470 = vadd.xlane.f32.xlu0 %v1466
        %v1471 = vpop.xlane.xlu0 %1470
        %1472 = vadd.xlane.f32.xlu0 %v1467
        %v1473 = vpop.xlane.xlu0 %1472
        %v1474 = vmul.f32 %v1471, 0.03125
        %v1475 = vmul.f32 %v1473, 0.03125
        %v1476 = vsub.f32 %v1466, %v1474
        %v1477 = vsub.f32 %v1467, %v1475
        %v1478 = vsel %vm521, %v1476, 0.0
        %v1479 = vsel %vm521, %v1477, 0.0
        %v1480 = vmul.f32 %v1478, %v1478
        %v1481 = vmul.f32 %v1479, %v1479
        %1482 = vadd.xlane.f32.xlu0 %v1480
        %v1483 = vpop.xlane.xlu0 %1482
        %1484 = vadd.xlane.f32.xlu0 %v1481
        %v1485 = vpop.xlane.xlu0 %1484
        %v1486 = vmul.f32 %v1483, 0.03125
        %v1487 = vmul.f32 %v1485, 0.03125
        %v1488 = vadd.f32 %v1486, 1e-05
        %v1489 = vadd.f32 %v1487, 1e-05
        %v1490 = vrsqrt.pop %v1488
        %v1491 = vmul.f32 %v1490, %v1488
        %v1492 = vmul.f32 %v1491, %v1490
        %v1493 = vmul.f32 0.5, %v1492
        %v1494 = vsub.f32 1.5, %v1493
        %v1495 = vmul.f32 %v1490, %v1494
        %vm1496 = vweird.f32 %v1488
        %vm1497 = vweird.f32 %v1490
        %vm1498 = vmor %vm1496, %vm1497
        %v1499 = vsel %vm1498, %v1490, %v1495
        %v1500 = vrsqrt.pop %v1489
        %v1501 = vmul.f32 %v1500, %v1489
        %v1502 = vmul.f32 %v1501, %v1500
        %v1503 = vmul.f32 0.5, %v1502
        %v1504 = vsub.f32 1.5, %v1503
        %v1505 = vmul.f32 %v1500, %v1504
        %vm1506 = vweird.f32 %v1489
        %vm1507 = vweird.f32 %v1500
        %vm1508 = vmor %vm1506, %vm1507
        %v1509 = vsel %vm1508, %v1500, %v1505
        %v1510 = vmul.f32 %v1478, %v1499
        %v1511 = vmul.f32 %v1479, %v1509
        %v1513 = vperm.slane %v1468, 0
        %v1515 = vmul.f32 %v1510, %v1513
        %v1516 = vmul.f32 %v1511, %v1513
        %v1518 = vperm.slane %v1469, 0
        %v1520 = vadd.f32 %v1515, %v1518
        %v1521 = vadd.f32 %v1516, %v1518
        %v1522 = vld [vmem:[#allocation2] sm:$0xf]
        %v1523 = vld [vmem:[#allocation2 + $0x4] sm:$0xf]
        %v1524 = vld [vmem:[#allocation2 + $0x8] sm:$0xf]
        %v1525 = vld [vmem:[#allocation2 + $0xc] sm:$0xf]
        %v1526 = vld [vmem:[#allocation2 + $0x10] sm:$0xf]
        %v1527 = vld [vmem:[#allocation2 + $0x14] sm:$0xf]
        %v1528 = vld [vmem:[#allocation2 + $0x18] sm:$0xf]
        %v1529 = vld [vmem:[#allocation2 + $0x1c] sm:$0xf]
        %v1530 = vld [vmem:[#allocation2 + $0x20] sm:$0xf]
        %v1531 = vld [vmem:[#allocation2 + $0x24] sm:$0xf]
        %v1532 = vld [vmem:[#allocation2 + $0x28] sm:$0xf]
        %v1533 = vld [vmem:[#allocation2 + $0x2c] sm:$0xf]
        %v1534 = vld [vmem:[#allocation2 + $0x30] sm:$0xf]
        %v1535 = vld [vmem:[#allocation2 + $0x34] sm:$0xf]
        %v1536 = vld [vmem:[#allocation2 + $0x38] sm:$0xf]
        %v1537 = vld [vmem:[#allocation2 + $0x3c] sm:$0xf]
        %v1538 = vunpack.c.l.bf16 %v1522
        %v1539 = vunpack.c.l.bf16 %v1523
        %v1540 = vunpack.c.l.bf16 %v1524
        %v1541 = vunpack.c.l.bf16 %v1525
        %v1542 = vunpack.c.l.bf16 %v1526
        %v1543 = vunpack.c.l.bf16 %v1527
        %v1544 = vunpack.c.l.bf16 %v1528
        %v1545 = vunpack.c.l.bf16 %v1529
        %v1546 = vunpack.c.l.bf16 %v1530
        %v1547 = vunpack.c.l.bf16 %v1531
        %v1548 = vunpack.c.l.bf16 %v1532
        %v1549 = vunpack.c.l.bf16 %v1533
        %v1550 = vunpack.c.l.bf16 %v1534
        %v1551 = vunpack.c.l.bf16 %v1535
        %v1552 = vunpack.c.l.bf16 %v1536
        %v1553 = vunpack.c.l.bf16 %v1537
        %v1554 = vld [vmem:[%s11] sm:$0x1]
        %v1556 = vperm.slane %v1554, 0
        %1558 = vmatpush.msra.mxu0 %v1553
        %1559 = vmatpush.msra.mxu0 %v1552
        %1560 = vmatpush.msra.mxu0 %v1551
        %1561 = vmatpush.msra.mxu0 %v1550
        %1562 = vmatpush.msra.mxu0 %v1549
        %1563 = vmatpush.msra.mxu0 %v1548
        %1564 = vmatpush.msra.mxu0 %v1547
        %1565 = vmatpush.msra.mxu0 %v1546
        %1566 = vmatpush.msra.mxu0 %v1545
        %1567 = vmatpush.msra.mxu0 %v1544
        %1568 = vmatpush.msra.mxu0 %v1543
        %1569 = vmatpush.msra.mxu0 %v1542
        %1570 = vmatpush.msra.mxu0 %v1541
        %1571 = vmatpush.msra.mxu0 %v1540
        %1572 = vmatpush.msra.mxu0 %v1539
        %1573 = vmatpush.msra.mxu0 %v1538
        %1574 = vmatmul.f32.gmra.mxu0 %v1520
        %v1575 = vpop.f32.mrf.mxu0
        %v1576 = vadd.f32 %v1556, %v1575
        %1577 = vmatmul.f32.gmra.mxu0 %v1521
        %v1578 = vpop.f32.mrf.mxu0
        %v1579 = vadd.f32 %v1556, %v1578
        %1580 = vdwg.mxu0
        %v1581 = vmul.f32 %v1576, 0.5
        %v1582 = vmul.f32 %v1579, 0.5
        %v1583 = vmul.f32 %v1576, 0.70710677
        %v1584 = vmul.f32 %v1579, 0.70710677
        %v1585 = vmul.f32 %v1583, %v1583
        %v1586 = vmin.f32 16.0, %v1585
        %v1587 = vmul.f32 %v1586, 2.1237322e-06
        %v1588 = vadd.f32 %v1587, 0.00028619796
        %v1589 = vmul.f32 %v1586, %v1588
        %v1590 = vadd.f32 %v1589, 0.0036580483
        %v1591 = vmul.f32 %v1586, %v1590
        %v1592 = vadd.f32 %v1591, 0.05243302
        %v1593 = vmul.f32 %v1586, %v1592
        %v1594 = vadd.f32 %v1593, 0.18741608
        %v1595 = vmul.f32 %v1586, %v1594
        %v1596 = vadd.f32 %v1595, 1.1283791
        %v1597 = vmul.f32 %v1583, %v1596
        %v1598 = vmul.f32 %v1586, 3.8918573e-05
        %v1599 = vadd.f32 %v1598, 0.001143296
        %v1600 = vmul.f32 %v1586, %v1599
        %v1601 = vadd.f32 %v1600, 0.014752088
        %v1602 = vmul.f32 %v1586, %v1601
        %v1603 = vadd.f32 %v1602, 0.112945676
        %v1604 = vmul.f32 %v1586, %v1603
        %v1605 = vadd.f32 %v1604, 0.4994258
        %v1606 = vmul.f32 %v1586, %v1605
        %v1607 = vadd.f32 %v1606, 1.0
        %v1608 = vrcp.pop %v1607
        %v1609 = vmul.f32 %v1607, %v1608
        %v1610 = vsub.f32 1.0, %v1609
        %v1611 = vmul.f32 %v1608, %v1610
        %v1612 = vadd.f32 %v1608, %v1611
        %vm1613 = vweird.f32 %v1607
        %vm1614 = vweird.f32 %v1608
        %vm1615 = vmor %vm1613, %vm1614
        %v1616 = vsel %vm1615, %v1608, %v1612
        %v1617 = vand.u32 2147483647, %v1607
        %vm1618 = vcmp.eq.f32.partialorder %v1617, 8.507059e+37
        %v1619 = vand.u32 %v1607, 2147483648
        %v1620 = vor.u32 1.1754944e-38, %v1619
        %v1621 = vsel %vm1618, %v1620, %v1616
        %v1622 = vmul.f32 %v1597, %v1621
        %v1623 = vmin.f32 %v1622, 1.0
        %v1624 = vmax.f32 %v1623, -1.0
        %v1625 = vmul.f32 %v1584, %v1584
        %v1626 = vmin.f32 16.0, %v1625
        %v1627 = vmul.f32 %v1626, 2.1237322e-06
        %v1628 = vadd.f32 %v1627, 0.00028619796
        %v1629 = vmul.f32 %v1626, %v1628
        %v1630 = vadd.f32 %v1629, 0.0036580483
        %v1631 = vmul.f32 %v1626, %v1630
        %v1632 = vadd.f32 %v1631, 0.05243302
        %v1633 = vmul.f32 %v1626, %v1632
        %v1634 = vadd.f32 %v1633, 0.18741608
        %v1635 = vmul.f32 %v1626, %v1634
        %v1636 = vadd.f32 %v1635, 1.1283791
        %v1637 = vmul.f32 %v1584, %v1636
        %v1638 = vmul.f32 %v1626, 3.8918573e-05
        %v1639 = vadd.f32 %v1638, 0.001143296
        %v1640 = vmul.f32 %v1626, %v1639
        %v1641 = vadd.f32 %v1640, 0.014752088
        %v1642 = vmul.f32 %v1626, %v1641
        %v1643 = vadd.f32 %v1642, 0.112945676
        %v1644 = vmul.f32 %v1626, %v1643
        %v1645 = vadd.f32 %v1644, 0.4994258
        %v1646 = vmul.f32 %v1626, %v1645
        %v1647 = vadd.f32 %v1646, 1.0
        %v1648 = vrcp.pop %v1647
        %v1649 = vmul.f32 %v1647, %v1648
        %v1650 = vsub.f32 1.0, %v1649
        %v1651 = vmul.f32 %v1648, %v1650
        %v1652 = vadd.f32 %v1648, %v1651
        %vm1653 = vweird.f32 %v1647
        %vm1654 = vweird.f32 %v1648
        %vm1655 = vmor %vm1653, %vm1654
        %v1656 = vsel %vm1655, %v1648, %v1652
        %v1657 = vand.u32 2147483647, %v1647
        %vm1658 = vcmp.eq.f32.partialorder %v1657, 8.507059e+37
        %v1659 = vand.u32 %v1647, 2147483648
        %v1660 = vor.u32 1.1754944e-38, %v1659
        %v1661 = vsel %vm1658, %v1660, %v1656
        %v1662 = vmul.f32 %v1637, %v1661
        %v1663 = vmin.f32 %v1662, 1.0
        %v1664 = vmax.f32 %v1663, -1.0
        %v1665 = vadd.f32 %v1624, 1.0
        %v1666 = vadd.f32 %v1664, 1.0
        %v1667 = vmul.f32 %v1581, %v1665
        %v1668 = vmul.f32 %v1582, %v1666
        %v1669 = vld [vmem:[#allocation4] sm:$0xf]
        %v1670 = vld [vmem:[#allocation4 + $0x4] sm:$0xf]
        %v1671 = vld [vmem:[#allocation4 + $0x8] sm:$0xf]
        %v1672 = vld [vmem:[#allocation4 + $0xc] sm:$0xf]
        %v1673 = vld [vmem:[#allocation4 + $0x10] sm:$0xf]
        %v1674 = vld [vmem:[#allocation4 + $0x14] sm:$0xf]
        %v1675 = vld [vmem:[#allocation4 + $0x18] sm:$0xf]
        %v1676 = vld [vmem:[#allocation4 + $0x1c] sm:$0xf]
        %v1677 = vld [vmem:[#allocation4 + $0x20] sm:$0xf]
        %v1678 = vld [vmem:[#allocation4 + $0x24] sm:$0xf]
        %v1679 = vld [vmem:[#allocation4 + $0x28] sm:$0xf]
        %v1680 = vld [vmem:[#allocation4 + $0x2c] sm:$0xf]
        %v1681 = vld [vmem:[#allocation4 + $0x30] sm:$0xf]
        %v1682 = vld [vmem:[#allocation4 + $0x34] sm:$0xf]
        %v1683 = vld [vmem:[#allocation4 + $0x38] sm:$0xf]
        %v1684 = vld [vmem:[#allocation4 + $0x3c] sm:$0xf]
        %v1685 = vunpack.c.l.bf16 %v1669
        %v1686 = vunpack.c.l.bf16 %v1670
        %v1687 = vunpack.c.l.bf16 %v1671
        %v1688 = vunpack.c.l.bf16 %v1672
        %v1689 = vunpack.c.l.bf16 %v1673
        %v1690 = vunpack.c.l.bf16 %v1674
        %v1691 = vunpack.c.l.bf16 %v1675
        %v1692 = vunpack.c.l.bf16 %v1676
        %v1693 = vunpack.c.l.bf16 %v1677
        %v1694 = vunpack.c.l.bf16 %v1678
        %v1695 = vunpack.c.l.bf16 %v1679
        %v1696 = vunpack.c.l.bf16 %v1680
        %v1697 = vunpack.c.l.bf16 %v1681
        %v1698 = vunpack.c.l.bf16 %v1682
        %v1699 = vunpack.c.l.bf16 %v1683
        %v1700 = vunpack.c.l.bf16 %v1684
        %v1701 = vld [vmem:[%s13] sm:$0x1]
        %v1703 = vperm.slane %v1701, 0
        %1705 = vmatpush.msra.mxu0 %v1700
        %1706 = vmatpush.msra.mxu0 %v1699
        %1707 = vmatpush.msra.mxu0 %v1698
        %1708 = vmatpush.msra.mxu0 %v1697
        %1709 = vmatpush.msra.mxu0 %v1696
        %1710 = vmatpush.msra.mxu0 %v1695
        %1711 = vmatpush.msra.mxu0 %v1694
        %1712 = vmatpush.msra.mxu0 %v1693
        %1713 = vmatpush.msra.mxu0 %v1692
        %1714 = vmatpush.msra.mxu0 %v1691
        %1715 = vmatpush.msra.mxu0 %v1690
        %1716 = vmatpush.msra.mxu0 %v1689
        %1717 = vmatpush.msra.mxu0 %v1688
        %1718 = vmatpush.msra.mxu0 %v1687
        %1719 = vmatpush.msra.mxu0 %v1686
        %1720 = vmatpush.msra.mxu0 %v1685
        %1721 = vmatmul.f32.gmra.mxu0 %v1667
        %v1722 = vpop.f32.mrf.mxu0
        %v1723 = vadd.f32 %v1703, %v1722
        %1724 = vmatmul.f32.gmra.mxu0 %v1668
        %v1725 = vpop.f32.mrf.mxu0
        %v1726 = vadd.f32 %v1703, %v1725
        %1727 = vdwg.mxu0
        %v1728 = vadd.f32 %v1466, %v1723
        %v1729 = vadd.f32 %v1467, %v1726
        %1730 = vst [vmem:[%s503] sm:$0xff] %v1728
        %1731 = vst [vmem:[%s503 + $0x8] sm:$0xff] %v1729
        %s1732 = smul.u32 2, %s27
        %p1733 = scmp.lt.s32.totalorder %s1732, 5
        %s1734 = scalar_select %p1733, %s1732, 5
        %s1735 = smul.addr %s1734, 8
        %s1736 = scalar_lea.vmem %s14, %s1735
        // Predicated region
        $region85: #{vit_forward.5} parent=75 // pred_check
          %p1737 = pneg %p344
        $region86: #{vit_forward.5} parent=75 // pred_check_branch
          %1739 = sbr.rel (%p1737) target = $region88
        $region87: #{vit_forward.5} parent=75 // pred_region
          %s1740 = smul.u32 2, %s27
        $region88: #{vit_forward.5} parent=75 // pred_fallthru
          _
      $region76: #{vit_forward.5} parent=5 // pred_fallthru
        _
      %p1741 = scmp.le.s32.totalorder 2, %s22
      // Predicated region
      $region89: #{vit_forward.5} parent=5 // pred_check
        %p1742 = pneg %p1741
      $region90: #{vit_forward.5} parent=5 // pred_check_branch
        %1744 = sbr.rel (%p1742) target = $region92
      $region91: #{vit_forward.5} parent=5 // pred_region
        %s1745 = ssub.s32 %s22, 2
        // Predicated region
        $region93: #{vit_forward.5} parent=91 // pred_check
          %p1746 = pneg %p350
        $region94: #{vit_forward.5} parent=91 // pred_check_branch
          %1748 = sbr.rel (%p1746) target = $region96
        $region95: #{vit_forward.5} parent=91 // pred_region
          %s1749 = smul.u32 2, %s28
          %p1750 = scmp.lt.s32.totalorder %s1749, 5
          %s1751 = scalar_select %p1750, %s1749, 5
          %s1752 = smul.addr %s1751, 8
          %s1753 = scalar_lea.vmem %s14, %s1752
        $region96: #{vit_forward.5} parent=91 // pred_fallthru
          _
      $region92: #{vit_forward.5} parent=5 // pred_fallthru
        _
    $region6: #{vit_forward.5} parent=1 // loop_footer
      %s26 = sadd.s32 1, %s22
    $region7: #{vit_forward.5} parent=1 // loop_footer_branch
      %21 = sbr.rel target = $region3
    $region8: #{vit_forward.5} parent=1 // loop_exit
      _
    %1754 = vsyncpa [#allocation3], 1
    %s1755 = scalar_lea.sflag [#allocation3], 1
    %1756 = vsyncpa %s1755, 1
    %1757 = vsyncpa [#allocation5], 1

</llo_original>
